<compile_context>
chip_gen: v7x
topology: tpu7x:2x2x1
jax: 0.10.0
libtpu: 0.0.40
codegen_flags: <defaults>
</compile_context>

<pallas_src>
import jax
import jax.numpy as jnp
from jax import lax
from jax.experimental import pallas as pl
from jax.experimental.pallas import tpu as pltpu

B_BLK = 8            # images per grid step
S_PAD = 9            # rows per input parity-plane per image (8 real + 1 zero)
M1 = 8 * B_BLK       # rows per conv1 output-row group (t = 0..7)
M2 = 8 * B_BLK       # rows per conv2 output-row group (m = 0..7)


# ------------------------------ Pallas kernel ------------------------------ #

def _lenet_kernel(x_ref, w1_ref, b1_ref, w2_ref, b2_ref,
                  f1_ref, fb1_ref, f2_ref, fb2_ref, f3_ref, fb3_ref, o_ref):
    B = B_BLK
    bf16 = w1_ref.dtype

    # -------- conv1: 5 Toeplitz dots (one per kernel row) ------------------
    # x_ref[p] holds input rows 4s+p of all B images (rows ordered (s, b),
    # lanes = w*3 + c).  Accumulator rows are ordered (r, t, b) with conv1
    # output row = 4t + r; columns are (w-parity, pooled col, channel), so
    # both halves of the 2x2 max-pool reduce to elementwise maxes.
    xp = [x_ref[p] for p in range(4)]
    acc1 = jnp.zeros((4 * M1, 256), jnp.float32)
    for di in range(5):
        parts = []
        for r in range(4):
            v, u = (r + di) % 4, (r + di) // 4
            parts.append(xp[v][u * B:u * B + M1])
        lhs = jnp.concatenate(parts, axis=0)                    # (256, 128) bf16
        acc1 = acc1 + jnp.dot(lhs, w1_ref[di],
                              preferred_element_type=jnp.float32)

    pe = jnp.maximum(acc1[0 * M1:1 * M1], acc1[1 * M1:2 * M1])  # rows 4t, 4t+1
    po = jnp.maximum(acc1[2 * M1:3 * M1], acc1[3 * M1:4 * M1])  # rows 4t+2, 4t+3
    b1 = b1_ref[...]
    y1e = jnp.maximum(jnp.maximum(pe[:, :128], pe[:, 128:]) + b1, 0.0)
    y1o = jnp.maximum(jnp.maximum(po[:, :128], po[:, 128:]) + b1, 0.0)
    zpad = jnp.zeros((2 * B, 128), jnp.float32)
    # y1[j%2][(j//2)*B + b] = pooled conv1 row j of image b; rows j>=14 and
    # the appended zeros only ever feed conv2 rows that are discarded.
    y1 = (jnp.concatenate([y1e, zpad], axis=0).astype(bf16),    # (80, 128)
          jnp.concatenate([y1o, zpad], axis=0).astype(bf16))

    # -------- conv2: 5 Toeplitz dots ---------------------------------------
    acc2 = jnp.zeros((2 * M2, 256), jnp.float32)
    for di in range(5):
        parts = []
        for q in range(2):
            v, u = (q + di) % 2, (q + di) // 2
            parts.append(y1[v][u * B:u * B + M2])
        lhs = jnp.concatenate(parts, axis=0)                    # (128, 128) bf16
        acc2 = acc2 + jnp.dot(lhs, w2_ref[di],
                              preferred_element_type=jnp.float32)

    p2 = jnp.maximum(acc2[:M2], acc2[M2:])                      # height pool
    y2 = jnp.maximum(jnp.maximum(p2[:, :128], p2[:, 128:]) + b2_ref[...], 0.0)
    y2 = y2.astype(bf16)                                        # (64, 128)
    # y2[m*B + b, w*16 + c] = pooled conv2 activation (c, h=m, w) of image b.

    # -------- fc1 -> fc2 -> fc3 --------------------------------------------
    h = jnp.zeros((B, 128), jnp.float32)
    for m in range(5):                                          # 5 valid pooled rows
        h = h + jnp.dot(y2[m * B:(m + 1) * B], f1_ref[m],
                        preferred_element_type=jnp.float32)
    h = jnp.maximum(h + fb1_ref[...], 0.0).astype(bf16)
    h = jnp.dot(h, f2_ref[...], preferred_element_type=jnp.float32)
    h = jnp.maximum(h + fb2_ref[...], 0.0).astype(bf16)
    h = jnp.dot(h, f3_ref[...], preferred_element_type=jnp.float32)
    o_ref[...] = h + fb3_ref[...]


# ------------------------------- parameters -------------------------------- #

def init_torch_params(key):
    """PyTorch-layout params, nn.Conv2d/nn.Linear default U(-1/sqrt(fan_in))."""
    ks = jax.random.split(key, 10)

    def u(k, shape, fan_in):
        bound = 1.0 / jnp.sqrt(jnp.float32(fan_in))
        return jax.random.uniform(k, shape, jnp.float32, -bound, bound)

    return {
        "conv1_w": u(ks[0], (6, 3, 5, 5), 3 * 5 * 5),        # OIHW
        "conv1_b": u(ks[1], (6,), 3 * 5 * 5),
        "conv2_w": u(ks[2], (16, 6, 5, 5), 6 * 5 * 5),
        "conv2_b": u(ks[3], (16,), 6 * 5 * 5),
        "fc1_w":   u(ks[4], (120, 16 * 5 * 5), 16 * 5 * 5),  # (out, in=(c,h,w))
        "fc1_b":   u(ks[5], (120,), 16 * 5 * 5),
        "fc2_w":   u(ks[6], (84, 120), 120),
        "fc2_b":   u(ks[7], (84,), 120),
        "fc3_w":   u(ks[8], (10, 84), 84),
        "fc3_b":   u(ks[9], (10,), 84),
    }


def _conv_toeplitz(w, in_width, in_cpad, out_w2, out_cpad):
    """Per-kernel-row Toeplitz weight, shape (KH, 128, 256) bf16.

    rows : w_in*in_cpad + ci           (zero beyond the real extent)
    cols : parity*128 + ow2*out_cpad + co, i.e. output column 2*ow2+parity.
    """
    cout, cin, kh, kw = w.shape
    wi = jnp.arange(in_width)
    pr = jnp.arange(2)
    o2 = jnp.arange(out_w2)
    dj = wi[:, None, None] - (2 * o2[None, None, :] + pr[None, :, None])
    valid = (dj >= 0) & (dj < kw)
    djc = jnp.clip(dj, 0, kw - 1)
    wt = jnp.transpose(w, (2, 3, 1, 0))                       # (KH, KW, Cin, Cout)
    g = wt[:, djc] * valid[None, :, :, :, None, None]         # (KH, w, par, ow2, ci, co)
    g = jnp.transpose(g, (0, 1, 4, 2, 3, 5))                  # (KH, w, ci, par, ow2, co)
    g = jnp.pad(g, ((0, 0), (0, 0), (0, in_cpad - cin), (0, 0),
                    (0, 128 // out_cpad - out_w2), (0, out_cpad - cout)))
    g = g.reshape(kh, in_width * in_cpad, 256)
    g = jnp.pad(g, ((0, 0), (0, 128 - in_width * in_cpad), (0, 0)))
    return g.astype(jnp.bfloat16)


def _bias_lanes(b, out_w2, out_cpad):
    bl = jnp.zeros((128 // out_cpad, out_cpad), jnp.float32)
    bl = bl.at[:out_w2, :b.shape[0]].set(jnp.broadcast_to(b, (out_w2, b.shape[0])))
    return bl.reshape(1, 128)


def prepare_kernel_params(p):
    """One-time weight reshuffle into the kernel-native Toeplitz/lane layouts."""
    bf16 = jnp.bfloat16

    w1 = _conv_toeplitz(p["conv1_w"], in_width=32, in_cpad=3, out_w2=14, out_cpad=8)
    w2 = _conv_toeplitz(p["conv2_w"], in_width=14, in_cpad=8, out_w2=5, out_cpad=16)
    b1 = _bias_lanes(p["conv1_b"], out_w2=14, out_cpad=8)
    b2 = _bias_lanes(p["conv2_b"], out_w2=5, out_cpad=16)

    # fc1: PyTorch flatten order is (c, h, w); kernel features live at
    # (pooled row m=h, lane = w*16 + c), so permute + zero-pad accordingly.
    f1 = p["fc1_w"].reshape(120, 16, 5, 5)           # (j, c, h, w)
    f1 = jnp.transpose(f1, (2, 3, 1, 0))             # (h, w, c, j)
    f1 = jnp.pad(f1, ((0, 0), (0, 3), (0, 0), (0, 8)))
    f1 = f1.reshape(5, 128, 128).astype(bf16)
    fb1 = jnp.pad(p["fc1_b"], (0, 8)).reshape(1, 128)

    f2 = jnp.pad(p["fc2_w"].T, ((0, 8), (0, 44))).astype(bf16)
    fb2 = jnp.pad(p["fc2_b"], (0, 44)).reshape(1, 128)
    f3 = jnp.pad(p["fc3_w"].T, ((0, 44), (0, 118))).astype(bf16)
    fb3 = jnp.pad(p["fc3_b"], (0, 118)).reshape(1, 128)

    kp = {"w1": w1, "b1": b1, "w2": w2, "b2": b2,
          "f1": f1, "fb1": fb1, "f2": f2, "fb2": fb2, "f3": f3, "fb3": fb3}

    # Padding invariants the kernel relies on (garbage lanes never contribute).
    assert float(jnp.abs(w1[:, 96:, :]).sum()) == 0.0    # unused conv1 input lanes
    assert float(jnp.abs(w2[:, 112:, :]).sum()) == 0.0   # unused conv2 input lanes
    assert float(jnp.abs(f1[:, 80:, :]).sum()) == 0.0    # unused fc1 feature lanes
    assert float(jnp.abs(f2[120:, :]).sum()) == 0.0      # unused fc2 input lanes
    return kp


# -------------------------------- forward ----------------------------------- #

@jax.jit
def simple_cnn_forward(kp, x_nchw):
    # x_nchw: (N, 3, 32, 32) float32, same interface as the PyTorch module.
    N, C, H, W = x_nchw.shape
    assert (C, H, W) == (3, 32, 32), (C, H, W)
    B = B_BLK
    Np = ((N + B - 1) // B) * B
    NB = Np // B

    # XLA entry glue: pad batch to a multiple of B_BLK, NCHW->NHWC, split the
    # image rows mod 4 (h = 4s + p), order rows (s, image), lane = w*3 + c,
    # pad to 128 lanes and one extra zero row per image, cast to bf16.
    x = jnp.pad(x_nchw, ((0, Np - N), (0, 0), (0, 0), (0, 0)))
    x = jnp.transpose(x, (0, 2, 3, 1))                  # (Np, 32, 32, 3)
    x = x.reshape(NB, B, 8, 4, 96)                      # (ib, b, s, p, w*3+c)
    x = jnp.transpose(x, (0, 3, 2, 1, 4))               # (ib, p, s, b, lane)
    x = jnp.pad(x, ((0, 0), (0, 0), (0, 1), (0, 0), (0, 32)))
    x = x.reshape(NB, 4, S_PAD * B, 128).astype(jnp.bfloat16)

    def wspec(a):
        return pl.BlockSpec(a.shape, lambda ib, nd=a.ndim: (0,) * nd)

    out = pl.pallas_call(
        _lenet_kernel,
        out_shape=jax.ShapeDtypeStruct((Np, 128), jnp.float32),
        grid=(NB,),
        in_specs=[pl.BlockSpec((None, 4, S_PAD * B, 128),
                               lambda ib: (ib, 0, 0, 0))]
                 + [wspec(kp[k]) for k in ("w1", "b1", "w2", "b2", "f1", "fb1",
                                           "f2", "fb2", "f3", "fb3")],
        out_specs=pl.BlockSpec((B, 128), lambda ib: (ib, 0)),
        compiler_params=pltpu.CompilerParams(
            dimension_semantics=("parallel",)),
    )(x, kp["w1"], kp["b1"], kp["w2"], kp["b2"], kp["f1"], kp["fb1"],
      kp["f2"], kp["fb2"], kp["f3"], kp["fb3"])

    return out[:N, :10]


# ------------------------- pure-JAX reference check ------------------------- #

def reference_forward(p, x_nchw):
    dn = ("NCHW", "OIHW", "NCHW")
    y = lax.conv_general_dilated(x_nchw, p["conv1_w"], (1, 1), "VALID",
                                 dimension_numbers=dn)
    y = jax.nn.relu(y + p["conv1_b"][None, :, None, None])
    y = lax.reduce_window(y, -jnp.inf, lax.max, (1, 1, 2, 2), (1, 1, 2, 2), "VALID")
    y = lax.conv_general_dilated(y, p["conv2_w"], (1, 1), "VALID",
                                 dimension_numbers=dn)
    y = jax.nn.relu(y + p["conv2_b"][None, :, None, None])
    y = lax.reduce_window(y, -jnp.inf, lax.max, (1, 1, 2, 2), (1, 1, 2, 2), "VALID")
    f = y.reshape(y.shape[0], -1)                       # NCHW flatten == view(-1, 400)
    h = jax.nn.relu(f @ p["fc1_w"].T + p["fc1_b"])
    h = jax.nn.relu(h @ p["fc2_w"].T + p["fc2_b"])
    return h @ p["fc3_w"].T + p["fc3_b"]


if __name__ == "__main__":
    key = jax.random.PRNGKey(0)
    pkey, xkey = jax.random.split(key)
    torch_params = init_torch_params(pkey)
    kparams = prepare_kernel_params(torch_params)

    x = jax.random.normal(xkey, (10, 3, 32, 32), jnp.float32)

    out = simple_cnn_forward(kparams, x)
    out = jax.block_until_ready(out)
    assert out.shape == (10, 10), out.shape

    # numerical check vs f32 XLA reference (kernel uses bf16 MXU operands)
    ref = reference_forward(torch_params, x)
    err = float(jnp.max(jnp.abs(out - ref)))
    assert err < 3e-2, f"mismatch vs reference: {err}"

    print("KERNEL_OK")
</pallas_src>

<mosaic_0001>
module attributes {stable_mosaic.version = 11 : i64} {
  func.func @_lenet_kernel(%arg0: i32, %arg1: memref<1x4x72x128xbf16, #tpu.memory_space<vmem>>, %arg2: memref<5x128x256xbf16, #tpu.memory_space<vmem>>, %arg3: memref<1x128xf32, #tpu.memory_space<vmem>>, %arg4: memref<5x128x256xbf16, #tpu.memory_space<vmem>>, %arg5: memref<1x128xf32, #tpu.memory_space<vmem>>, %arg6: memref<5x128x128xbf16, #tpu.memory_space<vmem>>, %arg7: memref<1x128xf32, #tpu.memory_space<vmem>>, %arg8: memref<128x128xbf16, #tpu.memory_space<vmem>>, %arg9: memref<1x128xf32, #tpu.memory_space<vmem>>, %arg10: memref<128x128xbf16, #tpu.memory_space<vmem>>, %arg11: memref<1x128xf32, #tpu.memory_space<vmem>>, %arg12: memref<8x128xf32, #tpu.memory_space<vmem>>) attributes {dimension_semantics = [#tpu.dimension_semantics<parallel>], iteration_bounds = array<i64: 2>, scalar_prefetch = 0 : i64, scratch_operands = 0 : i64, tpu.core_type = #tpu.core_type<tc>, window_params = [{transform_indices = @transform_0, window_bounds = array<i64: 1, 4, 72, 128>}, {pipeline_mode = #tpu.pipeline_mode<synchronous>, transform_indices = @transform_1, window_bounds = array<i64: 5, 128, 256>}, {pipeline_mode = #tpu.pipeline_mode<synchronous>, transform_indices = @transform_2, window_bounds = array<i64: 1, 128>}, {pipeline_mode = #tpu.pipeline_mode<synchronous>, transform_indices = @transform_3, window_bounds = array<i64: 5, 128, 256>}, {pipeline_mode = #tpu.pipeline_mode<synchronous>, transform_indices = @transform_4, window_bounds = array<i64: 1, 128>}, {pipeline_mode = #tpu.pipeline_mode<synchronous>, transform_indices = @transform_5, window_bounds = array<i64: 5, 128, 128>}, {pipeline_mode = #tpu.pipeline_mode<synchronous>, transform_indices = @transform_6, window_bounds = array<i64: 1, 128>}, {pipeline_mode = #tpu.pipeline_mode<synchronous>, transform_indices = @transform_7, window_bounds = array<i64: 128, 128>}, {pipeline_mode = #tpu.pipeline_mode<synchronous>, transform_indices = @transform_8, window_bounds = array<i64: 1, 128>}, {pipeline_mode = #tpu.pipeline_mode<synchronous>, transform_indices = @transform_9, window_bounds = array<i64: 128, 128>}, {pipeline_mode = #tpu.pipeline_mode<synchronous>, transform_indices = @transform_10, window_bounds = array<i64: 1, 128>}, {transform_indices = @transform_11, window_bounds = array<i64: 8, 128>}]} {
    %c0 = arith.constant 0 : index
    %c0_0 = arith.constant 0 : index
    %c0_1 = arith.constant 0 : index
    %c0_2 = arith.constant 0 : index
    %0 = vector.load %arg1[%c0, %c0_0, %c0_1, %c0_2] : memref<1x4x72x128xbf16, #tpu.memory_space<vmem>>, vector<1x1x72x128xbf16>
    %1 = vector.shape_cast %0 : vector<1x1x72x128xbf16> to vector<72x128xbf16>
    %c0_3 = arith.constant 0 : index
    %c1 = arith.constant 1 : index
    %c0_4 = arith.constant 0 : index
    %c0_5 = arith.constant 0 : index
    %2 = vector.load %arg1[%c0_3, %c1, %c0_4, %c0_5] : memref<1x4x72x128xbf16, #tpu.memory_space<vmem>>, vector<1x1x72x128xbf16>
    %3 = vector.shape_cast %2 : vector<1x1x72x128xbf16> to vector<72x128xbf16>
    %c0_6 = arith.constant 0 : index
    %c2 = arith.constant 2 : index
    %c0_7 = arith.constant 0 : index
    %c0_8 = arith.constant 0 : index
    %4 = vector.load %arg1[%c0_6, %c2, %c0_7, %c0_8] : memref<1x4x72x128xbf16, #tpu.memory_space<vmem>>, vector<1x1x72x128xbf16>
    %5 = vector.shape_cast %4 : vector<1x1x72x128xbf16> to vector<72x128xbf16>
    %c0_9 = arith.constant 0 : index
    %c3 = arith.constant 3 : index
    %c0_10 = arith.constant 0 : index
    %c0_11 = arith.constant 0 : index
    %6 = vector.load %arg1[%c0_9, %c3, %c0_10, %c0_11] : memref<1x4x72x128xbf16, #tpu.memory_space<vmem>>, vector<1x1x72x128xbf16>
    %7 = vector.shape_cast %6 : vector<1x1x72x128xbf16> to vector<72x128xbf16>
    %cst = arith.constant 0.000000e+00 : f32
    %8 = vector.broadcast %cst : f32 to vector<256x256xf32>
    %9 = vector.extract_strided_slice %1 {offsets = [0, 0], sizes = [64, 128], strides = [1, 1]} : vector<72x128xbf16> to vector<64x128xbf16>
    %10 = vector.extract_strided_slice %3 {offsets = [0, 0], sizes = [64, 128], strides = [1, 1]} : vector<72x128xbf16> to vector<64x128xbf16>
    %11 = vector.extract_strided_slice %5 {offsets = [0, 0], sizes = [64, 128], strides = [1, 1]} : vector<72x128xbf16> to vector<64x128xbf16>
    %12 = vector.extract_strided_slice %7 {offsets = [0, 0], sizes = [64, 128], strides = [1, 1]} : vector<72x128xbf16> to vector<64x128xbf16>
    %13 = tpu.concatenate %9, %10, %11, %12 in 0 : vector<64x128xbf16>, vector<64x128xbf16>, vector<64x128xbf16>, vector<64x128xbf16> -> vector<256x128xbf16>
    %c0_12 = arith.constant 0 : index
    %c0_13 = arith.constant 0 : index
    %c0_14 = arith.constant 0 : index
    %14 = vector.load %arg2[%c0_12, %c0_13, %c0_14] : memref<5x128x256xbf16, #tpu.memory_space<vmem>>, vector<1x128x256xbf16>
    %15 = vector.shape_cast %14 : vector<1x128x256xbf16> to vector<128x256xbf16>
    %cst_15 = arith.constant dense<0.000000e+00> : vector<256x256xf32>
    %16 = tpu.matmul %13, %15, %cst_15 {dimension_numbers = #tpu.dot_dimension_numbers<[1], [0], [0], [1], [0, 0, 1, 1], [], []>} : vector<256x128xbf16>, vector<128x256xbf16>, vector<256x256xf32> -> vector<256x256xf32>
    %17 = arith.addf %8, %16 : vector<256x256xf32>
    %18 = vector.extract_strided_slice %3 {offsets = [0, 0], sizes = [64, 128], strides = [1, 1]} : vector<72x128xbf16> to vector<64x128xbf16>
    %19 = vector.extract_strided_slice %5 {offsets = [0, 0], sizes = [64, 128], strides = [1, 1]} : vector<72x128xbf16> to vector<64x128xbf16>
    %20 = vector.extract_strided_slice %7 {offsets = [0, 0], sizes = [64, 128], strides = [1, 1]} : vector<72x128xbf16> to vector<64x128xbf16>
    %21 = vector.extract_strided_slice %1 {offsets = [8, 0], sizes = [64, 128], strides = [1, 1]} : vector<72x128xbf16> to vector<64x128xbf16>
    %22 = tpu.concatenate %18, %19, %20, %21 in 0 : vector<64x128xbf16>, vector<64x128xbf16>, vector<64x128xbf16>, vector<64x128xbf16> -> vector<256x128xbf16>
    %c1_16 = arith.constant 1 : index
    %c0_17 = arith.constant 0 : index
    %c0_18 = arith.constant 0 : index
    %23 = vector.load %arg2[%c1_16, %c0_17, %c0_18] : memref<5x128x256xbf16, #tpu.memory_space<vmem>>, vector<1x128x256xbf16>
    %24 = vector.shape_cast %23 : vector<1x128x256xbf16> to vector<128x256xbf16>
    %cst_19 = arith.constant dense<0.000000e+00> : vector<256x256xf32>
    %25 = tpu.matmul %22, %24, %cst_19 {dimension_numbers = #tpu.dot_dimension_numbers<[1], [0], [0], [1], [0, 0, 1, 1], [], []>} : vector<256x128xbf16>, vector<128x256xbf16>, vector<256x256xf32> -> vector<256x256xf32>
    %26 = arith.addf %17, %25 : vector<256x256xf32>
    %27 = vector.extract_strided_slice %5 {offsets = [0, 0], sizes = [64, 128], strides = [1, 1]} : vector<72x128xbf16> to vector<64x128xbf16>
    %28 = vector.extract_strided_slice %7 {offsets = [0, 0], sizes = [64, 128], strides = [1, 1]} : vector<72x128xbf16> to vector<64x128xbf16>
    %29 = vector.extract_strided_slice %1 {offsets = [8, 0], sizes = [64, 128], strides = [1, 1]} : vector<72x128xbf16> to vector<64x128xbf16>
    %30 = vector.extract_strided_slice %3 {offsets = [8, 0], sizes = [64, 128], strides = [1, 1]} : vector<72x128xbf16> to vector<64x128xbf16>
    %31 = tpu.concatenate %27, %28, %29, %30 in 0 : vector<64x128xbf16>, vector<64x128xbf16>, vector<64x128xbf16>, vector<64x128xbf16> -> vector<256x128xbf16>
    %c2_20 = arith.constant 2 : index
    %c0_21 = arith.constant 0 : index
    %c0_22 = arith.constant 0 : index
    %32 = vector.load %arg2[%c2_20, %c0_21, %c0_22] : memref<5x128x256xbf16, #tpu.memory_space<vmem>>, vector<1x128x256xbf16>
    %33 = vector.shape_cast %32 : vector<1x128x256xbf16> to vector<128x256xbf16>
    %cst_23 = arith.constant dense<0.000000e+00> : vector<256x256xf32>
    %34 = tpu.matmul %31, %33, %cst_23 {dimension_numbers = #tpu.dot_dimension_numbers<[1], [0], [0], [1], [0, 0, 1, 1], [], []>} : vector<256x128xbf16>, vector<128x256xbf16>, vector<256x256xf32> -> vector<256x256xf32>
    %35 = arith.addf %26, %34 : vector<256x256xf32>
    %36 = vector.extract_strided_slice %7 {offsets = [0, 0], sizes = [64, 128], strides = [1, 1]} : vector<72x128xbf16> to vector<64x128xbf16>
    %37 = vector.extract_strided_slice %1 {offsets = [8, 0], sizes = [64, 128], strides = [1, 1]} : vector<72x128xbf16> to vector<64x128xbf16>
    %38 = vector.extract_strided_slice %3 {offsets = [8, 0], sizes = [64, 128], strides = [1, 1]} : vector<72x128xbf16> to vector<64x128xbf16>
    %39 = vector.extract_strided_slice %5 {offsets = [8, 0], sizes = [64, 128], strides = [1, 1]} : vector<72x128xbf16> to vector<64x128xbf16>
    %40 = tpu.concatenate %36, %37, %38, %39 in 0 : vector<64x128xbf16>, vector<64x128xbf16>, vector<64x128xbf16>, vector<64x128xbf16> -> vector<256x128xbf16>
    %c3_24 = arith.constant 3 : index
    %c0_25 = arith.constant 0 : index
    %c0_26 = arith.constant 0 : index
    %41 = vector.load %arg2[%c3_24, %c0_25, %c0_26] : memref<5x128x256xbf16, #tpu.memory_space<vmem>>, vector<1x128x256xbf16>
    %42 = vector.shape_cast %41 : vector<1x128x256xbf16> to vector<128x256xbf16>
    %cst_27 = arith.constant dense<0.000000e+00> : vector<256x256xf32>
    %43 = tpu.matmul %40, %42, %cst_27 {dimension_numbers = #tpu.dot_dimension_numbers<[1], [0], [0], [1], [0, 0, 1, 1], [], []>} : vector<256x128xbf16>, vector<128x256xbf16>, vector<256x256xf32> -> vector<256x256xf32>
    %44 = arith.addf %35, %43 : vector<256x256xf32>
    %45 = vector.extract_strided_slice %1 {offsets = [8, 0], sizes = [64, 128], strides = [1, 1]} : vector<72x128xbf16> to vector<64x128xbf16>
    %46 = vector.extract_strided_slice %3 {offsets = [8, 0], sizes = [64, 128], strides = [1, 1]} : vector<72x128xbf16> to vector<64x128xbf16>
    %47 = vector.extract_strided_slice %5 {offsets = [8, 0], sizes = [64, 128], strides = [1, 1]} : vector<72x128xbf16> to vector<64x128xbf16>
    %48 = vector.extract_strided_slice %7 {offsets = [8, 0], sizes = [64, 128], strides = [1, 1]} : vector<72x128xbf16> to vector<64x128xbf16>
    %49 = tpu.concatenate %45, %46, %47, %48 in 0 : vector<64x128xbf16>, vector<64x128xbf16>, vector<64x128xbf16>, vector<64x128xbf16> -> vector<256x128xbf16>
    %c4 = arith.constant 4 : index
    %c0_28 = arith.constant 0 : index
    %c0_29 = arith.constant 0 : index
    %50 = vector.load %arg2[%c4, %c0_28, %c0_29] : memref<5x128x256xbf16, #tpu.memory_space<vmem>>, vector<1x128x256xbf16>
    %51 = vector.shape_cast %50 : vector<1x128x256xbf16> to vector<128x256xbf16>
    %cst_30 = arith.constant dense<0.000000e+00> : vector<256x256xf32>
    %52 = tpu.matmul %49, %51, %cst_30 {dimension_numbers = #tpu.dot_dimension_numbers<[1], [0], [0], [1], [0, 0, 1, 1], [], []>} : vector<256x128xbf16>, vector<128x256xbf16>, vector<256x256xf32> -> vector<256x256xf32>
    %53 = arith.addf %44, %52 : vector<256x256xf32>
    %54 = vector.extract_strided_slice %53 {offsets = [0, 0], sizes = [64, 256], strides = [1, 1]} : vector<256x256xf32> to vector<64x256xf32>
    %55 = vector.extract_strided_slice %53 {offsets = [64, 0], sizes = [64, 256], strides = [1, 1]} : vector<256x256xf32> to vector<64x256xf32>
    %56 = arith.maximumf %54, %55 : vector<64x256xf32>
    %57 = vector.extract_strided_slice %53 {offsets = [128, 0], sizes = [64, 256], strides = [1, 1]} : vector<256x256xf32> to vector<64x256xf32>
    %58 = vector.extract_strided_slice %53 {offsets = [192, 0], sizes = [64, 256], strides = [1, 1]} : vector<256x256xf32> to vector<64x256xf32>
    %59 = arith.maximumf %57, %58 : vector<64x256xf32>
    %c0_31 = arith.constant 0 : index
    %c0_32 = arith.constant 0 : index
    %60 = vector.load %arg3[%c0_31, %c0_32] : memref<1x128xf32, #tpu.memory_space<vmem>>, vector<1x128xf32>
    %61 = vector.extract_strided_slice %56 {offsets = [0, 0], sizes = [64, 128], strides = [1, 1]} : vector<64x256xf32> to vector<64x128xf32>
    %62 = vector.extract_strided_slice %56 {offsets = [0, 128], sizes = [64, 128], strides = [1, 1]} : vector<64x256xf32> to vector<64x128xf32>
    %63 = arith.maximumf %61, %62 : vector<64x128xf32>
    %64 = vector.broadcast %60 : vector<1x128xf32> to vector<64x128xf32>
    %65 = arith.addf %63, %64 : vector<64x128xf32>
    %cst_33 = arith.constant 0.000000e+00 : f32
    %66 = vector.broadcast %cst_33 : f32 to vector<64x128xf32>
    %67 = arith.maximumf %65, %66 : vector<64x128xf32>
    %68 = vector.extract_strided_slice %59 {offsets = [0, 0], sizes = [64, 128], strides = [1, 1]} : vector<64x256xf32> to vector<64x128xf32>
    %69 = vector.extract_strided_slice %59 {offsets = [0, 128], sizes = [64, 128], strides = [1, 1]} : vector<64x256xf32> to vector<64x128xf32>
    %70 = arith.maximumf %68, %69 : vector<64x128xf32>
    %71 = vector.broadcast %60 : vector<1x128xf32> to vector<64x128xf32>
    %72 = arith.addf %70, %71 : vector<64x128xf32>
    %cst_34 = arith.constant 0.000000e+00 : f32
    %73 = vector.broadcast %cst_34 : f32 to vector<64x128xf32>
    %74 = arith.maximumf %72, %73 : vector<64x128xf32>
    %cst_35 = arith.constant 0.000000e+00 : f32
    %75 = vector.broadcast %cst_35 : f32 to vector<16x128xf32>
    %76 = tpu.concatenate %67, %75 in 0 : vector<64x128xf32>, vector<16x128xf32> -> vector<80x128xf32>
    %77 = arith.truncf %76 : vector<80x128xf32> to vector<80x128xbf16>
    %78 = tpu.concatenate %74, %75 in 0 : vector<64x128xf32>, vector<16x128xf32> -> vector<80x128xf32>
    %79 = arith.truncf %78 : vector<80x128xf32> to vector<80x128xbf16>
    %cst_36 = arith.constant 0.000000e+00 : f32
    %80 = vector.broadcast %cst_36 : f32 to vector<128x256xf32>
    %81 = vector.extract_strided_slice %77 {offsets = [0, 0], sizes = [64, 128], strides = [1, 1]} : vector<80x128xbf16> to vector<64x128xbf16>
    %82 = vector.extract_strided_slice %79 {offsets = [0, 0], sizes = [64, 128], strides = [1, 1]} : vector<80x128xbf16> to vector<64x128xbf16>
    %83 = tpu.concatenate %81, %82 in 0 : vector<64x128xbf16>, vector<64x128xbf16> -> vector<128x128xbf16>
    %c0_37 = arith.constant 0 : index
    %c0_38 = arith.constant 0 : index
    %c0_39 = arith.constant 0 : index
    %84 = vector.load %arg4[%c0_37, %c0_38, %c0_39] : memref<5x128x256xbf16, #tpu.memory_space<vmem>>, vector<1x128x256xbf16>
    %85 = vector.shape_cast %84 : vector<1x128x256xbf16> to vector<128x256xbf16>
    %cst_40 = arith.constant dense<0.000000e+00> : vector<128x256xf32>
    %86 = tpu.matmul %83, %85, %cst_40 {dimension_numbers = #tpu.dot_dimension_numbers<[1], [0], [0], [1], [0, 0, 1, 1], [], []>} : vector<128x128xbf16>, vector<128x256xbf16>, vector<128x256xf32> -> vector<128x256xf32>
    %87 = arith.addf %80, %86 : vector<128x256xf32>
    %88 = vector.extract_strided_slice %79 {offsets = [0, 0], sizes = [64, 128], strides = [1, 1]} : vector<80x128xbf16> to vector<64x128xbf16>
    %89 = vector.extract_strided_slice %77 {offsets = [8, 0], sizes = [64, 128], strides = [1, 1]} : vector<80x128xbf16> to vector<64x128xbf16>
    %90 = tpu.concatenate %88, %89 in 0 : vector<64x128xbf16>, vector<64x128xbf16> -> vector<128x128xbf16>
    %c1_41 = arith.constant 1 : index
    %c0_42 = arith.constant 0 : index
    %c0_43 = arith.constant 0 : index
    %91 = vector.load %arg4[%c1_41, %c0_42, %c0_43] : memref<5x128x256xbf16, #tpu.memory_space<vmem>>, vector<1x128x256xbf16>
    %92 = vector.shape_cast %91 : vector<1x128x256xbf16> to vector<128x256xbf16>
    %cst_44 = arith.constant dense<0.000000e+00> : vector<128x256xf32>
    %93 = tpu.matmul %90, %92, %cst_44 {dimension_numbers = #tpu.dot_dimension_numbers<[1], [0], [0], [1], [0, 0, 1, 1], [], []>} : vector<128x128xbf16>, vector<128x256xbf16>, vector<128x256xf32> -> vector<128x256xf32>
    %94 = arith.addf %87, %93 : vector<128x256xf32>
    %95 = vector.extract_strided_slice %77 {offsets = [8, 0], sizes = [64, 128], strides = [1, 1]} : vector<80x128xbf16> to vector<64x128xbf16>
    %96 = vector.extract_strided_slice %79 {offsets = [8, 0], sizes = [64, 128], strides = [1, 1]} : vector<80x128xbf16> to vector<64x128xbf16>
    %97 = tpu.concatenate %95, %96 in 0 : vector<64x128xbf16>, vector<64x128xbf16> -> vector<128x128xbf16>
    %c2_45 = arith.constant 2 : index
    %c0_46 = arith.constant 0 : index
    %c0_47 = arith.constant 0 : index
    %98 = vector.load %arg4[%c2_45, %c0_46, %c0_47] : memref<5x128x256xbf16, #tpu.memory_space<vmem>>, vector<1x128x256xbf16>
    %99 = vector.shape_cast %98 : vector<1x128x256xbf16> to vector<128x256xbf16>
    %cst_48 = arith.constant dense<0.000000e+00> : vector<128x256xf32>
    %100 = tpu.matmul %97, %99, %cst_48 {dimension_numbers = #tpu.dot_dimension_numbers<[1], [0], [0], [1], [0, 0, 1, 1], [], []>} : vector<128x128xbf16>, vector<128x256xbf16>, vector<128x256xf32> -> vector<128x256xf32>
    %101 = arith.addf %94, %100 : vector<128x256xf32>
    %102 = vector.extract_strided_slice %79 {offsets = [8, 0], sizes = [64, 128], strides = [1, 1]} : vector<80x128xbf16> to vector<64x128xbf16>
    %103 = vector.extract_strided_slice %77 {offsets = [16, 0], sizes = [64, 128], strides = [1, 1]} : vector<80x128xbf16> to vector<64x128xbf16>
    %104 = tpu.concatenate %102, %103 in 0 : vector<64x128xbf16>, vector<64x128xbf16> -> vector<128x128xbf16>
    %c3_49 = arith.constant 3 : index
    %c0_50 = arith.constant 0 : index
    %c0_51 = arith.constant 0 : index
    %105 = vector.load %arg4[%c3_49, %c0_50, %c0_51] : memref<5x128x256xbf16, #tpu.memory_space<vmem>>, vector<1x128x256xbf16>
    %106 = vector.shape_cast %105 : vector<1x128x256xbf16> to vector<128x256xbf16>
    %cst_52 = arith.constant dense<0.000000e+00> : vector<128x256xf32>
    %107 = tpu.matmul %104, %106, %cst_52 {dimension_numbers = #tpu.dot_dimension_numbers<[1], [0], [0], [1], [0, 0, 1, 1], [], []>} : vector<128x128xbf16>, vector<128x256xbf16>, vector<128x256xf32> -> vector<128x256xf32>
    %108 = arith.addf %101, %107 : vector<128x256xf32>
    %109 = vector.extract_strided_slice %77 {offsets = [16, 0], sizes = [64, 128], strides = [1, 1]} : vector<80x128xbf16> to vector<64x128xbf16>
    %110 = vector.extract_strided_slice %79 {offsets = [16, 0], sizes = [64, 128], strides = [1, 1]} : vector<80x128xbf16> to vector<64x128xbf16>
    %111 = tpu.concatenate %109, %110 in 0 : vector<64x128xbf16>, vector<64x128xbf16> -> vector<128x128xbf16>
    %c4_53 = arith.constant 4 : index
    %c0_54 = arith.constant 0 : index
    %c0_55 = arith.constant 0 : index
    %112 = vector.load %arg4[%c4_53, %c0_54, %c0_55] : memref<5x128x256xbf16, #tpu.memory_space<vmem>>, vector<1x128x256xbf16>
    %113 = vector.shape_cast %112 : vector<1x128x256xbf16> to vector<128x256xbf16>
    %cst_56 = arith.constant dense<0.000000e+00> : vector<128x256xf32>
    %114 = tpu.matmul %111, %113, %cst_56 {dimension_numbers = #tpu.dot_dimension_numbers<[1], [0], [0], [1], [0, 0, 1, 1], [], []>} : vector<128x128xbf16>, vector<128x256xbf16>, vector<128x256xf32> -> vector<128x256xf32>
    %115 = arith.addf %108, %114 : vector<128x256xf32>
    %116 = vector.extract_strided_slice %115 {offsets = [0, 0], sizes = [64, 256], strides = [1, 1]} : vector<128x256xf32> to vector<64x256xf32>
    %117 = vector.extract_strided_slice %115 {offsets = [64, 0], sizes = [64, 256], strides = [1, 1]} : vector<128x256xf32> to vector<64x256xf32>
    %118 = arith.maximumf %116, %117 : vector<64x256xf32>
    %119 = vector.extract_strided_slice %118 {offsets = [0, 0], sizes = [64, 128], strides = [1, 1]} : vector<64x256xf32> to vector<64x128xf32>
    %120 = vector.extract_strided_slice %118 {offsets = [0, 128], sizes = [64, 128], strides = [1, 1]} : vector<64x256xf32> to vector<64x128xf32>
    %121 = arith.maximumf %119, %120 : vector<64x128xf32>
    %c0_57 = arith.constant 0 : index
    %c0_58 = arith.constant 0 : index
    %122 = vector.load %arg5[%c0_57, %c0_58] : memref<1x128xf32, #tpu.memory_space<vmem>>, vector<1x128xf32>
    %123 = vector.broadcast %122 : vector<1x128xf32> to vector<64x128xf32>
    %124 = arith.addf %121, %123 : vector<64x128xf32>
    %cst_59 = arith.constant 0.000000e+00 : f32
    %125 = vector.broadcast %cst_59 : f32 to vector<64x128xf32>
    %126 = arith.maximumf %124, %125 : vector<64x128xf32>
    %127 = arith.truncf %126 : vector<64x128xf32> to vector<64x128xbf16>
    %cst_60 = arith.constant 0.000000e+00 : f32
    %128 = vector.broadcast %cst_60 : f32 to vector<8x128xf32>
    %129 = vector.extract_strided_slice %127 {offsets = [0, 0], sizes = [8, 128], strides = [1, 1]} : vector<64x128xbf16> to vector<8x128xbf16>
    %c0_61 = arith.constant 0 : index
    %c0_62 = arith.constant 0 : index
    %c0_63 = arith.constant 0 : index
    %130 = vector.load %arg6[%c0_61, %c0_62, %c0_63] : memref<5x128x128xbf16, #tpu.memory_space<vmem>>, vector<1x128x128xbf16>
    %131 = vector.shape_cast %130 : vector<1x128x128xbf16> to vector<128x128xbf16>
    %cst_64 = arith.constant dense<0.000000e+00> : vector<8x128xf32>
    %132 = tpu.matmul %129, %131, %cst_64 {dimension_numbers = #tpu.dot_dimension_numbers<[1], [0], [0], [1], [0, 0, 1, 1], [], []>} : vector<8x128xbf16>, vector<128x128xbf16>, vector<8x128xf32> -> vector<8x128xf32>
    %133 = arith.addf %128, %132 : vector<8x128xf32>
    %134 = vector.extract_strided_slice %127 {offsets = [8, 0], sizes = [8, 128], strides = [1, 1]} : vector<64x128xbf16> to vector<8x128xbf16>
    %c1_65 = arith.constant 1 : index
    %c0_66 = arith.constant 0 : index
    %c0_67 = arith.constant 0 : index
    %135 = vector.load %arg6[%c1_65, %c0_66, %c0_67] : memref<5x128x128xbf16, #tpu.memory_space<vmem>>, vector<1x128x128xbf16>
    %136 = vector.shape_cast %135 : vector<1x128x128xbf16> to vector<128x128xbf16>
    %cst_68 = arith.constant dense<0.000000e+00> : vector<8x128xf32>
    %137 = tpu.matmul %134, %136, %cst_68 {dimension_numbers = #tpu.dot_dimension_numbers<[1], [0], [0], [1], [0, 0, 1, 1], [], []>} : vector<8x128xbf16>, vector<128x128xbf16>, vector<8x128xf32> -> vector<8x128xf32>
    %138 = arith.addf %133, %137 : vector<8x128xf32>
    %139 = vector.extract_strided_slice %127 {offsets = [16, 0], sizes = [8, 128], strides = [1, 1]} : vector<64x128xbf16> to vector<8x128xbf16>
    %c2_69 = arith.constant 2 : index
    %c0_70 = arith.constant 0 : index
    %c0_71 = arith.constant 0 : index
    %140 = vector.load %arg6[%c2_69, %c0_70, %c0_71] : memref<5x128x128xbf16, #tpu.memory_space<vmem>>, vector<1x128x128xbf16>
    %141 = vector.shape_cast %140 : vector<1x128x128xbf16> to vector<128x128xbf16>
    %cst_72 = arith.constant dense<0.000000e+00> : vector<8x128xf32>
    %142 = tpu.matmul %139, %141, %cst_72 {dimension_numbers = #tpu.dot_dimension_numbers<[1], [0], [0], [1], [0, 0, 1, 1], [], []>} : vector<8x128xbf16>, vector<128x128xbf16>, vector<8x128xf32> -> vector<8x128xf32>
    %143 = arith.addf %138, %142 : vector<8x128xf32>
    %144 = vector.extract_strided_slice %127 {offsets = [24, 0], sizes = [8, 128], strides = [1, 1]} : vector<64x128xbf16> to vector<8x128xbf16>
    %c3_73 = arith.constant 3 : index
    %c0_74 = arith.constant 0 : index
    %c0_75 = arith.constant 0 : index
    %145 = vector.load %arg6[%c3_73, %c0_74, %c0_75] : memref<5x128x128xbf16, #tpu.memory_space<vmem>>, vector<1x128x128xbf16>
    %146 = vector.shape_cast %145 : vector<1x128x128xbf16> to vector<128x128xbf16>
    %cst_76 = arith.constant dense<0.000000e+00> : vector<8x128xf32>
    %147 = tpu.matmul %144, %146, %cst_76 {dimension_numbers = #tpu.dot_dimension_numbers<[1], [0], [0], [1], [0, 0, 1, 1], [], []>} : vector<8x128xbf16>, vector<128x128xbf16>, vector<8x128xf32> -> vector<8x128xf32>
    %148 = arith.addf %143, %147 : vector<8x128xf32>
    %149 = vector.extract_strided_slice %127 {offsets = [32, 0], sizes = [8, 128], strides = [1, 1]} : vector<64x128xbf16> to vector<8x128xbf16>
    %c4_77 = arith.constant 4 : index
    %c0_78 = arith.constant 0 : index
    %c0_79 = arith.constant 0 : index
    %150 = vector.load %arg6[%c4_77, %c0_78, %c0_79] : memref<5x128x128xbf16, #tpu.memory_space<vmem>>, vector<1x128x128xbf16>
    %151 = vector.shape_cast %150 : vector<1x128x128xbf16> to vector<128x128xbf16>
    %cst_80 = arith.constant dense<0.000000e+00> : vector<8x128xf32>
    %152 = tpu.matmul %149, %151, %cst_80 {dimension_numbers = #tpu.dot_dimension_numbers<[1], [0], [0], [1], [0, 0, 1, 1], [], []>} : vector<8x128xbf16>, vector<128x128xbf16>, vector<8x128xf32> -> vector<8x128xf32>
    %153 = arith.addf %148, %152 : vector<8x128xf32>
    %c0_81 = arith.constant 0 : index
    %c0_82 = arith.constant 0 : index
    %154 = vector.load %arg7[%c0_81, %c0_82] : memref<1x128xf32, #tpu.memory_space<vmem>>, vector<1x128xf32>
    %155 = vector.broadcast %154 : vector<1x128xf32> to vector<8x128xf32>
    %156 = arith.addf %153, %155 : vector<8x128xf32>
    %cst_83 = arith.constant 0.000000e+00 : f32
    %157 = vector.broadcast %cst_83 : f32 to vector<8x128xf32>
    %158 = arith.maximumf %156, %157 : vector<8x128xf32>
    %159 = arith.truncf %158 : vector<8x128xf32> to vector<8x128xbf16>
    %c0_84 = arith.constant 0 : index
    %c0_85 = arith.constant 0 : index
    %160 = vector.load %arg8[%c0_84, %c0_85] : memref<128x128xbf16, #tpu.memory_space<vmem>>, vector<128x128xbf16>
    %cst_86 = arith.constant dense<0.000000e+00> : vector<8x128xf32>
    %161 = tpu.matmul %159, %160, %cst_86 {dimension_numbers = #tpu.dot_dimension_numbers<[1], [0], [0], [1], [0, 0, 1, 1], [], []>} : vector<8x128xbf16>, vector<128x128xbf16>, vector<8x128xf32> -> vector<8x128xf32>
    %c0_87 = arith.constant 0 : index
    %c0_88 = arith.constant 0 : index
    %162 = vector.load %arg9[%c0_87, %c0_88] : memref<1x128xf32, #tpu.memory_space<vmem>>, vector<1x128xf32>
    %163 = vector.broadcast %162 : vector<1x128xf32> to vector<8x128xf32>
    %164 = arith.addf %161, %163 : vector<8x128xf32>
    %cst_89 = arith.constant 0.000000e+00 : f32
    %165 = vector.broadcast %cst_89 : f32 to vector<8x128xf32>
    %166 = arith.maximumf %164, %165 : vector<8x128xf32>
    %167 = arith.truncf %166 : vector<8x128xf32> to vector<8x128xbf16>
    %c0_90 = arith.constant 0 : index
    %c0_91 = arith.constant 0 : index
    %168 = vector.load %arg10[%c0_90, %c0_91] : memref<128x128xbf16, #tpu.memory_space<vmem>>, vector<128x128xbf16>
    %cst_92 = arith.constant dense<0.000000e+00> : vector<8x128xf32>
    %169 = tpu.matmul %167, %168, %cst_92 {dimension_numbers = #tpu.dot_dimension_numbers<[1], [0], [0], [1], [0, 0, 1, 1], [], []>} : vector<8x128xbf16>, vector<128x128xbf16>, vector<8x128xf32> -> vector<8x128xf32>
    %c0_93 = arith.constant 0 : index
    %c0_94 = arith.constant 0 : index
    %170 = vector.load %arg11[%c0_93, %c0_94] : memref<1x128xf32, #tpu.memory_space<vmem>>, vector<1x128xf32>
    %171 = vector.broadcast %170 : vector<1x128xf32> to vector<8x128xf32>
    %172 = arith.addf %169, %171 : vector<8x128xf32>
    %c0_95 = arith.constant 0 : index
    %c0_96 = arith.constant 0 : index
    %173 = vector.load %arg12[%c0_95, %c0_96] : memref<8x128xf32, #tpu.memory_space<vmem>>, vector<8x128xf32>
    tpu.vector_store %arg12[%c0_95, %c0_96], %172 {strides = array<i32>} : memref<8x128xf32, #tpu.memory_space<vmem>>, vector<8x128xf32>,
    return
  }
  func.func @transform_0(%arg0: i32) -> (i32, i32, i32, i32) {
    %c0_i32 = arith.constant 0 : i32
    %c0_i32_0 = arith.constant 0 : i32
    %c0_i32_1 = arith.constant 0 : i32
    %c0_i32_2 = arith.constant 0 : i32
    return %arg0, %c0_i32, %c0_i32_0, %c0_i32_1 : i32, i32, i32, i32
  }
  func.func @transform_1(%arg0: i32) -> (i32, i32, i32) {
    %c0_i32 = arith.constant 0 : i32
    %c0_i32_0 = arith.constant 0 : i32
    %c0_i32_1 = arith.constant 0 : i32
    %c0_i32_2 = arith.constant 0 : i32
    return %c0_i32, %c0_i32_0, %c0_i32_1 : i32, i32, i32
  }
  func.func @transform_2(%arg0: i32) -> (i32, i32) {
    %c0_i32 = arith.constant 0 : i32
    %c0_i32_0 = arith.constant 0 : i32
    %c0_i32_1 = arith.constant 0 : i32
    return %c0_i32, %c0_i32_0 : i32, i32
  }
  func.func @transform_3(%arg0: i32) -> (i32, i32, i32) {
    %c0_i32 = arith.constant 0 : i32
    %c0_i32_0 = arith.constant 0 : i32
    %c0_i32_1 = arith.constant 0 : i32
    %c0_i32_2 = arith.constant 0 : i32
    return %c0_i32, %c0_i32_0, %c0_i32_1 : i32, i32, i32
  }
  func.func @transform_4(%arg0: i32) -> (i32, i32) {
    %c0_i32 = arith.constant 0 : i32
    %c0_i32_0 = arith.constant 0 : i32
    %c0_i32_1 = arith.constant 0 : i32
    return %c0_i32, %c0_i32_0 : i32, i32
  }
  func.func @transform_5(%arg0: i32) -> (i32, i32, i32) {
    %c0_i32 = arith.constant 0 : i32
    %c0_i32_0 = arith.constant 0 : i32
    %c0_i32_1 = arith.constant 0 : i32
    %c0_i32_2 = arith.constant 0 : i32
    return %c0_i32, %c0_i32_0, %c0_i32_1 : i32, i32, i32
  }
  func.func @transform_6(%arg0: i32) -> (i32, i32) {
    %c0_i32 = arith.constant 0 : i32
    %c0_i32_0 = arith.constant 0 : i32
    %c0_i32_1 = arith.constant 0 : i32
    return %c0_i32, %c0_i32_0 : i32, i32
  }
  func.func @transform_7(%arg0: i32) -> (i32, i32) {
    %c0_i32 = arith.constant 0 : i32
    %c0_i32_0 = arith.constant 0 : i32
    %c0_i32_1 = arith.constant 0 : i32
    return %c0_i32, %c0_i32_0 : i32, i32
  }
  func.func @transform_8(%arg0: i32) -> (i32, i32) {
    %c0_i32 = arith.constant 0 : i32
    %c0_i32_0 = arith.constant 0 : i32
    %c0_i32_1 = arith.constant 0 : i32
    return %c0_i32, %c0_i32_0 : i32, i32
  }
  func.func @transform_9(%arg0: i32) -> (i32, i32) {
    %c0_i32 = arith.constant 0 : i32
    %c0_i32_0 = arith.constant 0 : i32
    %c0_i32_1 = arith.constant 0 : i32
    return %c0_i32, %c0_i32_0 : i32, i32
  }
  func.func @transform_10(%arg0: i32) -> (i32, i32) {
    %c0_i32 = arith.constant 0 : i32
    %c0_i32_0 = arith.constant 0 : i32
    %c0_i32_1 = arith.constant 0 : i32
    return %c0_i32, %c0_i32_0 : i32, i32
  }
  func.func @transform_11(%arg0: i32) -> (i32, i32) {
    %c0_i32 = arith.constant 0 : i32
    %c0_i32_0 = arith.constant 0 : i32
    return %arg0, %c0_i32 : i32, i32
  }
}

</mosaic_0001>

<llo_original>
// kernel: simple_cnn_forward.1
$region0: #{simple_cnn_forward.1}
  #allocation0 [shape = 'u32[]', space=smem, size = 0x4, offset = 0x4, fixed_abs, tag = 'smem constant byte address 0x4 - core index']
  #allocation1 [shape = 'u32[144,128]{1,0:T(1,128)}', space=vmem, size = 0x12000, scoped, tag = 'internal scratch']
  %s0 = inlined_call_operand.vmem [shape: bf16[2,4,72,128], index: 0, kind: input, shape index: {}]
  %s1 = inlined_call_operand.vmem [shape: bf16[5,128,256], index: 1, kind: input, shape index: {}]
  %s2 = inlined_call_operand.vmem [shape: f32[1,128], index: 2, kind: input, shape index: {}]
  %s3 = inlined_call_operand.vmem [shape: bf16[5,128,256], index: 3, kind: input, shape index: {}]
  %s4 = inlined_call_operand.vmem [shape: f32[1,128], index: 4, kind: input, shape index: {}]
  %s5 = inlined_call_operand.vmem [shape: bf16[5,128,128], index: 5, kind: input, shape index: {}]
  %s6 = inlined_call_operand.vmem [shape: f32[1,128], index: 6, kind: input, shape index: {}]
  %s7 = inlined_call_operand.vmem [shape: bf16[128,128], index: 7, kind: input, shape index: {}]
  %s8 = inlined_call_operand.vmem [shape: f32[1,128], index: 8, kind: input, shape index: {}]
  %s9 = inlined_call_operand.vmem [shape: bf16[128,128], index: 9, kind: input, shape index: {}]
  %s10 = inlined_call_operand.vmem [shape: f32[1,128], index: 10, kind: input, shape index: {}]
  %s11 = inlined_call_operand.hbm [shape: f32[16,128], index: 11, kind: output, shape index: {}]
  %s12 = sld [smem:[#allocation0]]
  $region77: #{simple_cnn_forward.1} parent=0
    _
  %s14 = ssub.s32 1, %s12
  %s15 = scalar_select 0, %s14, %s12
  $region1: #{simple_cnn_forward.1} parent=0
    #allocation2 [shape = 'u8[8192]{0}', space=vmem, size = 0x2000, scoped, tag = 'output window, operand 0']
    #allocation3 [shape = 's32[2]{0}', space=sflag, size = 0x8, scoped, tag = 'scoped memory for simple_cnn_forward.1']
    %16 = vsyncpa [#allocation3], 0
    %s17 = scalar_lea.sflag [#allocation3], 1
    %18 = vsyncpa %s17, 0
    loop: start=0, step=1, limit=4
    $region2: #{simple_cnn_forward.1} parent=1 // loop_pre_header
      _
    $region3: #{simple_cnn_forward.1} parent=1 // loop_header
      %s20 = sphi 0, %s24
      %p21 = scmp.ge.s32.totalorder %s20, 4
      %s30 = sphi 0, %s32
      %s33 = sphi 0, %s30
      %s34 = sphi 0, %s33
      %s50 = sphi 0, %s34
      %s54 = sphi 0, %s54
      %s56 = sphi 0, %s54
      %s57 = sphi 0, %s56
      %s71 = sphi 0, %s57
      %s75 = sphi 0, %s75
      %s77 = sphi 0, %s75
      %s78 = sphi 0, %s77
      %s92 = sphi 0, %s78
      %s96 = sphi 0, %s96
      %s98 = sphi 0, %s96
      %s99 = sphi 0, %s98
      %s113 = sphi 0, %s99
      %s117 = sphi 0, %s117
      %s119 = sphi 0, %s117
      %s120 = sphi 0, %s119
      %s134 = sphi 0, %s120
      %s138 = sphi 0, %s138
      %s140 = sphi 0, %s138
      %s141 = sphi 0, %s140
      %s155 = sphi 0, %s141
      %s159 = sphi 0, %s159
      %s161 = sphi 0, %s159
      %s162 = sphi 0, %s161
      %s176 = sphi 0, %s162
      %s180 = sphi 0, %s180
      %s182 = sphi 0, %s180
      %s183 = sphi 0, %s182
      %s197 = sphi 0, %s183
      %s201 = sphi 0, %s201
      %s203 = sphi 0, %s201
      %s204 = sphi 0, %s203
      %s218 = sphi 0, %s204
      %s222 = sphi 0, %s222
      %s224 = sphi 0, %s222
      %s225 = sphi 0, %s224
      %s239 = sphi 0, %s225
      %s243 = sphi 0, %s243
      %s245 = sphi 0, %s243
      %s246 = sphi 0, %s245
      %s260 = sphi 0, %s246
      %s266 = sphi 0, %s268
      %s269 = sphi 0, %s266
      %s270 = sphi 0, %s269
      %s286 = sphi 0, %s270
    $region4: #{simple_cnn_forward.1} parent=1 // loop_header_branch
      %23 = sbr.rel (%p21) target = $region8
    $region5: #{simple_cnn_forward.1} parent=1 // loop_body
      %s25 = ssub.s32 %s20, 1
      %s26 = ssub.s32 %s20, 2
      %s27 = sadd.s32 %s20, 1
      %s28 = ssub.s32 %s20, %s27
      %p29 = scmp.eq.s32.totalorder %s28, 0
      %s31 = sadd.s32 %s30, 1
      %s32 = scalar_select %p29, %s30, %s31
      %p35 = pneg %p29
      %p36 = scmp.eq.s32.totalorder %s20, 1
      %p37 = por %p35, %p36
      %p38 = scmp.ne.s32.totalorder %s30, %s33
      %p39 = scmp.eq.s32.totalorder %s20, 0
      %p40 = por %p38, %p39
      %p41 = scmp.ne.s32.totalorder %s30, %s33
      %p42 = scmp.eq.s32.totalorder %s25, 1
      %p43 = por %p41, %p42
      %p44 = scmp.ne.s32.totalorder %s33, %s34
      %p45 = scmp.eq.s32.totalorder %s25, 0
      %p46 = por %p44, %p45
      %p47 = scmp.ne.s32.totalorder %s33, %s34
      %p48 = scmp.eq.s32.totalorder %s26, 1
      %p49 = por %p47, %p48
      %p51 = scmp.ne.s32.totalorder %s34, %s50
      %p52 = scmp.eq.s32.totalorder %s26, 0
      %p53 = por %p51, %p52
      %s55 = sadd.s32 %s54, 1
      %p58 = scmp.eq.s32.totalorder %s20, 1
      %p59 = scmp.ne.s32.totalorder %s54, %s56
      %p60 = scmp.eq.s32.totalorder %s20, 0
      %p61 = por %p59, %p60
      %p62 = scmp.ne.s32.totalorder %s54, %s56
      %p63 = scmp.eq.s32.totalorder %s25, 1
      %p64 = por %p62, %p63
      %p65 = scmp.ne.s32.totalorder %s56, %s57
      %p66 = scmp.eq.s32.totalorder %s25, 0
      %p67 = por %p65, %p66
      %p68 = scmp.ne.s32.totalorder %s56, %s57
      %p69 = scmp.eq.s32.totalorder %s26, 1
      %p70 = por %p68, %p69
      %p72 = scmp.ne.s32.totalorder %s57, %s71
      %p73 = scmp.eq.s32.totalorder %s26, 0
      %p74 = por %p72, %p73
      %s76 = sadd.s32 %s75, 1
      %p79 = scmp.eq.s32.totalorder %s20, 1
      %p80 = scmp.ne.s32.totalorder %s75, %s77
      %p81 = scmp.eq.s32.totalorder %s20, 0
      %p82 = por %p80, %p81
      %p83 = scmp.ne.s32.totalorder %s75, %s77
      %p84 = scmp.eq.s32.totalorder %s25, 1
      %p85 = por %p83, %p84
      %p86 = scmp.ne.s32.totalorder %s77, %s78
      %p87 = scmp.eq.s32.totalorder %s25, 0
      %p88 = por %p86, %p87
      %p89 = scmp.ne.s32.totalorder %s77, %s78
      %p90 = scmp.eq.s32.totalorder %s26, 1
      %p91 = por %p89, %p90
      %p93 = scmp.ne.s32.totalorder %s78, %s92
      %p94 = scmp.eq.s32.totalorder %s26, 0
      %p95 = por %p93, %p94
      %s97 = sadd.s32 %s96, 1
      %p100 = scmp.eq.s32.totalorder %s20, 1
      %p101 = scmp.ne.s32.totalorder %s96, %s98
      %p102 = scmp.eq.s32.totalorder %s20, 0
      %p103 = por %p101, %p102
      %p104 = scmp.ne.s32.totalorder %s96, %s98
      %p105 = scmp.eq.s32.totalorder %s25, 1
      %p106 = por %p104, %p105
      %p107 = scmp.ne.s32.totalorder %s98, %s99
      %p108 = scmp.eq.s32.totalorder %s25, 0
      %p109 = por %p107, %p108
      %p110 = scmp.ne.s32.totalorder %s98, %s99
      %p111 = scmp.eq.s32.totalorder %s26, 1
      %p112 = por %p110, %p111
      %p114 = scmp.ne.s32.totalorder %s99, %s113
      %p115 = scmp.eq.s32.totalorder %s26, 0
      %p116 = por %p114, %p115
      %s118 = sadd.s32 %s117, 1
      %p121 = scmp.eq.s32.totalorder %s20, 1
      %p122 = scmp.ne.s32.totalorder %s117, %s119
      %p123 = scmp.eq.s32.totalorder %s20, 0
      %p124 = por %p122, %p123
      %p125 = scmp.ne.s32.totalorder %s117, %s119
      %p126 = scmp.eq.s32.totalorder %s25, 1
      %p127 = por %p125, %p126
      %p128 = scmp.ne.s32.totalorder %s119, %s120
      %p129 = scmp.eq.s32.totalorder %s25, 0
      %p130 = por %p128, %p129
      %p131 = scmp.ne.s32.totalorder %s119, %s120
      %p132 = scmp.eq.s32.totalorder %s26, 1
      %p133 = por %p131, %p132
      %p135 = scmp.ne.s32.totalorder %s120, %s134
      %p136 = scmp.eq.s32.totalorder %s26, 0
      %p137 = por %p135, %p136
      %s139 = sadd.s32 %s138, 1
      %p142 = scmp.eq.s32.totalorder %s20, 1
      %p143 = scmp.ne.s32.totalorder %s138, %s140
      %p144 = scmp.eq.s32.totalorder %s20, 0
      %p145 = por %p143, %p144
      %p146 = scmp.ne.s32.totalorder %s138, %s140
      %p147 = scmp.eq.s32.totalorder %s25, 1
      %p148 = por %p146, %p147
      %p149 = scmp.ne.s32.totalorder %s140, %s141
      %p150 = scmp.eq.s32.totalorder %s25, 0
      %p151 = por %p149, %p150
      %p152 = scmp.ne.s32.totalorder %s140, %s141
      %p153 = scmp.eq.s32.totalorder %s26, 1
      %p154 = por %p152, %p153
      %p156 = scmp.ne.s32.totalorder %s141, %s155
      %p157 = scmp.eq.s32.totalorder %s26, 0
      %p158 = por %p156, %p157
      %s160 = sadd.s32 %s159, 1
      %p163 = scmp.eq.s32.totalorder %s20, 1
      %p164 = scmp.ne.s32.totalorder %s159, %s161
      %p165 = scmp.eq.s32.totalorder %s20, 0
      %p166 = por %p164, %p165
      %p167 = scmp.ne.s32.totalorder %s159, %s161
      %p168 = scmp.eq.s32.totalorder %s25, 1
      %p169 = por %p167, %p168
      %p170 = scmp.ne.s32.totalorder %s161, %s162
      %p171 = scmp.eq.s32.totalorder %s25, 0
      %p172 = por %p170, %p171
      %p173 = scmp.ne.s32.totalorder %s161, %s162
      %p174 = scmp.eq.s32.totalorder %s26, 1
      %p175 = por %p173, %p174
      %p177 = scmp.ne.s32.totalorder %s162, %s176
      %p178 = scmp.eq.s32.totalorder %s26, 0
      %p179 = por %p177, %p178
      %s181 = sadd.s32 %s180, 1
      %p184 = scmp.eq.s32.totalorder %s20, 1
      %p185 = scmp.ne.s32.totalorder %s180, %s182
      %p186 = scmp.eq.s32.totalorder %s20, 0
      %p187 = por %p185, %p186
      %p188 = scmp.ne.s32.totalorder %s180, %s182
      %p189 = scmp.eq.s32.totalorder %s25, 1
      %p190 = por %p188, %p189
      %p191 = scmp.ne.s32.totalorder %s182, %s183
      %p192 = scmp.eq.s32.totalorder %s25, 0
      %p193 = por %p191, %p192
      %p194 = scmp.ne.s32.totalorder %s182, %s183
      %p195 = scmp.eq.s32.totalorder %s26, 1
      %p196 = por %p194, %p195
      %p198 = scmp.ne.s32.totalorder %s183, %s197
      %p199 = scmp.eq.s32.totalorder %s26, 0
      %p200 = por %p198, %p199
      %s202 = sadd.s32 %s201, 1
      %p205 = scmp.eq.s32.totalorder %s20, 1
      %p206 = scmp.ne.s32.totalorder %s201, %s203
      %p207 = scmp.eq.s32.totalorder %s20, 0
      %p208 = por %p206, %p207
      %p209 = scmp.ne.s32.totalorder %s201, %s203
      %p210 = scmp.eq.s32.totalorder %s25, 1
      %p211 = por %p209, %p210
      %p212 = scmp.ne.s32.totalorder %s203, %s204
      %p213 = scmp.eq.s32.totalorder %s25, 0
      %p214 = por %p212, %p213
      %p215 = scmp.ne.s32.totalorder %s203, %s204
      %p216 = scmp.eq.s32.totalorder %s26, 1
      %p217 = por %p215, %p216
      %p219 = scmp.ne.s32.totalorder %s204, %s218
      %p220 = scmp.eq.s32.totalorder %s26, 0
      %p221 = por %p219, %p220
      %s223 = sadd.s32 %s222, 1
      %p226 = scmp.eq.s32.totalorder %s20, 1
      %p227 = scmp.ne.s32.totalorder %s222, %s224
      %p228 = scmp.eq.s32.totalorder %s20, 0
      %p229 = por %p227, %p228
      %p230 = scmp.ne.s32.totalorder %s222, %s224
      %p231 = scmp.eq.s32.totalorder %s25, 1
      %p232 = por %p230, %p231
      %p233 = scmp.ne.s32.totalorder %s224, %s225
      %p234 = scmp.eq.s32.totalorder %s25, 0
      %p235 = por %p233, %p234
      %p236 = scmp.ne.s32.totalorder %s224, %s225
      %p237 = scmp.eq.s32.totalorder %s26, 1
      %p238 = por %p236, %p237
      %p240 = scmp.ne.s32.totalorder %s225, %s239
      %p241 = scmp.eq.s32.totalorder %s26, 0
      %p242 = por %p240, %p241
      %s244 = sadd.s32 %s243, 1
      %p247 = scmp.eq.s32.totalorder %s20, 1
      %p248 = scmp.ne.s32.totalorder %s243, %s245
      %p249 = scmp.eq.s32.totalorder %s20, 0
      %p250 = por %p248, %p249
      %p251 = scmp.ne.s32.totalorder %s243, %s245
      %p252 = scmp.eq.s32.totalorder %s25, 1
      %p253 = por %p251, %p252
      %p254 = scmp.ne.s32.totalorder %s245, %s246
      %p255 = scmp.eq.s32.totalorder %s25, 0
      %p256 = por %p254, %p255
      %p257 = scmp.ne.s32.totalorder %s245, %s246
      %p258 = scmp.eq.s32.totalorder %s26, 1
      %p259 = por %p257, %p258
      %p261 = scmp.ne.s32.totalorder %s246, %s260
      %p262 = scmp.eq.s32.totalorder %s26, 0
      %p263 = por %p261, %p262
      %s264 = ssub.s32 %s20, %s27
      %p265 = scmp.eq.s32.totalorder %s264, 0
      %s267 = sadd.s32 %s266, 1
      %s268 = scalar_select %p265, %s266, %s267
      %p271 = pneg %p265
      %p272 = scmp.eq.s32.totalorder %s20, 1
      %p273 = por %p271, %p272
      %p274 = scmp.ne.s32.totalorder %s266, %s269
      %p275 = scmp.eq.s32.totalorder %s20, 0
      %p276 = por %p274, %p275
      %p277 = scmp.ne.s32.totalorder %s266, %s269
      %p278 = scmp.eq.s32.totalorder %s25, 1
      %p279 = por %p277, %p278
      %p280 = scmp.ne.s32.totalorder %s269, %s270
      %p281 = scmp.eq.s32.totalorder %s25, 0
      %p282 = por %p280, %p281
      %p283 = scmp.ne.s32.totalorder %s269, %s270
      %p284 = scmp.eq.s32.totalorder %s26, 1
      %p285 = por %p283, %p284
      %p287 = scmp.ne.s32.totalorder %s270, %s286
      %p288 = scmp.eq.s32.totalorder %s26, 0
      %p289 = por %p287, %p288
      %p290 = scmp.le.s32.totalorder 1, %s20
      %p291 = scmp.lt.s32.totalorder %s20, 3
      %p292 = pnand %p290, %p291
      %p293 = pneg %p292
      // Predicated region
      $region9: #{simple_cnn_forward.1} parent=5 // pred_check
        _
      $region10: #{simple_cnn_forward.1} parent=5 // pred_check_branch
        %295 = sbr.rel (%p292) target = $region12
      $region11: #{simple_cnn_forward.1} parent=5 // pred_region
        %s296 = ssub.s32 %s20, 1
        // Predicated region
        $region13: #{simple_cnn_forward.1} parent=11 // pred_check
          %p297 = pneg %p67
        $region14: #{simple_cnn_forward.1} parent=11 // pred_check_branch
          %299 = sbr.rel (%p297) target = $region16
        $region15: #{simple_cnn_forward.1} parent=11 // pred_region
          _
        $region16: #{simple_cnn_forward.1} parent=11 // pred_fallthru
          _
        // Predicated region
        $region17: #{simple_cnn_forward.1} parent=11 // pred_check
          %p300 = pneg %p88
        $region18: #{simple_cnn_forward.1} parent=11 // pred_check_branch
          %302 = sbr.rel (%p300) target = $region20
        $region19: #{simple_cnn_forward.1} parent=11 // pred_region
          _
        $region20: #{simple_cnn_forward.1} parent=11 // pred_fallthru
          _
        // Predicated region
        $region21: #{simple_cnn_forward.1} parent=11 // pred_check
          %p303 = pneg %p109
        $region22: #{simple_cnn_forward.1} parent=11 // pred_check_branch
          %305 = sbr.rel (%p303) target = $region24
        $region23: #{simple_cnn_forward.1} parent=11 // pred_region
          _
        $region24: #{simple_cnn_forward.1} parent=11 // pred_fallthru
          _
        // Predicated region
        $region25: #{simple_cnn_forward.1} parent=11 // pred_check
          %p306 = pneg %p130
        $region26: #{simple_cnn_forward.1} parent=11 // pred_check_branch
          %308 = sbr.rel (%p306) target = $region28
        $region27: #{simple_cnn_forward.1} parent=11 // pred_region
          _
        $region28: #{simple_cnn_forward.1} parent=11 // pred_fallthru
          _
        // Predicated region
        $region29: #{simple_cnn_forward.1} parent=11 // pred_check
          %p309 = pneg %p151
        $region30: #{simple_cnn_forward.1} parent=11 // pred_check_branch
          %311 = sbr.rel (%p309) target = $region32
        $region31: #{simple_cnn_forward.1} parent=11 // pred_region
          _
        $region32: #{simple_cnn_forward.1} parent=11 // pred_fallthru
          _
        // Predicated region
        $region33: #{simple_cnn_forward.1} parent=11 // pred_check
          %p312 = pneg %p172
        $region34: #{simple_cnn_forward.1} parent=11 // pred_check_branch
          %314 = sbr.rel (%p312) target = $region36
        $region35: #{simple_cnn_forward.1} parent=11 // pred_region
          _
        $region36: #{simple_cnn_forward.1} parent=11 // pred_fallthru
          _
        // Predicated region
        $region37: #{simple_cnn_forward.1} parent=11 // pred_check
          %p315 = pneg %p193
        $region38: #{simple_cnn_forward.1} parent=11 // pred_check_branch
          %317 = sbr.rel (%p315) target = $region40
        $region39: #{simple_cnn_forward.1} parent=11 // pred_region
          _
        $region40: #{simple_cnn_forward.1} parent=11 // pred_fallthru
          _
        // Predicated region
        $region41: #{simple_cnn_forward.1} parent=11 // pred_check
          %p318 = pneg %p214
        $region42: #{simple_cnn_forward.1} parent=11 // pred_check_branch
          %320 = sbr.rel (%p318) target = $region44
        $region43: #{simple_cnn_forward.1} parent=11 // pred_region
          _
        $region44: #{simple_cnn_forward.1} parent=11 // pred_fallthru
          _
        // Predicated region
        $region45: #{simple_cnn_forward.1} parent=11 // pred_check
          %p321 = pneg %p235
        $region46: #{simple_cnn_forward.1} parent=11 // pred_check_branch
          %323 = sbr.rel (%p321) target = $region48
        $region47: #{simple_cnn_forward.1} parent=11 // pred_region
          _
        $region48: #{simple_cnn_forward.1} parent=11 // pred_fallthru
          _
        // Predicated region
        $region49: #{simple_cnn_forward.1} parent=11 // pred_check
          %p324 = pneg %p256
        $region50: #{simple_cnn_forward.1} parent=11 // pred_check_branch
          %326 = sbr.rel (%p324) target = $region52
        $region51: #{simple_cnn_forward.1} parent=11 // pred_region
          _
        $region52: #{simple_cnn_forward.1} parent=11 // pred_fallthru
          _
      $region12: #{simple_cnn_forward.1} parent=5 // pred_fallthru
        _
      %p327 = scmp.lt.s32.totalorder %s20, 2
      // Predicated region
      $region53: #{simple_cnn_forward.1} parent=5 // pred_check
        %p328 = pneg %p327
      $region54: #{simple_cnn_forward.1} parent=5 // pred_check_branch
        %330 = sbr.rel (%p328) target = $region56
      $region55: #{simple_cnn_forward.1} parent=5 // pred_region
        // Predicated region
        $region57: #{simple_cnn_forward.1} parent=55 // pred_check
          %p331 = pneg %p40
        $region58: #{simple_cnn_forward.1} parent=55 // pred_check_branch
          %333 = sbr.rel (%p331) target = $region60
        $region59: #{simple_cnn_forward.1} parent=55 // pred_region
          %p334 = scmp.lt.s32.totalorder %s20, 1
          %s335 = scalar_select %p334, %s20, 1
          %s336 = smul.addr %s335, 36
          %s337 = smul.addr %s336, 4
          %s338 = scalar_lea.vmem %s0, %s337
        $region60: #{simple_cnn_forward.1} parent=55 // pred_fallthru
          _
      $region56: #{simple_cnn_forward.1} parent=5 // pred_fallthru
        _
      %p339 = scmp.le.s32.totalorder 1, %s20
      %p340 = scmp.lt.s32.totalorder %s20, 3
      %p341 = pnand %p339, %p340
      %p342 = pneg %p341
      // Predicated region
      $region61: #{simple_cnn_forward.1} parent=5 // pred_check
        _
      $region62: #{simple_cnn_forward.1} parent=5 // pred_check_branch
        %344 = sbr.rel (%p341) target = $region64
      $region63: #{simple_cnn_forward.1} parent=5 // pred_region
        %s345 = ssub.s32 %s20, 1
        %p346 = scmp.lt.s32.totalorder %s25, 1
        %s347 = scalar_select %p346, %s25, 1
        %s348 = smul.addr %s347, 36
        %s349 = smul.addr %s348, 4
        %s350 = scalar_lea.vmem %s0, %s349
        %p351 = pneg %p46
        %p352 = pneg %p43
        %p353 = pneg %p67
        %p354 = pneg %p64
        %p355 = pneg %p88
        %p356 = pneg %p85
        %p357 = pneg %p109
        %p358 = pneg %p106
        %p359 = pneg %p130
        %p360 = pneg %p127
        %p361 = pneg %p151
        %p362 = pneg %p148
        %p363 = pneg %p172
        %p364 = pneg %p169
        %p365 = pneg %p193
        %p366 = pneg %p190
        %p367 = pneg %p214
        %p368 = pneg %p211
        %p369 = pneg %p235
        %p370 = pneg %p232
        %p371 = pneg %p256
        %p372 = pneg %p253
        %p373 = pneg %p282
        %p374 = pneg %p279
        %s375 = sand.u32 %s269, 1
        %s376 = scalar_lea.sflag [#allocation3], %s375
        %s377 = sand.u32 %s269, 1
        %s378 = smul.addr %s377, 8
        %s379 = scalar_lea.vmem [#allocation2], %s378
        %p380 = scmp.lt.s32.totalorder %s25, 1
        %s381 = scalar_select %p380, %s25, 1
        %s382 = smul.addr %s381, 36
        %s383 = smul.addr %s382, 4
        %s384 = scalar_lea.vmem %s0, %s383
        %v386 = vld [vmem:[%s384] sm:$0xf]
        %v387 = vld [vmem:[%s384 + $0x4] sm:$0xf]
        %v388 = vld [vmem:[%s384 + $0x8] sm:$0xf]
        %v389 = vld [vmem:[%s384 + $0xc] sm:$0xf]
        %v390 = vld [vmem:[%s384 + $0x10] sm:$0xf]
        %v391 = vld [vmem:[%s384 + $0x14] sm:$0xf]
        %v392 = vld [vmem:[%s384 + $0x18] sm:$0xf]
        %v393 = vld [vmem:[%s384 + $0x1c] sm:$0xf]
        %v394 = vld [vmem:[%s384 + $0x20] sm:$0xf]
        %s395 = scalar_lea.vmem %s384, 36
        %v396 = vld [vmem:[%s395] sm:$0xf]
        %v397 = vld [vmem:[%s395 + $0x4] sm:$0xf]
        %v398 = vld [vmem:[%s395 + $0x8] sm:$0xf]
        %v399 = vld [vmem:[%s395 + $0xc] sm:$0xf]
        %v400 = vld [vmem:[%s395 + $0x10] sm:$0xf]
        %v401 = vld [vmem:[%s395 + $0x14] sm:$0xf]
        %v402 = vld [vmem:[%s395 + $0x18] sm:$0xf]
        %v403 = vld [vmem:[%s395 + $0x1c] sm:$0xf]
        %v404 = vld [vmem:[%s395 + $0x20] sm:$0xf]
        %s405 = scalar_lea.vmem %s384, 72
        %v406 = vld [vmem:[%s405] sm:$0xf]
        %v407 = vld [vmem:[%s405 + $0x4] sm:$0xf]
        %v408 = vld [vmem:[%s405 + $0x8] sm:$0xf]
        %v409 = vld [vmem:[%s405 + $0xc] sm:$0xf]
        %v410 = vld [vmem:[%s405 + $0x10] sm:$0xf]
        %v411 = vld [vmem:[%s405 + $0x14] sm:$0xf]
        %v412 = vld [vmem:[%s405 + $0x18] sm:$0xf]
        %v413 = vld [vmem:[%s405 + $0x1c] sm:$0xf]
        %v414 = vld [vmem:[%s405 + $0x20] sm:$0xf]
        %s415 = scalar_lea.vmem %s384, 108
        %v416 = vld [vmem:[%s415] sm:$0xf]
        %v417 = vld [vmem:[%s415 + $0x4] sm:$0xf]
        %v418 = vld [vmem:[%s415 + $0x8] sm:$0xf]
        %v419 = vld [vmem:[%s415 + $0xc] sm:$0xf]
        %v420 = vld [vmem:[%s415 + $0x10] sm:$0xf]
        %v421 = vld [vmem:[%s415 + $0x14] sm:$0xf]
        %v422 = vld [vmem:[%s415 + $0x18] sm:$0xf]
        %v423 = vld [vmem:[%s415 + $0x1c] sm:$0xf]
        %v424 = vld [vmem:[%s415 + $0x20] sm:$0xf]
        %v433 = vunpack.c.l.b16 %v386
        %v434 = vunpack.c.l.b16 %v387
        %v435 = vunpack.c.l.b16 %v388
        %v436 = vunpack.c.l.b16 %v389
        %v437 = vunpack.c.l.b16 %v390
        %v438 = vunpack.c.l.b16 %v391
        %v439 = vunpack.c.l.b16 %v392
        %v440 = vunpack.c.l.b16 %v393
        %v441 = vpack.c.b16 %v434, %v433
        %v442 = vpack.c.b16 %v436, %v435
        %v443 = vpack.c.b16 %v438, %v437
        %v444 = vpack.c.b16 %v440, %v439
        %v457 = vunpack.c.l.b16 %v396
        %v458 = vunpack.c.l.b16 %v397
        %v459 = vunpack.c.l.b16 %v398
        %v460 = vunpack.c.l.b16 %v399
        %v461 = vunpack.c.l.b16 %v400
        %v462 = vunpack.c.l.b16 %v401
        %v463 = vunpack.c.l.b16 %v402
        %v464 = vunpack.c.l.b16 %v403
        %v465 = vpack.c.b16 %v458, %v457
        %v466 = vpack.c.b16 %v460, %v459
        %v467 = vpack.c.b16 %v462, %v461
        %v468 = vpack.c.b16 %v464, %v463
        %v481 = vunpack.c.l.b16 %v406
        %v482 = vunpack.c.l.b16 %v407
        %v483 = vunpack.c.l.b16 %v408
        %v484 = vunpack.c.l.b16 %v409
        %v485 = vunpack.c.l.b16 %v410
        %v486 = vunpack.c.l.b16 %v411
        %v487 = vunpack.c.l.b16 %v412
        %v488 = vunpack.c.l.b16 %v413
        %v489 = vpack.c.b16 %v482, %v481
        %v490 = vpack.c.b16 %v484, %v483
        %v491 = vpack.c.b16 %v486, %v485
        %v492 = vpack.c.b16 %v488, %v487
        %v505 = vunpack.c.l.b16 %v416
        %v506 = vunpack.c.l.b16 %v417
        %v507 = vunpack.c.l.b16 %v418
        %v508 = vunpack.c.l.b16 %v419
        %v509 = vunpack.c.l.b16 %v420
        %v510 = vunpack.c.l.b16 %v421
        %v511 = vunpack.c.l.b16 %v422
        %v512 = vunpack.c.l.b16 %v423
        %v513 = vpack.c.b16 %v506, %v505
        %v514 = vpack.c.b16 %v508, %v507
        %v515 = vpack.c.b16 %v510, %v509
        %v516 = vpack.c.b16 %v512, %v511
        %v521 = vld [vmem:[%s1] sm:$0xff]
        %v522 = vld [vmem:[%s1 + $0x8] sm:$0xff]
        %v523 = vld [vmem:[%s1 + $0x10] sm:$0xff]
        %v524 = vld [vmem:[%s1 + $0x18] sm:$0xff]
        %v525 = vld [vmem:[%s1 + $0x20] sm:$0xff]
        %v526 = vld [vmem:[%s1 + $0x28] sm:$0xff]
        %v527 = vld [vmem:[%s1 + $0x30] sm:$0xff]
        %v528 = vld [vmem:[%s1 + $0x38] sm:$0xff]
        %v529 = vld [vmem:[%s1 + $0x40] sm:$0xff]
        %v530 = vld [vmem:[%s1 + $0x48] sm:$0xff]
        %v531 = vld [vmem:[%s1 + $0x50] sm:$0xff]
        %v532 = vld [vmem:[%s1 + $0x58] sm:$0xff]
        %v533 = vld [vmem:[%s1 + $0x60] sm:$0xff]
        %v534 = vld [vmem:[%s1 + $0x68] sm:$0xff]
        %v535 = vld [vmem:[%s1 + $0x70] sm:$0xff]
        %v536 = vld [vmem:[%s1 + $0x78] sm:$0xff]
        %v538 = vunpack.c.l.b16 %v394
        %v539 = vpack.c.b16 %v435, %v434
        %v540 = vpack.c.b16 %v437, %v436
        %v541 = vpack.c.b16 %v439, %v438
        %v542 = vpack.c.b16 %v538, %v440
        %s547 = scalar_lea.vmem %s1, 128
        %v548 = vld [vmem:[%s547] sm:$0xff]
        %v549 = vld [vmem:[%s547 + $0x8] sm:$0xff]
        %v550 = vld [vmem:[%s547 + $0x10] sm:$0xff]
        %v551 = vld [vmem:[%s547 + $0x18] sm:$0xff]
        %v552 = vld [vmem:[%s547 + $0x20] sm:$0xff]
        %v553 = vld [vmem:[%s547 + $0x28] sm:$0xff]
        %v554 = vld [vmem:[%s547 + $0x30] sm:$0xff]
        %v555 = vld [vmem:[%s547 + $0x38] sm:$0xff]
        %v556 = vld [vmem:[%s547 + $0x40] sm:$0xff]
        %v557 = vld [vmem:[%s547 + $0x48] sm:$0xff]
        %v558 = vld [vmem:[%s547 + $0x50] sm:$0xff]
        %v559 = vld [vmem:[%s547 + $0x58] sm:$0xff]
        %v560 = vld [vmem:[%s547 + $0x60] sm:$0xff]
        %v561 = vld [vmem:[%s547 + $0x68] sm:$0xff]
        %v562 = vld [vmem:[%s547 + $0x70] sm:$0xff]
        %v563 = vld [vmem:[%s547 + $0x78] sm:$0xff]
        %v580 = vunpack.c.l.b16 %v548
        %v581 = vunpack.c.h.b16 %v548
        %v582 = vunpack.c.l.b16 %v549
        %v583 = vunpack.c.h.b16 %v549
        %v584 = vunpack.c.l.b16 %v550
        %v585 = vunpack.c.h.b16 %v550
        %v586 = vunpack.c.l.b16 %v551
        %v587 = vunpack.c.h.b16 %v551
        %v588 = vunpack.c.l.b16 %v552
        %v589 = vunpack.c.h.b16 %v552
        %v590 = vunpack.c.l.b16 %v553
        %v591 = vunpack.c.h.b16 %v553
        %v592 = vunpack.c.l.b16 %v554
        %v593 = vunpack.c.h.b16 %v554
        %v594 = vunpack.c.l.b16 %v555
        %v595 = vunpack.c.h.b16 %v555
        %v596 = vunpack.c.l.b16 %v556
        %v597 = vunpack.c.h.b16 %v556
        %v598 = vunpack.c.l.b16 %v557
        %v599 = vunpack.c.h.b16 %v557
        %v600 = vunpack.c.l.b16 %v558
        %v601 = vunpack.c.h.b16 %v558
        %v602 = vunpack.c.l.b16 %v559
        %v603 = vunpack.c.h.b16 %v559
        %v604 = vunpack.c.l.b16 %v560
        %v605 = vunpack.c.h.b16 %v560
        %v606 = vunpack.c.l.b16 %v561
        %v607 = vunpack.c.h.b16 %v561
        %v608 = vunpack.c.l.b16 %v562
        %v609 = vunpack.c.h.b16 %v562
        %v610 = vunpack.c.l.b16 %v563
        %v611 = vunpack.c.h.b16 %v563
        %v612 = vpack.c.b16 %v582, %v580
        %v613 = vpack.c.b16 %v583, %v581
        %v614 = vpack.c.b16 %v586, %v584
        %v615 = vpack.c.b16 %v587, %v585
        %v616 = vpack.c.b16 %v590, %v588
        %v617 = vpack.c.b16 %v591, %v589
        %v618 = vpack.c.b16 %v594, %v592
        %v619 = vpack.c.b16 %v595, %v593
        %v620 = vpack.c.b16 %v598, %v596
        %v621 = vpack.c.b16 %v599, %v597
        %v622 = vpack.c.b16 %v602, %v600
        %v623 = vpack.c.b16 %v603, %v601
        %v624 = vpack.c.b16 %v606, %v604
        %v625 = vpack.c.b16 %v607, %v605
        %v626 = vpack.c.b16 %v610, %v608
        %v627 = vpack.c.b16 %v611, %v609
        %644 = vmatprep.subr.bf16.mxu0 %v613
        %645 = vmatpush1.bf16.msra.mxu0 %v612
        %646 = vmatprep.subr.bf16.mxu0 %v615
        %647 = vmatpush1.bf16.msra.mxu0 %v614
        %648 = vmatprep.subr.bf16.mxu0 %v617
        %649 = vmatpush1.bf16.msra.mxu0 %v616
        %650 = vmatprep.subr.bf16.mxu0 %v619
        %651 = vmatpush1.bf16.msra.mxu0 %v618
        %652 = vmatprep.subr.bf16.mxu0 %v621
        %653 = vmatpush1.bf16.msra.mxu0 %v620
        %654 = vmatprep.subr.bf16.mxu0 %v623
        %655 = vmatpush1.bf16.msra.mxu0 %v622
        %656 = vmatprep.subr.bf16.mxu0 %v625
        %657 = vmatpush1.bf16.msra.mxu0 %v624
        %658 = vmatprep.subr.bf16.mxu0 %v627
        %659 = vmatpush1.bf16.msra.mxu0 %v626
        %660 = vmatprep.subr.bf16.mxu0 0
        %661 = vmatpush1.bf16.msra.mxu0 0
        %662 = vmatprep.subr.bf16.mxu0 0
        %663 = vmatpush1.bf16.msra.mxu0 0
        %664 = vmatprep.subr.bf16.mxu0 0
        %665 = vmatpush1.bf16.msra.mxu0 0
        %666 = vmatprep.subr.bf16.mxu0 0
        %667 = vmatpush1.bf16.msra.mxu0 0
        %668 = vmatprep.subr.bf16.mxu0 0
        %669 = vmatpush1.bf16.msra.mxu0 0
        %670 = vmatprep.subr.bf16.mxu0 0
        %671 = vmatpush1.bf16.msra.mxu0 0
        %672 = vmatprep.subr.bf16.mxu0 0
        %673 = vmatpush1.bf16.msra.mxu0 0
        %674 = vmatprep.subr.bf16.mxu0 0
        %675 = vmatpush1.bf16.msra.mxu0 0
        %676 = vmatprep.mubr.bf16.mxu0 0
        %677 = vmatmul.mubr.bf16.gmra.mrb[0].mxu0 %v465
        %v678 = vpop.f32.mrb[0].mxu0
        %v679 = vadd.f32 0.0, %v678
        %v680 = vpop.f32.mrb[0].mxu0
        %v681 = vadd.f32 0.0, %v680
        %v682 = vpop.f32.mrb[0].mxu0
        %v683 = vadd.f32 0.0, %v682
        %v684 = vpop.f32.mrb[0].mxu0
        %v685 = vadd.f32 0.0, %v684
        %686 = vmatprep.mubr.bf16.mxu0 0
        %687 = vmatmul.mubr.bf16.gmra.mrb[0].mxu0 %v466
        %v688 = vpop.f32.mrb[0].mxu0
        %v689 = vadd.f32 0.0, %v688
        %v690 = vpop.f32.mrb[0].mxu0
        %v691 = vadd.f32 0.0, %v690
        %v692 = vpop.f32.mrb[0].mxu0
        %v693 = vadd.f32 0.0, %v692
        %v694 = vpop.f32.mrb[0].mxu0
        %v695 = vadd.f32 0.0, %v694
        %696 = vmatprep.mubr.bf16.mxu0 0
        %697 = vmatmul.mubr.bf16.gmra.mrb[0].mxu0 %v467
        %v698 = vpop.f32.mrb[0].mxu0
        %v699 = vadd.f32 0.0, %v698
        %v700 = vpop.f32.mrb[0].mxu0
        %v701 = vadd.f32 0.0, %v700
        %v702 = vpop.f32.mrb[0].mxu0
        %v703 = vadd.f32 0.0, %v702
        %v704 = vpop.f32.mrb[0].mxu0
        %v705 = vadd.f32 0.0, %v704
        %706 = vmatprep.mubr.bf16.mxu0 0
        %707 = vmatmul.mubr.bf16.gmra.mrb[0].mxu0 %v468
        %v708 = vpop.f32.mrb[0].mxu0
        %v709 = vadd.f32 0.0, %v708
        %v710 = vpop.f32.mrb[0].mxu0
        %v711 = vadd.f32 0.0, %v710
        %v712 = vpop.f32.mrb[0].mxu0
        %v713 = vadd.f32 0.0, %v712
        %v714 = vpop.f32.mrb[0].mxu0
        %v715 = vadd.f32 0.0, %v714
        %716 = vmatprep.mubr.bf16.mxu0 0
        %717 = vmatmul.mubr.bf16.gmra.mrb[0].mxu0 %v489
        %v718 = vpop.f32.mrb[0].mxu0
        %v719 = vadd.f32 0.0, %v718
        %v720 = vpop.f32.mrb[0].mxu0
        %v721 = vadd.f32 0.0, %v720
        %v722 = vpop.f32.mrb[0].mxu0
        %v723 = vadd.f32 0.0, %v722
        %v724 = vpop.f32.mrb[0].mxu0
        %v725 = vadd.f32 0.0, %v724
        %726 = vmatprep.mubr.bf16.mxu0 0
        %727 = vmatmul.mubr.bf16.gmra.mrb[0].mxu0 %v490
        %v728 = vpop.f32.mrb[0].mxu0
        %v729 = vadd.f32 0.0, %v728
        %v730 = vpop.f32.mrb[0].mxu0
        %v731 = vadd.f32 0.0, %v730
        %v732 = vpop.f32.mrb[0].mxu0
        %v733 = vadd.f32 0.0, %v732
        %v734 = vpop.f32.mrb[0].mxu0
        %v735 = vadd.f32 0.0, %v734
        %736 = vmatprep.mubr.bf16.mxu0 0
        %737 = vmatmul.mubr.bf16.gmra.mrb[0].mxu0 %v491
        %v738 = vpop.f32.mrb[0].mxu0
        %v739 = vadd.f32 0.0, %v738
        %v740 = vpop.f32.mrb[0].mxu0
        %v741 = vadd.f32 0.0, %v740
        %v742 = vpop.f32.mrb[0].mxu0
        %v743 = vadd.f32 0.0, %v742
        %v744 = vpop.f32.mrb[0].mxu0
        %v745 = vadd.f32 0.0, %v744
        %746 = vmatprep.mubr.bf16.mxu0 0
        %747 = vmatmul.mubr.bf16.gmra.mrb[0].mxu0 %v492
        %v748 = vpop.f32.mrb[0].mxu0
        %v749 = vadd.f32 0.0, %v748
        %v750 = vpop.f32.mrb[0].mxu0
        %v751 = vadd.f32 0.0, %v750
        %v752 = vpop.f32.mrb[0].mxu0
        %v753 = vadd.f32 0.0, %v752
        %v754 = vpop.f32.mrb[0].mxu0
        %v755 = vadd.f32 0.0, %v754
        %756 = vmatprep.mubr.bf16.mxu0 0
        %757 = vmatmul.mubr.bf16.gmra.mrb[0].mxu0 %v513
        %v758 = vpop.f32.mrb[0].mxu0
        %v759 = vadd.f32 0.0, %v758
        %v760 = vpop.f32.mrb[0].mxu0
        %v761 = vadd.f32 0.0, %v760
        %v762 = vpop.f32.mrb[0].mxu0
        %v763 = vadd.f32 0.0, %v762
        %v764 = vpop.f32.mrb[0].mxu0
        %v765 = vadd.f32 0.0, %v764
        %766 = vmatprep.mubr.bf16.mxu0 0
        %767 = vmatmul.mubr.bf16.gmra.mrb[0].mxu0 %v514
        %v768 = vpop.f32.mrb[0].mxu0
        %v769 = vadd.f32 0.0, %v768
        %v770 = vpop.f32.mrb[0].mxu0
        %v771 = vadd.f32 0.0, %v770
        %v772 = vpop.f32.mrb[0].mxu0
        %v773 = vadd.f32 0.0, %v772
        %v774 = vpop.f32.mrb[0].mxu0
        %v775 = vadd.f32 0.0, %v774
        %776 = vmatprep.mubr.bf16.mxu0 0
        %777 = vmatmul.mubr.bf16.gmra.mrb[0].mxu0 %v515
        %v778 = vpop.f32.mrb[0].mxu0
        %v779 = vadd.f32 0.0, %v778
        %v780 = vpop.f32.mrb[0].mxu0
        %v781 = vadd.f32 0.0, %v780
        %v782 = vpop.f32.mrb[0].mxu0
        %v783 = vadd.f32 0.0, %v782
        %v784 = vpop.f32.mrb[0].mxu0
        %v785 = vadd.f32 0.0, %v784
        %786 = vmatprep.mubr.bf16.mxu0 0
        %787 = vmatmul.mubr.bf16.gmra.mrb[0].mxu0 %v516
        %v788 = vpop.f32.mrb[0].mxu0
        %v789 = vadd.f32 0.0, %v788
        %v790 = vpop.f32.mrb[0].mxu0
        %v791 = vadd.f32 0.0, %v790
        %v792 = vpop.f32.mrb[0].mxu0
        %v793 = vadd.f32 0.0, %v792
        %v794 = vpop.f32.mrb[0].mxu0
        %v795 = vadd.f32 0.0, %v794
        %796 = vmatprep.mubr.bf16.mxu0 0
        %797 = vmatmul.mubr.bf16.gmra.mrb[0].mxu0 %v539
        %v798 = vpop.f32.mrb[0].mxu0
        %v799 = vadd.f32 0.0, %v798
        %v800 = vpop.f32.mrb[0].mxu0
        %v801 = vadd.f32 0.0, %v800
        %v802 = vpop.f32.mrb[0].mxu0
        %v803 = vadd.f32 0.0, %v802
        %v804 = vpop.f32.mrb[0].mxu0
        %v805 = vadd.f32 0.0, %v804
        %806 = vmatprep.mubr.bf16.mxu0 0
        %807 = vmatmul.mubr.bf16.gmra.mrb[0].mxu0 %v540
        %v808 = vpop.f32.mrb[0].mxu0
        %v809 = vadd.f32 0.0, %v808
        %v810 = vpop.f32.mrb[0].mxu0
        %v811 = vadd.f32 0.0, %v810
        %v812 = vpop.f32.mrb[0].mxu0
        %v813 = vadd.f32 0.0, %v812
        %v814 = vpop.f32.mrb[0].mxu0
        %v815 = vadd.f32 0.0, %v814
        %816 = vmatprep.mubr.bf16.mxu0 0
        %817 = vmatmul.mubr.bf16.gmra.mrb[0].mxu0 %v541
        %v818 = vpop.f32.mrb[0].mxu0
        %v819 = vadd.f32 0.0, %v818
        %v820 = vpop.f32.mrb[0].mxu0
        %v821 = vadd.f32 0.0, %v820
        %v822 = vpop.f32.mrb[0].mxu0
        %v823 = vadd.f32 0.0, %v822
        %v824 = vpop.f32.mrb[0].mxu0
        %v825 = vadd.f32 0.0, %v824
        %826 = vmatprep.mubr.bf16.mxu0 0
        %827 = vmatmul.mubr.bf16.gmra.mrb[0].mxu0 %v542
        %v828 = vpop.f32.mrb[0].mxu0
        %v829 = vadd.f32 0.0, %v828
        %v830 = vpop.f32.mrb[0].mxu0
        %v831 = vadd.f32 0.0, %v830
        %v832 = vpop.f32.mrb[0].mxu0
        %v833 = vadd.f32 0.0, %v832
        %v834 = vpop.f32.mrb[0].mxu0
        %v835 = vadd.f32 0.0, %v834
        %836 = vdwg.mxu0
        %v853 = vunpack.c.l.b16 %v521
        %v854 = vunpack.c.h.b16 %v521
        %v855 = vunpack.c.l.b16 %v522
        %v856 = vunpack.c.h.b16 %v522
        %v857 = vunpack.c.l.b16 %v523
        %v858 = vunpack.c.h.b16 %v523
        %v859 = vunpack.c.l.b16 %v524
        %v860 = vunpack.c.h.b16 %v524
        %v861 = vunpack.c.l.b16 %v525
        %v862 = vunpack.c.h.b16 %v525
        %v863 = vunpack.c.l.b16 %v526
        %v864 = vunpack.c.h.b16 %v526
        %v865 = vunpack.c.l.b16 %v527
        %v866 = vunpack.c.h.b16 %v527
        %v867 = vunpack.c.l.b16 %v528
        %v868 = vunpack.c.h.b16 %v528
        %v869 = vunpack.c.l.b16 %v529
        %v870 = vunpack.c.h.b16 %v529
        %v871 = vunpack.c.l.b16 %v530
        %v872 = vunpack.c.h.b16 %v530
        %v873 = vunpack.c.l.b16 %v531
        %v874 = vunpack.c.h.b16 %v531
        %v875 = vunpack.c.l.b16 %v532
        %v876 = vunpack.c.h.b16 %v532
        %v877 = vunpack.c.l.b16 %v533
        %v878 = vunpack.c.h.b16 %v533
        %v879 = vunpack.c.l.b16 %v534
        %v880 = vunpack.c.h.b16 %v534
        %v881 = vunpack.c.l.b16 %v535
        %v882 = vunpack.c.h.b16 %v535
        %v883 = vunpack.c.l.b16 %v536
        %v884 = vunpack.c.h.b16 %v536
        %v885 = vpack.c.b16 %v855, %v853
        %v886 = vpack.c.b16 %v856, %v854
        %v887 = vpack.c.b16 %v859, %v857
        %v888 = vpack.c.b16 %v860, %v858
        %v889 = vpack.c.b16 %v863, %v861
        %v890 = vpack.c.b16 %v864, %v862
        %v891 = vpack.c.b16 %v867, %v865
        %v892 = vpack.c.b16 %v868, %v866
        %v893 = vpack.c.b16 %v871, %v869
        %v894 = vpack.c.b16 %v872, %v870
        %v895 = vpack.c.b16 %v875, %v873
        %v896 = vpack.c.b16 %v876, %v874
        %v897 = vpack.c.b16 %v879, %v877
        %v898 = vpack.c.b16 %v880, %v878
        %v899 = vpack.c.b16 %v883, %v881
        %v900 = vpack.c.b16 %v884, %v882
        %917 = vmatprep.subr.bf16.mxu0 %v886
        %918 = vmatpush1.bf16.msra.mxu0 %v885
        %919 = vmatprep.subr.bf16.mxu0 %v888
        %920 = vmatpush1.bf16.msra.mxu0 %v887
        %921 = vmatprep.subr.bf16.mxu0 %v890
        %922 = vmatpush1.bf16.msra.mxu0 %v889
        %923 = vmatprep.subr.bf16.mxu0 %v892
        %924 = vmatpush1.bf16.msra.mxu0 %v891
        %925 = vmatprep.subr.bf16.mxu0 %v894
        %926 = vmatpush1.bf16.msra.mxu0 %v893
        %927 = vmatprep.subr.bf16.mxu0 %v896
        %928 = vmatpush1.bf16.msra.mxu0 %v895
        %929 = vmatprep.subr.bf16.mxu0 %v898
        %930 = vmatpush1.bf16.msra.mxu0 %v897
        %931 = vmatprep.subr.bf16.mxu0 %v900
        %932 = vmatpush1.bf16.msra.mxu0 %v899
        %933 = vmatprep.subr.bf16.mxu0 0
        %934 = vmatpush1.bf16.msra.mxu0 0
        %935 = vmatprep.subr.bf16.mxu0 0
        %936 = vmatpush1.bf16.msra.mxu0 0
        %937 = vmatprep.subr.bf16.mxu0 0
        %938 = vmatpush1.bf16.msra.mxu0 0
        %939 = vmatprep.subr.bf16.mxu0 0
        %940 = vmatpush1.bf16.msra.mxu0 0
        %941 = vmatprep.subr.bf16.mxu0 0
        %942 = vmatpush1.bf16.msra.mxu0 0
        %943 = vmatprep.subr.bf16.mxu0 0
        %944 = vmatpush1.bf16.msra.mxu0 0
        %945 = vmatprep.subr.bf16.mxu0 0
        %946 = vmatpush1.bf16.msra.mxu0 0
        %947 = vmatprep.subr.bf16.mxu0 0
        %948 = vmatpush1.bf16.msra.mxu0 0
        %949 = vmatprep.mubr.bf16.mxu0 0
        %950 = vmatmul.mubr.bf16.gmra.mrb[0].mxu0 %v441
        %v951 = vpop.f32.mrb[0].mxu0
        %v952 = vadd.f32 %v679, %v951
        %v953 = vpop.f32.mrb[0].mxu0
        %v954 = vadd.f32 %v681, %v953
        %v955 = vpop.f32.mrb[0].mxu0
        %v956 = vadd.f32 %v683, %v955
        %v957 = vpop.f32.mrb[0].mxu0
        %v958 = vadd.f32 %v685, %v957
        %959 = vmatprep.mubr.bf16.mxu0 0
        %960 = vmatmul.mubr.bf16.gmra.mrb[0].mxu0 %v442
        %v961 = vpop.f32.mrb[0].mxu0
        %v962 = vadd.f32 %v689, %v961
        %v963 = vpop.f32.mrb[0].mxu0
        %v964 = vadd.f32 %v691, %v963
        %v965 = vpop.f32.mrb[0].mxu0
        %v966 = vadd.f32 %v693, %v965
        %v967 = vpop.f32.mrb[0].mxu0
        %v968 = vadd.f32 %v695, %v967
        %969 = vmatprep.mubr.bf16.mxu0 0
        %970 = vmatmul.mubr.bf16.gmra.mrb[0].mxu0 %v443
        %v971 = vpop.f32.mrb[0].mxu0
        %v972 = vadd.f32 %v699, %v971
        %v973 = vpop.f32.mrb[0].mxu0
        %v974 = vadd.f32 %v701, %v973
        %v975 = vpop.f32.mrb[0].mxu0
        %v976 = vadd.f32 %v703, %v975
        %v977 = vpop.f32.mrb[0].mxu0
        %v978 = vadd.f32 %v705, %v977
        %979 = vmatprep.mubr.bf16.mxu0 0
        %980 = vmatmul.mubr.bf16.gmra.mrb[0].mxu0 %v444
        %v981 = vpop.f32.mrb[0].mxu0
        %v982 = vadd.f32 %v709, %v981
        %v983 = vpop.f32.mrb[0].mxu0
        %v984 = vadd.f32 %v711, %v983
        %v985 = vpop.f32.mrb[0].mxu0
        %v986 = vadd.f32 %v713, %v985
        %v987 = vpop.f32.mrb[0].mxu0
        %v988 = vadd.f32 %v715, %v987
        %989 = vmatprep.mubr.bf16.mxu0 0
        %990 = vmatmul.mubr.bf16.gmra.mrb[0].mxu0 %v465
        %v991 = vpop.f32.mrb[0].mxu0
        %v992 = vadd.f32 %v719, %v991
        %v993 = vpop.f32.mrb[0].mxu0
        %v994 = vadd.f32 %v721, %v993
        %v995 = vpop.f32.mrb[0].mxu0
        %v996 = vadd.f32 %v723, %v995
        %v997 = vpop.f32.mrb[0].mxu0
        %v998 = vadd.f32 %v725, %v997
        %999 = vmatprep.mubr.bf16.mxu0 0
        %1000 = vmatmul.mubr.bf16.gmra.mrb[0].mxu0 %v466
        %v1001 = vpop.f32.mrb[0].mxu0
        %v1002 = vadd.f32 %v729, %v1001
        %v1003 = vpop.f32.mrb[0].mxu0
        %v1004 = vadd.f32 %v731, %v1003
        %v1005 = vpop.f32.mrb[0].mxu0
        %v1006 = vadd.f32 %v733, %v1005
        %v1007 = vpop.f32.mrb[0].mxu0
        %v1008 = vadd.f32 %v735, %v1007
        %1009 = vmatprep.mubr.bf16.mxu0 0
        %1010 = vmatmul.mubr.bf16.gmra.mrb[0].mxu0 %v467
        %v1011 = vpop.f32.mrb[0].mxu0
        %v1012 = vadd.f32 %v739, %v1011
        %v1013 = vpop.f32.mrb[0].mxu0
        %v1014 = vadd.f32 %v741, %v1013
        %v1015 = vpop.f32.mrb[0].mxu0
        %v1016 = vadd.f32 %v743, %v1015
        %v1017 = vpop.f32.mrb[0].mxu0
        %v1018 = vadd.f32 %v745, %v1017
        %1019 = vmatprep.mubr.bf16.mxu0 0
        %1020 = vmatmul.mubr.bf16.gmra.mrb[0].mxu0 %v468
        %v1021 = vpop.f32.mrb[0].mxu0
        %v1022 = vadd.f32 %v749, %v1021
        %v1023 = vpop.f32.mrb[0].mxu0
        %v1024 = vadd.f32 %v751, %v1023
        %v1025 = vpop.f32.mrb[0].mxu0
        %v1026 = vadd.f32 %v753, %v1025
        %v1027 = vpop.f32.mrb[0].mxu0
        %v1028 = vadd.f32 %v755, %v1027
        %1029 = vmatprep.mubr.bf16.mxu0 0
        %1030 = vmatmul.mubr.bf16.gmra.mrb[0].mxu0 %v489
        %v1031 = vpop.f32.mrb[0].mxu0
        %v1032 = vadd.f32 %v759, %v1031
        %v1033 = vpop.f32.mrb[0].mxu0
        %v1034 = vadd.f32 %v761, %v1033
        %v1035 = vpop.f32.mrb[0].mxu0
        %v1036 = vadd.f32 %v763, %v1035
        %v1037 = vpop.f32.mrb[0].mxu0
        %v1038 = vadd.f32 %v765, %v1037
        %1039 = vmatprep.mubr.bf16.mxu0 0
        %1040 = vmatmul.mubr.bf16.gmra.mrb[0].mxu0 %v490
        %v1041 = vpop.f32.mrb[0].mxu0
        %v1042 = vadd.f32 %v769, %v1041
        %v1043 = vpop.f32.mrb[0].mxu0
        %v1044 = vadd.f32 %v771, %v1043
        %v1045 = vpop.f32.mrb[0].mxu0
        %v1046 = vadd.f32 %v773, %v1045
        %v1047 = vpop.f32.mrb[0].mxu0
        %v1048 = vadd.f32 %v775, %v1047
        %1049 = vmatprep.mubr.bf16.mxu0 0
        %1050 = vmatmul.mubr.bf16.gmra.mrb[0].mxu0 %v491
        %v1051 = vpop.f32.mrb[0].mxu0
        %v1052 = vadd.f32 %v779, %v1051
        %v1053 = vpop.f32.mrb[0].mxu0
        %v1054 = vadd.f32 %v781, %v1053
        %v1055 = vpop.f32.mrb[0].mxu0
        %v1056 = vadd.f32 %v783, %v1055
        %v1057 = vpop.f32.mrb[0].mxu0
        %v1058 = vadd.f32 %v785, %v1057
        %1059 = vmatprep.mubr.bf16.mxu0 0
        %1060 = vmatmul.mubr.bf16.gmra.mrb[0].mxu0 %v492
        %v1061 = vpop.f32.mrb[0].mxu0
        %v1062 = vadd.f32 %v789, %v1061
        %v1063 = vpop.f32.mrb[0].mxu0
        %v1064 = vadd.f32 %v791, %v1063
        %v1065 = vpop.f32.mrb[0].mxu0
        %v1066 = vadd.f32 %v793, %v1065
        %v1067 = vpop.f32.mrb[0].mxu0
        %v1068 = vadd.f32 %v795, %v1067
        %1069 = vmatprep.mubr.bf16.mxu0 0
        %1070 = vmatmul.mubr.bf16.gmra.mrb[0].mxu0 %v513
        %v1071 = vpop.f32.mrb[0].mxu0
        %v1072 = vadd.f32 %v799, %v1071
        %v1073 = vpop.f32.mrb[0].mxu0
        %v1074 = vadd.f32 %v801, %v1073
        %v1075 = vpop.f32.mrb[0].mxu0
        %v1076 = vadd.f32 %v803, %v1075
        %v1077 = vpop.f32.mrb[0].mxu0
        %v1078 = vadd.f32 %v805, %v1077
        %1079 = vmatprep.mubr.bf16.mxu0 0
        %1080 = vmatmul.mubr.bf16.gmra.mrb[0].mxu0 %v514
        %v1081 = vpop.f32.mrb[0].mxu0
        %v1082 = vadd.f32 %v809, %v1081
        %v1083 = vpop.f32.mrb[0].mxu0
        %v1084 = vadd.f32 %v811, %v1083
        %v1085 = vpop.f32.mrb[0].mxu0
        %v1086 = vadd.f32 %v813, %v1085
        %v1087 = vpop.f32.mrb[0].mxu0
        %v1088 = vadd.f32 %v815, %v1087
        %1089 = vmatprep.mubr.bf16.mxu0 0
        %1090 = vmatmul.mubr.bf16.gmra.mrb[0].mxu0 %v515
        %v1091 = vpop.f32.mrb[0].mxu0
        %v1092 = vadd.f32 %v819, %v1091
        %v1093 = vpop.f32.mrb[0].mxu0
        %v1094 = vadd.f32 %v821, %v1093
        %v1095 = vpop.f32.mrb[0].mxu0
        %v1096 = vadd.f32 %v823, %v1095
        %v1097 = vpop.f32.mrb[0].mxu0
        %v1098 = vadd.f32 %v825, %v1097
        %1099 = vmatprep.mubr.bf16.mxu0 0
        %1100 = vmatmul.mubr.bf16.gmra.mrb[0].mxu0 %v516
        %v1101 = vpop.f32.mrb[0].mxu0
        %v1102 = vadd.f32 %v829, %v1101
        %v1103 = vpop.f32.mrb[0].mxu0
        %v1104 = vadd.f32 %v831, %v1103
        %v1105 = vpop.f32.mrb[0].mxu0
        %v1106 = vadd.f32 %v833, %v1105
        %v1107 = vpop.f32.mrb[0].mxu0
        %v1108 = vadd.f32 %v835, %v1107
        %1109 = vdwg.mxu0
        %v1111 = vunpack.c.l.b16 %v404
        %v1112 = vpack.c.b16 %v459, %v458
        %v1113 = vpack.c.b16 %v461, %v460
        %v1114 = vpack.c.b16 %v463, %v462
        %v1115 = vpack.c.b16 %v1111, %v464
        %s1120 = scalar_lea.vmem %s1, 256
        %v1121 = vld [vmem:[%s1120] sm:$0xff]
        %v1122 = vld [vmem:[%s1120 + $0x8] sm:$0xff]
        %v1123 = vld [vmem:[%s1120 + $0x10] sm:$0xff]
        %v1124 = vld [vmem:[%s1120 + $0x18] sm:$0xff]
        %v1125 = vld [vmem:[%s1120 + $0x20] sm:$0xff]
        %v1126 = vld [vmem:[%s1120 + $0x28] sm:$0xff]
        %v1127 = vld [vmem:[%s1120 + $0x30] sm:$0xff]
        %v1128 = vld [vmem:[%s1120 + $0x38] sm:$0xff]
        %v1129 = vld [vmem:[%s1120 + $0x40] sm:$0xff]
        %v1130 = vld [vmem:[%s1120 + $0x48] sm:$0xff]
        %v1131 = vld [vmem:[%s1120 + $0x50] sm:$0xff]
        %v1132 = vld [vmem:[%s1120 + $0x58] sm:$0xff]
        %v1133 = vld [vmem:[%s1120 + $0x60] sm:$0xff]
        %v1134 = vld [vmem:[%s1120 + $0x68] sm:$0xff]
        %v1135 = vld [vmem:[%s1120 + $0x70] sm:$0xff]
        %v1136 = vld [vmem:[%s1120 + $0x78] sm:$0xff]
        %v1153 = vunpack.c.l.b16 %v1121
        %v1154 = vunpack.c.h.b16 %v1121
        %v1155 = vunpack.c.l.b16 %v1122
        %v1156 = vunpack.c.h.b16 %v1122
        %v1157 = vunpack.c.l.b16 %v1123
        %v1158 = vunpack.c.h.b16 %v1123
        %v1159 = vunpack.c.l.b16 %v1124
        %v1160 = vunpack.c.h.b16 %v1124
        %v1161 = vunpack.c.l.b16 %v1125
        %v1162 = vunpack.c.h.b16 %v1125
        %v1163 = vunpack.c.l.b16 %v1126
        %v1164 = vunpack.c.h.b16 %v1126
        %v1165 = vunpack.c.l.b16 %v1127
        %v1166 = vunpack.c.h.b16 %v1127
        %v1167 = vunpack.c.l.b16 %v1128
        %v1168 = vunpack.c.h.b16 %v1128
        %v1169 = vunpack.c.l.b16 %v1129
        %v1170 = vunpack.c.h.b16 %v1129
        %v1171 = vunpack.c.l.b16 %v1130
        %v1172 = vunpack.c.h.b16 %v1130
        %v1173 = vunpack.c.l.b16 %v1131
        %v1174 = vunpack.c.h.b16 %v1131
        %v1175 = vunpack.c.l.b16 %v1132
        %v1176 = vunpack.c.h.b16 %v1132
        %v1177 = vunpack.c.l.b16 %v1133
        %v1178 = vunpack.c.h.b16 %v1133
        %v1179 = vunpack.c.l.b16 %v1134
        %v1180 = vunpack.c.h.b16 %v1134
        %v1181 = vunpack.c.l.b16 %v1135
        %v1182 = vunpack.c.h.b16 %v1135
        %v1183 = vunpack.c.l.b16 %v1136
        %v1184 = vunpack.c.h.b16 %v1136
        %v1185 = vpack.c.b16 %v1155, %v1153
        %v1186 = vpack.c.b16 %v1156, %v1154
        %v1187 = vpack.c.b16 %v1159, %v1157
        %v1188 = vpack.c.b16 %v1160, %v1158
        %v1189 = vpack.c.b16 %v1163, %v1161
        %v1190 = vpack.c.b16 %v1164, %v1162
        %v1191 = vpack.c.b16 %v1167, %v1165
        %v1192 = vpack.c.b16 %v1168, %v1166
        %v1193 = vpack.c.b16 %v1171, %v1169
        %v1194 = vpack.c.b16 %v1172, %v1170
        %v1195 = vpack.c.b16 %v1175, %v1173
        %v1196 = vpack.c.b16 %v1176, %v1174
        %v1197 = vpack.c.b16 %v1179, %v1177
        %v1198 = vpack.c.b16 %v1180, %v1178
        %v1199 = vpack.c.b16 %v1183, %v1181
        %v1200 = vpack.c.b16 %v1184, %v1182
        %1217 = vmatprep.subr.bf16.mxu0 %v1186
        %1218 = vmatpush1.bf16.msra.mxu0 %v1185
        %1219 = vmatprep.subr.bf16.mxu0 %v1188
        %1220 = vmatpush1.bf16.msra.mxu0 %v1187
        %1221 = vmatprep.subr.bf16.mxu0 %v1190
        %1222 = vmatpush1.bf16.msra.mxu0 %v1189
        %1223 = vmatprep.subr.bf16.mxu0 %v1192
        %1224 = vmatpush1.bf16.msra.mxu0 %v1191
        %1225 = vmatprep.subr.bf16.mxu0 %v1194
        %1226 = vmatpush1.bf16.msra.mxu0 %v1193
        %1227 = vmatprep.subr.bf16.mxu0 %v1196
        %1228 = vmatpush1.bf16.msra.mxu0 %v1195
        %1229 = vmatprep.subr.bf16.mxu0 %v1198
        %1230 = vmatpush1.bf16.msra.mxu0 %v1197
        %1231 = vmatprep.subr.bf16.mxu0 %v1200
        %1232 = vmatpush1.bf16.msra.mxu0 %v1199
        %1233 = vmatprep.subr.bf16.mxu0 0
        %1234 = vmatpush1.bf16.msra.mxu0 0
        %1235 = vmatprep.subr.bf16.mxu0 0
        %1236 = vmatpush1.bf16.msra.mxu0 0
        %1237 = vmatprep.subr.bf16.mxu0 0
        %1238 = vmatpush1.bf16.msra.mxu0 0
        %1239 = vmatprep.subr.bf16.mxu0 0
        %1240 = vmatpush1.bf16.msra.mxu0 0
        %1241 = vmatprep.subr.bf16.mxu0 0
        %1242 = vmatpush1.bf16.msra.mxu0 0
        %1243 = vmatprep.subr.bf16.mxu0 0
        %1244 = vmatpush1.bf16.msra.mxu0 0
        %1245 = vmatprep.subr.bf16.mxu0 0
        %1246 = vmatpush1.bf16.msra.mxu0 0
        %1247 = vmatprep.subr.bf16.mxu0 0
        %1248 = vmatpush1.bf16.msra.mxu0 0
        %1249 = vmatprep.mubr.bf16.mxu0 0
        %1250 = vmatmul.mubr.bf16.gmra.mrb[0].mxu0 %v489
        %v1251 = vpop.f32.mrb[0].mxu0
        %v1252 = vadd.f32 0.0, %v1251
        %v1253 = vpop.f32.mrb[0].mxu0
        %v1254 = vadd.f32 0.0, %v1253
        %v1255 = vpop.f32.mrb[0].mxu0
        %v1256 = vadd.f32 0.0, %v1255
        %v1257 = vpop.f32.mrb[0].mxu0
        %v1258 = vadd.f32 0.0, %v1257
        %1259 = vmatprep.mubr.bf16.mxu0 0
        %1260 = vmatmul.mubr.bf16.gmra.mrb[0].mxu0 %v490
        %v1261 = vpop.f32.mrb[0].mxu0
        %v1262 = vadd.f32 0.0, %v1261
        %v1263 = vpop.f32.mrb[0].mxu0
        %v1264 = vadd.f32 0.0, %v1263
        %v1265 = vpop.f32.mrb[0].mxu0
        %v1266 = vadd.f32 0.0, %v1265
        %v1267 = vpop.f32.mrb[0].mxu0
        %v1268 = vadd.f32 0.0, %v1267
        %1269 = vmatprep.mubr.bf16.mxu0 0
        %1270 = vmatmul.mubr.bf16.gmra.mrb[0].mxu0 %v491
        %v1271 = vpop.f32.mrb[0].mxu0
        %v1272 = vadd.f32 0.0, %v1271
        %v1273 = vpop.f32.mrb[0].mxu0
        %v1274 = vadd.f32 0.0, %v1273
        %v1275 = vpop.f32.mrb[0].mxu0
        %v1276 = vadd.f32 0.0, %v1275
        %v1277 = vpop.f32.mrb[0].mxu0
        %v1278 = vadd.f32 0.0, %v1277
        %1279 = vmatprep.mubr.bf16.mxu0 0
        %1280 = vmatmul.mubr.bf16.gmra.mrb[0].mxu0 %v492
        %v1281 = vpop.f32.mrb[0].mxu0
        %v1282 = vadd.f32 0.0, %v1281
        %v1283 = vpop.f32.mrb[0].mxu0
        %v1284 = vadd.f32 0.0, %v1283
        %v1285 = vpop.f32.mrb[0].mxu0
        %v1286 = vadd.f32 0.0, %v1285
        %v1287 = vpop.f32.mrb[0].mxu0
        %v1288 = vadd.f32 0.0, %v1287
        %1289 = vmatprep.mubr.bf16.mxu0 0
        %1290 = vmatmul.mubr.bf16.gmra.mrb[0].mxu0 %v513
        %v1291 = vpop.f32.mrb[0].mxu0
        %v1292 = vadd.f32 0.0, %v1291
        %v1293 = vpop.f32.mrb[0].mxu0
        %v1294 = vadd.f32 0.0, %v1293
        %v1295 = vpop.f32.mrb[0].mxu0
        %v1296 = vadd.f32 0.0, %v1295
        %v1297 = vpop.f32.mrb[0].mxu0
        %v1298 = vadd.f32 0.0, %v1297
        %1299 = vmatprep.mubr.bf16.mxu0 0
        %1300 = vmatmul.mubr.bf16.gmra.mrb[0].mxu0 %v514
        %v1301 = vpop.f32.mrb[0].mxu0
        %v1302 = vadd.f32 0.0, %v1301
        %v1303 = vpop.f32.mrb[0].mxu0
        %v1304 = vadd.f32 0.0, %v1303
        %v1305 = vpop.f32.mrb[0].mxu0
        %v1306 = vadd.f32 0.0, %v1305
        %v1307 = vpop.f32.mrb[0].mxu0
        %v1308 = vadd.f32 0.0, %v1307
        %1309 = vmatprep.mubr.bf16.mxu0 0
        %1310 = vmatmul.mubr.bf16.gmra.mrb[0].mxu0 %v515
        %v1311 = vpop.f32.mrb[0].mxu0
        %v1312 = vadd.f32 0.0, %v1311
        %v1313 = vpop.f32.mrb[0].mxu0
        %v1314 = vadd.f32 0.0, %v1313
        %v1315 = vpop.f32.mrb[0].mxu0
        %v1316 = vadd.f32 0.0, %v1315
        %v1317 = vpop.f32.mrb[0].mxu0
        %v1318 = vadd.f32 0.0, %v1317
        %1319 = vmatprep.mubr.bf16.mxu0 0
        %1320 = vmatmul.mubr.bf16.gmra.mrb[0].mxu0 %v516
        %v1321 = vpop.f32.mrb[0].mxu0
        %v1322 = vadd.f32 0.0, %v1321
        %v1323 = vpop.f32.mrb[0].mxu0
        %v1324 = vadd.f32 0.0, %v1323
        %v1325 = vpop.f32.mrb[0].mxu0
        %v1326 = vadd.f32 0.0, %v1325
        %v1327 = vpop.f32.mrb[0].mxu0
        %v1328 = vadd.f32 0.0, %v1327
        %1329 = vmatprep.mubr.bf16.mxu0 0
        %1330 = vmatmul.mubr.bf16.gmra.mrb[0].mxu0 %v539
        %v1331 = vpop.f32.mrb[0].mxu0
        %v1332 = vadd.f32 0.0, %v1331
        %v1333 = vpop.f32.mrb[0].mxu0
        %v1334 = vadd.f32 0.0, %v1333
        %v1335 = vpop.f32.mrb[0].mxu0
        %v1336 = vadd.f32 0.0, %v1335
        %v1337 = vpop.f32.mrb[0].mxu0
        %v1338 = vadd.f32 0.0, %v1337
        %1339 = vmatprep.mubr.bf16.mxu0 0
        %1340 = vmatmul.mubr.bf16.gmra.mrb[0].mxu0 %v540
        %v1341 = vpop.f32.mrb[0].mxu0
        %v1342 = vadd.f32 0.0, %v1341
        %v1343 = vpop.f32.mrb[0].mxu0
        %v1344 = vadd.f32 0.0, %v1343
        %v1345 = vpop.f32.mrb[0].mxu0
        %v1346 = vadd.f32 0.0, %v1345
        %v1347 = vpop.f32.mrb[0].mxu0
        %v1348 = vadd.f32 0.0, %v1347
        %1349 = vmatprep.mubr.bf16.mxu0 0
        %1350 = vmatmul.mubr.bf16.gmra.mrb[0].mxu0 %v541
        %v1351 = vpop.f32.mrb[0].mxu0
        %v1352 = vadd.f32 0.0, %v1351
        %v1353 = vpop.f32.mrb[0].mxu0
        %v1354 = vadd.f32 0.0, %v1353
        %v1355 = vpop.f32.mrb[0].mxu0
        %v1356 = vadd.f32 0.0, %v1355
        %v1357 = vpop.f32.mrb[0].mxu0
        %v1358 = vadd.f32 0.0, %v1357
        %1359 = vmatprep.mubr.bf16.mxu0 0
        %1360 = vmatmul.mubr.bf16.gmra.mrb[0].mxu0 %v542
        %v1361 = vpop.f32.mrb[0].mxu0
        %v1362 = vadd.f32 0.0, %v1361
        %v1363 = vpop.f32.mrb[0].mxu0
        %v1364 = vadd.f32 0.0, %v1363
        %v1365 = vpop.f32.mrb[0].mxu0
        %v1366 = vadd.f32 0.0, %v1365
        %v1367 = vpop.f32.mrb[0].mxu0
        %v1368 = vadd.f32 0.0, %v1367
        %1369 = vmatprep.mubr.bf16.mxu0 0
        %1370 = vmatmul.mubr.bf16.gmra.mrb[0].mxu0 %v1112
        %v1371 = vpop.f32.mrb[0].mxu0
        %v1372 = vadd.f32 0.0, %v1371
        %v1373 = vpop.f32.mrb[0].mxu0
        %v1374 = vadd.f32 0.0, %v1373
        %v1375 = vpop.f32.mrb[0].mxu0
        %v1376 = vadd.f32 0.0, %v1375
        %v1377 = vpop.f32.mrb[0].mxu0
        %v1378 = vadd.f32 0.0, %v1377
        %1379 = vmatprep.mubr.bf16.mxu0 0
        %1380 = vmatmul.mubr.bf16.gmra.mrb[0].mxu0 %v1113
        %v1381 = vpop.f32.mrb[0].mxu0
        %v1382 = vadd.f32 0.0, %v1381
        %v1383 = vpop.f32.mrb[0].mxu0
        %v1384 = vadd.f32 0.0, %v1383
        %v1385 = vpop.f32.mrb[0].mxu0
        %v1386 = vadd.f32 0.0, %v1385
        %v1387 = vpop.f32.mrb[0].mxu0
        %v1388 = vadd.f32 0.0, %v1387
        %1389 = vmatprep.mubr.bf16.mxu0 0
        %1390 = vmatmul.mubr.bf16.gmra.mrb[0].mxu0 %v1114
        %v1391 = vpop.f32.mrb[0].mxu0
        %v1392 = vadd.f32 0.0, %v1391
        %v1393 = vpop.f32.mrb[0].mxu0
        %v1394 = vadd.f32 0.0, %v1393
        %v1395 = vpop.f32.mrb[0].mxu0
        %v1396 = vadd.f32 0.0, %v1395
        %v1397 = vpop.f32.mrb[0].mxu0
        %v1398 = vadd.f32 0.0, %v1397
        %1399 = vmatprep.mubr.bf16.mxu0 0
        %1400 = vmatmul.mubr.bf16.gmra.mrb[0].mxu0 %v1115
        %v1401 = vpop.f32.mrb[0].mxu0
        %v1402 = vadd.f32 0.0, %v1401
        %v1403 = vpop.f32.mrb[0].mxu0
        %v1404 = vadd.f32 0.0, %v1403
        %v1405 = vpop.f32.mrb[0].mxu0
        %v1406 = vadd.f32 0.0, %v1405
        %v1407 = vpop.f32.mrb[0].mxu0
        %v1408 = vadd.f32 0.0, %v1407
        %1409 = vdwg.mxu0
        %v1410 = vadd.f32 %v952, %v1252
        %v1411 = vadd.f32 %v954, %v1254
        %v1412 = vadd.f32 %v956, %v1256
        %v1413 = vadd.f32 %v958, %v1258
        %v1414 = vadd.f32 %v962, %v1262
        %v1415 = vadd.f32 %v964, %v1264
        %v1416 = vadd.f32 %v966, %v1266
        %v1417 = vadd.f32 %v968, %v1268
        %v1418 = vadd.f32 %v972, %v1272
        %v1419 = vadd.f32 %v974, %v1274
        %v1420 = vadd.f32 %v976, %v1276
        %v1421 = vadd.f32 %v978, %v1278
        %v1422 = vadd.f32 %v982, %v1282
        %v1423 = vadd.f32 %v984, %v1284
        %v1424 = vadd.f32 %v986, %v1286
        %v1425 = vadd.f32 %v988, %v1288
        %v1426 = vadd.f32 %v992, %v1292
        %v1427 = vadd.f32 %v994, %v1294
        %v1428 = vadd.f32 %v996, %v1296
        %v1429 = vadd.f32 %v998, %v1298
        %v1430 = vadd.f32 %v1002, %v1302
        %v1431 = vadd.f32 %v1004, %v1304
        %v1432 = vadd.f32 %v1006, %v1306
        %v1433 = vadd.f32 %v1008, %v1308
        %v1434 = vadd.f32 %v1012, %v1312
        %v1435 = vadd.f32 %v1014, %v1314
        %v1436 = vadd.f32 %v1016, %v1316
        %v1437 = vadd.f32 %v1018, %v1318
        %v1438 = vadd.f32 %v1022, %v1322
        %v1439 = vadd.f32 %v1024, %v1324
        %v1440 = vadd.f32 %v1026, %v1326
        %v1441 = vadd.f32 %v1028, %v1328
        %v1442 = vadd.f32 %v1032, %v1332
        %v1443 = vadd.f32 %v1034, %v1334
        %v1444 = vadd.f32 %v1036, %v1336
        %v1445 = vadd.f32 %v1038, %v1338
        %v1446 = vadd.f32 %v1042, %v1342
        %v1447 = vadd.f32 %v1044, %v1344
        %v1448 = vadd.f32 %v1046, %v1346
        %v1449 = vadd.f32 %v1048, %v1348
        %v1450 = vadd.f32 %v1052, %v1352
        %v1451 = vadd.f32 %v1054, %v1354
        %v1452 = vadd.f32 %v1056, %v1356
        %v1453 = vadd.f32 %v1058, %v1358
        %v1454 = vadd.f32 %v1062, %v1362
        %v1455 = vadd.f32 %v1064, %v1364
        %v1456 = vadd.f32 %v1066, %v1366
        %v1457 = vadd.f32 %v1068, %v1368
        %v1458 = vadd.f32 %v1072, %v1372
        %v1459 = vadd.f32 %v1074, %v1374
        %v1460 = vadd.f32 %v1076, %v1376
        %v1461 = vadd.f32 %v1078, %v1378
        %v1462 = vadd.f32 %v1082, %v1382
        %v1463 = vadd.f32 %v1084, %v1384
        %v1464 = vadd.f32 %v1086, %v1386
        %v1465 = vadd.f32 %v1088, %v1388
        %v1466 = vadd.f32 %v1092, %v1392
        %v1467 = vadd.f32 %v1094, %v1394
        %v1468 = vadd.f32 %v1096, %v1396
        %v1469 = vadd.f32 %v1098, %v1398
        %v1470 = vadd.f32 %v1102, %v1402
        %v1471 = vadd.f32 %v1104, %v1404
        %v1472 = vadd.f32 %v1106, %v1406
        %v1473 = vadd.f32 %v1108, %v1408
        %v1475 = vunpack.c.l.b16 %v414
        %v1476 = vpack.c.b16 %v483, %v482
        %v1477 = vpack.c.b16 %v485, %v484
        %v1478 = vpack.c.b16 %v487, %v486
        %v1479 = vpack.c.b16 %v1475, %v488
        %s1484 = scalar_lea.vmem %s1, 384
        %v1485 = vld [vmem:[%s1484] sm:$0xff]
        %v1486 = vld [vmem:[%s1484 + $0x8] sm:$0xff]
        %v1487 = vld [vmem:[%s1484 + $0x10] sm:$0xff]
        %v1488 = vld [vmem:[%s1484 + $0x18] sm:$0xff]
        %v1489 = vld [vmem:[%s1484 + $0x20] sm:$0xff]
        %v1490 = vld [vmem:[%s1484 + $0x28] sm:$0xff]
        %v1491 = vld [vmem:[%s1484 + $0x30] sm:$0xff]
        %v1492 = vld [vmem:[%s1484 + $0x38] sm:$0xff]
        %v1493 = vld [vmem:[%s1484 + $0x40] sm:$0xff]
        %v1494 = vld [vmem:[%s1484 + $0x48] sm:$0xff]
        %v1495 = vld [vmem:[%s1484 + $0x50] sm:$0xff]
        %v1496 = vld [vmem:[%s1484 + $0x58] sm:$0xff]
        %v1497 = vld [vmem:[%s1484 + $0x60] sm:$0xff]
        %v1498 = vld [vmem:[%s1484 + $0x68] sm:$0xff]
        %v1499 = vld [vmem:[%s1484 + $0x70] sm:$0xff]
        %v1500 = vld [vmem:[%s1484 + $0x78] sm:$0xff]
        %v1517 = vunpack.c.l.b16 %v1485
        %v1518 = vunpack.c.h.b16 %v1485
        %v1519 = vunpack.c.l.b16 %v1486
        %v1520 = vunpack.c.h.b16 %v1486
        %v1521 = vunpack.c.l.b16 %v1487
        %v1522 = vunpack.c.h.b16 %v1487
        %v1523 = vunpack.c.l.b16 %v1488
        %v1524 = vunpack.c.h.b16 %v1488
        %v1525 = vunpack.c.l.b16 %v1489
        %v1526 = vunpack.c.h.b16 %v1489
        %v1527 = vunpack.c.l.b16 %v1490
        %v1528 = vunpack.c.h.b16 %v1490
        %v1529 = vunpack.c.l.b16 %v1491
        %v1530 = vunpack.c.h.b16 %v1491
        %v1531 = vunpack.c.l.b16 %v1492
        %v1532 = vunpack.c.h.b16 %v1492
        %v1533 = vunpack.c.l.b16 %v1493
        %v1534 = vunpack.c.h.b16 %v1493
        %v1535 = vunpack.c.l.b16 %v1494
        %v1536 = vunpack.c.h.b16 %v1494
        %v1537 = vunpack.c.l.b16 %v1495
        %v1538 = vunpack.c.h.b16 %v1495
        %v1539 = vunpack.c.l.b16 %v1496
        %v1540 = vunpack.c.h.b16 %v1496
        %v1541 = vunpack.c.l.b16 %v1497
        %v1542 = vunpack.c.h.b16 %v1497
        %v1543 = vunpack.c.l.b16 %v1498
        %v1544 = vunpack.c.h.b16 %v1498
        %v1545 = vunpack.c.l.b16 %v1499
        %v1546 = vunpack.c.h.b16 %v1499
        %v1547 = vunpack.c.l.b16 %v1500
        %v1548 = vunpack.c.h.b16 %v1500
        %v1549 = vpack.c.b16 %v1519, %v1517
        %v1550 = vpack.c.b16 %v1520, %v1518
        %v1551 = vpack.c.b16 %v1523, %v1521
        %v1552 = vpack.c.b16 %v1524, %v1522
        %v1553 = vpack.c.b16 %v1527, %v1525
        %v1554 = vpack.c.b16 %v1528, %v1526
        %v1555 = vpack.c.b16 %v1531, %v1529
        %v1556 = vpack.c.b16 %v1532, %v1530
        %v1557 = vpack.c.b16 %v1535, %v1533
        %v1558 = vpack.c.b16 %v1536, %v1534
        %v1559 = vpack.c.b16 %v1539, %v1537
        %v1560 = vpack.c.b16 %v1540, %v1538
        %v1561 = vpack.c.b16 %v1543, %v1541
        %v1562 = vpack.c.b16 %v1544, %v1542
        %v1563 = vpack.c.b16 %v1547, %v1545
        %v1564 = vpack.c.b16 %v1548, %v1546
        %1581 = vmatprep.subr.bf16.mxu0 %v1550
        %1582 = vmatpush1.bf16.msra.mxu0 %v1549
        %1583 = vmatprep.subr.bf16.mxu0 %v1552
        %1584 = vmatpush1.bf16.msra.mxu0 %v1551
        %1585 = vmatprep.subr.bf16.mxu0 %v1554
        %1586 = vmatpush1.bf16.msra.mxu0 %v1553
        %1587 = vmatprep.subr.bf16.mxu0 %v1556
        %1588 = vmatpush1.bf16.msra.mxu0 %v1555
        %1589 = vmatprep.subr.bf16.mxu0 %v1558
        %1590 = vmatpush1.bf16.msra.mxu0 %v1557
        %1591 = vmatprep.subr.bf16.mxu0 %v1560
        %1592 = vmatpush1.bf16.msra.mxu0 %v1559
        %1593 = vmatprep.subr.bf16.mxu0 %v1562
        %1594 = vmatpush1.bf16.msra.mxu0 %v1561
        %1595 = vmatprep.subr.bf16.mxu0 %v1564
        %1596 = vmatpush1.bf16.msra.mxu0 %v1563
        %1597 = vmatprep.subr.bf16.mxu0 0
        %1598 = vmatpush1.bf16.msra.mxu0 0
        %1599 = vmatprep.subr.bf16.mxu0 0
        %1600 = vmatpush1.bf16.msra.mxu0 0
        %1601 = vmatprep.subr.bf16.mxu0 0
        %1602 = vmatpush1.bf16.msra.mxu0 0
        %1603 = vmatprep.subr.bf16.mxu0 0
        %1604 = vmatpush1.bf16.msra.mxu0 0
        %1605 = vmatprep.subr.bf16.mxu0 0
        %1606 = vmatpush1.bf16.msra.mxu0 0
        %1607 = vmatprep.subr.bf16.mxu0 0
        %1608 = vmatpush1.bf16.msra.mxu0 0
        %1609 = vmatprep.subr.bf16.mxu0 0
        %1610 = vmatpush1.bf16.msra.mxu0 0
        %1611 = vmatprep.subr.bf16.mxu0 0
        %1612 = vmatpush1.bf16.msra.mxu0 0
        %1613 = vmatprep.mubr.bf16.mxu0 0
        %1614 = vmatmul.mubr.bf16.gmra.mrb[0].mxu0 %v513
        %v1615 = vpop.f32.mrb[0].mxu0
        %v1616 = vadd.f32 0.0, %v1615
        %v1617 = vpop.f32.mrb[0].mxu0
        %v1618 = vadd.f32 0.0, %v1617
        %v1619 = vpop.f32.mrb[0].mxu0
        %v1620 = vadd.f32 0.0, %v1619
        %v1621 = vpop.f32.mrb[0].mxu0
        %v1622 = vadd.f32 0.0, %v1621
        %1623 = vmatprep.mubr.bf16.mxu0 0
        %1624 = vmatmul.mubr.bf16.gmra.mrb[0].mxu0 %v514
        %v1625 = vpop.f32.mrb[0].mxu0
        %v1626 = vadd.f32 0.0, %v1625
        %v1627 = vpop.f32.mrb[0].mxu0
        %v1628 = vadd.f32 0.0, %v1627
        %v1629 = vpop.f32.mrb[0].mxu0
        %v1630 = vadd.f32 0.0, %v1629
        %v1631 = vpop.f32.mrb[0].mxu0
        %v1632 = vadd.f32 0.0, %v1631
        %1633 = vmatprep.mubr.bf16.mxu0 0
        %1634 = vmatmul.mubr.bf16.gmra.mrb[0].mxu0 %v515
        %v1635 = vpop.f32.mrb[0].mxu0
        %v1636 = vadd.f32 0.0, %v1635
        %v1637 = vpop.f32.mrb[0].mxu0
        %v1638 = vadd.f32 0.0, %v1637
        %v1639 = vpop.f32.mrb[0].mxu0
        %v1640 = vadd.f32 0.0, %v1639
        %v1641 = vpop.f32.mrb[0].mxu0
        %v1642 = vadd.f32 0.0, %v1641
        %1643 = vmatprep.mubr.bf16.mxu0 0
        %1644 = vmatmul.mubr.bf16.gmra.mrb[0].mxu0 %v516
        %v1645 = vpop.f32.mrb[0].mxu0
        %v1646 = vadd.f32 0.0, %v1645
        %v1647 = vpop.f32.mrb[0].mxu0
        %v1648 = vadd.f32 0.0, %v1647
        %v1649 = vpop.f32.mrb[0].mxu0
        %v1650 = vadd.f32 0.0, %v1649
        %v1651 = vpop.f32.mrb[0].mxu0
        %v1652 = vadd.f32 0.0, %v1651
        %1653 = vmatprep.mubr.bf16.mxu0 0
        %1654 = vmatmul.mubr.bf16.gmra.mrb[0].mxu0 %v539
        %v1655 = vpop.f32.mrb[0].mxu0
        %v1656 = vadd.f32 0.0, %v1655
        %v1657 = vpop.f32.mrb[0].mxu0
        %v1658 = vadd.f32 0.0, %v1657
        %v1659 = vpop.f32.mrb[0].mxu0
        %v1660 = vadd.f32 0.0, %v1659
        %v1661 = vpop.f32.mrb[0].mxu0
        %v1662 = vadd.f32 0.0, %v1661
        %1663 = vmatprep.mubr.bf16.mxu0 0
        %1664 = vmatmul.mubr.bf16.gmra.mrb[0].mxu0 %v540
        %v1665 = vpop.f32.mrb[0].mxu0
        %v1666 = vadd.f32 0.0, %v1665
        %v1667 = vpop.f32.mrb[0].mxu0
        %v1668 = vadd.f32 0.0, %v1667
        %v1669 = vpop.f32.mrb[0].mxu0
        %v1670 = vadd.f32 0.0, %v1669
        %v1671 = vpop.f32.mrb[0].mxu0
        %v1672 = vadd.f32 0.0, %v1671
        %1673 = vmatprep.mubr.bf16.mxu0 0
        %1674 = vmatmul.mubr.bf16.gmra.mrb[0].mxu0 %v541
        %v1675 = vpop.f32.mrb[0].mxu0
        %v1676 = vadd.f32 0.0, %v1675
        %v1677 = vpop.f32.mrb[0].mxu0
        %v1678 = vadd.f32 0.0, %v1677
        %v1679 = vpop.f32.mrb[0].mxu0
        %v1680 = vadd.f32 0.0, %v1679
        %v1681 = vpop.f32.mrb[0].mxu0
        %v1682 = vadd.f32 0.0, %v1681
        %1683 = vmatprep.mubr.bf16.mxu0 0
        %1684 = vmatmul.mubr.bf16.gmra.mrb[0].mxu0 %v542
        %v1685 = vpop.f32.mrb[0].mxu0
        %v1686 = vadd.f32 0.0, %v1685
        %v1687 = vpop.f32.mrb[0].mxu0
        %v1688 = vadd.f32 0.0, %v1687
        %v1689 = vpop.f32.mrb[0].mxu0
        %v1690 = vadd.f32 0.0, %v1689
        %v1691 = vpop.f32.mrb[0].mxu0
        %v1692 = vadd.f32 0.0, %v1691
        %1693 = vmatprep.mubr.bf16.mxu0 0
        %1694 = vmatmul.mubr.bf16.gmra.mrb[0].mxu0 %v1112
        %v1695 = vpop.f32.mrb[0].mxu0
        %v1696 = vadd.f32 0.0, %v1695
        %v1697 = vpop.f32.mrb[0].mxu0
        %v1698 = vadd.f32 0.0, %v1697
        %v1699 = vpop.f32.mrb[0].mxu0
        %v1700 = vadd.f32 0.0, %v1699
        %v1701 = vpop.f32.mrb[0].mxu0
        %v1702 = vadd.f32 0.0, %v1701
        %1703 = vmatprep.mubr.bf16.mxu0 0
        %1704 = vmatmul.mubr.bf16.gmra.mrb[0].mxu0 %v1113
        %v1705 = vpop.f32.mrb[0].mxu0
        %v1706 = vadd.f32 0.0, %v1705
        %v1707 = vpop.f32.mrb[0].mxu0
        %v1708 = vadd.f32 0.0, %v1707
        %v1709 = vpop.f32.mrb[0].mxu0
        %v1710 = vadd.f32 0.0, %v1709
        %v1711 = vpop.f32.mrb[0].mxu0
        %v1712 = vadd.f32 0.0, %v1711
        %1713 = vmatprep.mubr.bf16.mxu0 0
        %1714 = vmatmul.mubr.bf16.gmra.mrb[0].mxu0 %v1114
        %v1715 = vpop.f32.mrb[0].mxu0
        %v1716 = vadd.f32 0.0, %v1715
        %v1717 = vpop.f32.mrb[0].mxu0
        %v1718 = vadd.f32 0.0, %v1717
        %v1719 = vpop.f32.mrb[0].mxu0
        %v1720 = vadd.f32 0.0, %v1719
        %v1721 = vpop.f32.mrb[0].mxu0
        %v1722 = vadd.f32 0.0, %v1721
        %1723 = vmatprep.mubr.bf16.mxu0 0
        %1724 = vmatmul.mubr.bf16.gmra.mrb[0].mxu0 %v1115
        %v1725 = vpop.f32.mrb[0].mxu0
        %v1726 = vadd.f32 0.0, %v1725
        %v1727 = vpop.f32.mrb[0].mxu0
        %v1728 = vadd.f32 0.0, %v1727
        %v1729 = vpop.f32.mrb[0].mxu0
        %v1730 = vadd.f32 0.0, %v1729
        %v1731 = vpop.f32.mrb[0].mxu0
        %v1732 = vadd.f32 0.0, %v1731
        %1733 = vmatprep.mubr.bf16.mxu0 0
        %1734 = vmatmul.mubr.bf16.gmra.mrb[0].mxu0 %v1476
        %v1735 = vpop.f32.mrb[0].mxu0
        %v1736 = vadd.f32 0.0, %v1735
        %v1737 = vpop.f32.mrb[0].mxu0
        %v1738 = vadd.f32 0.0, %v1737
        %v1739 = vpop.f32.mrb[0].mxu0
        %v1740 = vadd.f32 0.0, %v1739
        %v1741 = vpop.f32.mrb[0].mxu0
        %v1742 = vadd.f32 0.0, %v1741
        %1743 = vmatprep.mubr.bf16.mxu0 0
        %1744 = vmatmul.mubr.bf16.gmra.mrb[0].mxu0 %v1477
        %v1745 = vpop.f32.mrb[0].mxu0
        %v1746 = vadd.f32 0.0, %v1745
        %v1747 = vpop.f32.mrb[0].mxu0
        %v1748 = vadd.f32 0.0, %v1747
        %v1749 = vpop.f32.mrb[0].mxu0
        %v1750 = vadd.f32 0.0, %v1749
        %v1751 = vpop.f32.mrb[0].mxu0
        %v1752 = vadd.f32 0.0, %v1751
        %1753 = vmatprep.mubr.bf16.mxu0 0
        %1754 = vmatmul.mubr.bf16.gmra.mrb[0].mxu0 %v1478
        %v1755 = vpop.f32.mrb[0].mxu0
        %v1756 = vadd.f32 0.0, %v1755
        %v1757 = vpop.f32.mrb[0].mxu0
        %v1758 = vadd.f32 0.0, %v1757
        %v1759 = vpop.f32.mrb[0].mxu0
        %v1760 = vadd.f32 0.0, %v1759
        %v1761 = vpop.f32.mrb[0].mxu0
        %v1762 = vadd.f32 0.0, %v1761
        %1763 = vmatprep.mubr.bf16.mxu0 0
        %1764 = vmatmul.mubr.bf16.gmra.mrb[0].mxu0 %v1479
        %v1765 = vpop.f32.mrb[0].mxu0
        %v1766 = vadd.f32 0.0, %v1765
        %v1767 = vpop.f32.mrb[0].mxu0
        %v1768 = vadd.f32 0.0, %v1767
        %v1769 = vpop.f32.mrb[0].mxu0
        %v1770 = vadd.f32 0.0, %v1769
        %v1771 = vpop.f32.mrb[0].mxu0
        %v1772 = vadd.f32 0.0, %v1771
        %1773 = vdwg.mxu0
        %v1774 = vadd.f32 %v1410, %v1616
        %v1775 = vadd.f32 %v1411, %v1618
        %v1776 = vadd.f32 %v1412, %v1620
        %v1777 = vadd.f32 %v1413, %v1622
        %v1778 = vadd.f32 %v1414, %v1626
        %v1779 = vadd.f32 %v1415, %v1628
        %v1780 = vadd.f32 %v1416, %v1630
        %v1781 = vadd.f32 %v1417, %v1632
        %v1782 = vadd.f32 %v1418, %v1636
        %v1783 = vadd.f32 %v1419, %v1638
        %v1784 = vadd.f32 %v1420, %v1640
        %v1785 = vadd.f32 %v1421, %v1642
        %v1786 = vadd.f32 %v1422, %v1646
        %v1787 = vadd.f32 %v1423, %v1648
        %v1788 = vadd.f32 %v1424, %v1650
        %v1789 = vadd.f32 %v1425, %v1652
        %v1790 = vadd.f32 %v1426, %v1656
        %v1791 = vadd.f32 %v1427, %v1658
        %v1792 = vadd.f32 %v1428, %v1660
        %v1793 = vadd.f32 %v1429, %v1662
        %v1794 = vadd.f32 %v1430, %v1666
        %v1795 = vadd.f32 %v1431, %v1668
        %v1796 = vadd.f32 %v1432, %v1670
        %v1797 = vadd.f32 %v1433, %v1672
        %v1798 = vadd.f32 %v1434, %v1676
        %v1799 = vadd.f32 %v1435, %v1678
        %v1800 = vadd.f32 %v1436, %v1680
        %v1801 = vadd.f32 %v1437, %v1682
        %v1802 = vadd.f32 %v1438, %v1686
        %v1803 = vadd.f32 %v1439, %v1688
        %v1804 = vadd.f32 %v1440, %v1690
        %v1805 = vadd.f32 %v1441, %v1692
        %v1806 = vadd.f32 %v1442, %v1696
        %v1807 = vadd.f32 %v1443, %v1698
        %v1808 = vadd.f32 %v1444, %v1700
        %v1809 = vadd.f32 %v1445, %v1702
        %v1810 = vadd.f32 %v1446, %v1706
        %v1811 = vadd.f32 %v1447, %v1708
        %v1812 = vadd.f32 %v1448, %v1710
        %v1813 = vadd.f32 %v1449, %v1712
        %v1814 = vadd.f32 %v1450, %v1716
        %v1815 = vadd.f32 %v1451, %v1718
        %v1816 = vadd.f32 %v1452, %v1720
        %v1817 = vadd.f32 %v1453, %v1722
        %v1818 = vadd.f32 %v1454, %v1726
        %v1819 = vadd.f32 %v1455, %v1728
        %v1820 = vadd.f32 %v1456, %v1730
        %v1821 = vadd.f32 %v1457, %v1732
        %v1822 = vadd.f32 %v1458, %v1736
        %v1823 = vadd.f32 %v1459, %v1738
        %v1824 = vadd.f32 %v1460, %v1740
        %v1825 = vadd.f32 %v1461, %v1742
        %v1826 = vadd.f32 %v1462, %v1746
        %v1827 = vadd.f32 %v1463, %v1748
        %v1828 = vadd.f32 %v1464, %v1750
        %v1829 = vadd.f32 %v1465, %v1752
        %v1830 = vadd.f32 %v1466, %v1756
        %v1831 = vadd.f32 %v1467, %v1758
        %v1832 = vadd.f32 %v1468, %v1760
        %v1833 = vadd.f32 %v1469, %v1762
        %v1834 = vadd.f32 %v1470, %v1766
        %v1835 = vadd.f32 %v1471, %v1768
        %v1836 = vadd.f32 %v1472, %v1770
        %v1837 = vadd.f32 %v1473, %v1772
        %v1839 = vunpack.c.l.b16 %v424
        %v1840 = vpack.c.b16 %v507, %v506
        %v1841 = vpack.c.b16 %v509, %v508
        %v1842 = vpack.c.b16 %v511, %v510
        %v1843 = vpack.c.b16 %v1839, %v512
        %s1848 = scalar_lea.vmem %s1, 512
        %v1849 = vld [vmem:[%s1848] sm:$0xff]
        %v1850 = vld [vmem:[%s1848 + $0x8] sm:$0xff]
        %v1851 = vld [vmem:[%s1848 + $0x10] sm:$0xff]
        %v1852 = vld [vmem:[%s1848 + $0x18] sm:$0xff]
        %v1853 = vld [vmem:[%s1848 + $0x20] sm:$0xff]
        %v1854 = vld [vmem:[%s1848 + $0x28] sm:$0xff]
        %v1855 = vld [vmem:[%s1848 + $0x30] sm:$0xff]
        %v1856 = vld [vmem:[%s1848 + $0x38] sm:$0xff]
        %v1857 = vld [vmem:[%s1848 + $0x40] sm:$0xff]
        %v1858 = vld [vmem:[%s1848 + $0x48] sm:$0xff]
        %v1859 = vld [vmem:[%s1848 + $0x50] sm:$0xff]
        %v1860 = vld [vmem:[%s1848 + $0x58] sm:$0xff]
        %v1861 = vld [vmem:[%s1848 + $0x60] sm:$0xff]
        %v1862 = vld [vmem:[%s1848 + $0x68] sm:$0xff]
        %v1863 = vld [vmem:[%s1848 + $0x70] sm:$0xff]
        %v1864 = vld [vmem:[%s1848 + $0x78] sm:$0xff]
        %v1881 = vunpack.c.l.b16 %v1849
        %v1882 = vunpack.c.h.b16 %v1849
        %v1883 = vunpack.c.l.b16 %v1850
        %v1884 = vunpack.c.h.b16 %v1850
        %v1885 = vunpack.c.l.b16 %v1851
        %v1886 = vunpack.c.h.b16 %v1851
        %v1887 = vunpack.c.l.b16 %v1852
        %v1888 = vunpack.c.h.b16 %v1852
        %v1889 = vunpack.c.l.b16 %v1853
        %v1890 = vunpack.c.h.b16 %v1853
        %v1891 = vunpack.c.l.b16 %v1854
        %v1892 = vunpack.c.h.b16 %v1854
        %v1893 = vunpack.c.l.b16 %v1855
        %v1894 = vunpack.c.h.b16 %v1855
        %v1895 = vunpack.c.l.b16 %v1856
        %v1896 = vunpack.c.h.b16 %v1856
        %v1897 = vunpack.c.l.b16 %v1857
        %v1898 = vunpack.c.h.b16 %v1857
        %v1899 = vunpack.c.l.b16 %v1858
        %v1900 = vunpack.c.h.b16 %v1858
        %v1901 = vunpack.c.l.b16 %v1859
        %v1902 = vunpack.c.h.b16 %v1859
        %v1903 = vunpack.c.l.b16 %v1860
        %v1904 = vunpack.c.h.b16 %v1860
        %v1905 = vunpack.c.l.b16 %v1861
        %v1906 = vunpack.c.h.b16 %v1861
        %v1907 = vunpack.c.l.b16 %v1862
        %v1908 = vunpack.c.h.b16 %v1862
        %v1909 = vunpack.c.l.b16 %v1863
        %v1910 = vunpack.c.h.b16 %v1863
        %v1911 = vunpack.c.l.b16 %v1864
        %v1912 = vunpack.c.h.b16 %v1864
        %v1913 = vpack.c.b16 %v1883, %v1881
        %v1914 = vpack.c.b16 %v1884, %v1882
        %v1915 = vpack.c.b16 %v1887, %v1885
        %v1916 = vpack.c.b16 %v1888, %v1886
        %v1917 = vpack.c.b16 %v1891, %v1889
        %v1918 = vpack.c.b16 %v1892, %v1890
        %v1919 = vpack.c.b16 %v1895, %v1893
        %v1920 = vpack.c.b16 %v1896, %v1894
        %v1921 = vpack.c.b16 %v1899, %v1897
        %v1922 = vpack.c.b16 %v1900, %v1898
        %v1923 = vpack.c.b16 %v1903, %v1901
        %v1924 = vpack.c.b16 %v1904, %v1902
        %v1925 = vpack.c.b16 %v1907, %v1905
        %v1926 = vpack.c.b16 %v1908, %v1906
        %v1927 = vpack.c.b16 %v1911, %v1909
        %v1928 = vpack.c.b16 %v1912, %v1910
        %1945 = vmatprep.subr.bf16.mxu0 %v1914
        %1946 = vmatpush1.bf16.msra.mxu0 %v1913
        %1947 = vmatprep.subr.bf16.mxu0 %v1916
        %1948 = vmatpush1.bf16.msra.mxu0 %v1915
        %1949 = vmatprep.subr.bf16.mxu0 %v1918
        %1950 = vmatpush1.bf16.msra.mxu0 %v1917
        %1951 = vmatprep.subr.bf16.mxu0 %v1920
        %1952 = vmatpush1.bf16.msra.mxu0 %v1919
        %1953 = vmatprep.subr.bf16.mxu0 %v1922
        %1954 = vmatpush1.bf16.msra.mxu0 %v1921
        %1955 = vmatprep.subr.bf16.mxu0 %v1924
        %1956 = vmatpush1.bf16.msra.mxu0 %v1923
        %1957 = vmatprep.subr.bf16.mxu0 %v1926
        %1958 = vmatpush1.bf16.msra.mxu0 %v1925
        %1959 = vmatprep.subr.bf16.mxu0 %v1928
        %1960 = vmatpush1.bf16.msra.mxu0 %v1927
        %1961 = vmatprep.subr.bf16.mxu0 0
        %1962 = vmatpush1.bf16.msra.mxu0 0
        %1963 = vmatprep.subr.bf16.mxu0 0
        %1964 = vmatpush1.bf16.msra.mxu0 0
        %1965 = vmatprep.subr.bf16.mxu0 0
        %1966 = vmatpush1.bf16.msra.mxu0 0
        %1967 = vmatprep.subr.bf16.mxu0 0
        %1968 = vmatpush1.bf16.msra.mxu0 0
        %1969 = vmatprep.subr.bf16.mxu0 0
        %1970 = vmatpush1.bf16.msra.mxu0 0
        %1971 = vmatprep.subr.bf16.mxu0 0
        %1972 = vmatpush1.bf16.msra.mxu0 0
        %1973 = vmatprep.subr.bf16.mxu0 0
        %1974 = vmatpush1.bf16.msra.mxu0 0
        %1975 = vmatprep.subr.bf16.mxu0 0
        %1976 = vmatpush1.bf16.msra.mxu0 0
        %1977 = vmatprep.mubr.bf16.mxu0 0
        %1978 = vmatmul.mubr.bf16.gmra.mrb[0].mxu0 %v539
        %v1979 = vpop.f32.mrb[0].mxu0
        %v1980 = vadd.f32 0.0, %v1979
        %v1981 = vpop.f32.mrb[0].mxu0
        %v1982 = vadd.f32 0.0, %v1981
        %v1983 = vpop.f32.mrb[0].mxu0
        %v1984 = vadd.f32 0.0, %v1983
        %v1985 = vpop.f32.mrb[0].mxu0
        %v1986 = vadd.f32 0.0, %v1985
        %1987 = vmatprep.mubr.bf16.mxu0 0
        %1988 = vmatmul.mubr.bf16.gmra.mrb[0].mxu0 %v540
        %v1989 = vpop.f32.mrb[0].mxu0
        %v1990 = vadd.f32 0.0, %v1989
        %v1991 = vpop.f32.mrb[0].mxu0
        %v1992 = vadd.f32 0.0, %v1991
        %v1993 = vpop.f32.mrb[0].mxu0
        %v1994 = vadd.f32 0.0, %v1993
        %v1995 = vpop.f32.mrb[0].mxu0
        %v1996 = vadd.f32 0.0, %v1995
        %1997 = vmatprep.mubr.bf16.mxu0 0
        %1998 = vmatmul.mubr.bf16.gmra.mrb[0].mxu0 %v541
        %v1999 = vpop.f32.mrb[0].mxu0
        %v2000 = vadd.f32 0.0, %v1999
        %v2001 = vpop.f32.mrb[0].mxu0
        %v2002 = vadd.f32 0.0, %v2001
        %v2003 = vpop.f32.mrb[0].mxu0
        %v2004 = vadd.f32 0.0, %v2003
        %v2005 = vpop.f32.mrb[0].mxu0
        %v2006 = vadd.f32 0.0, %v2005
        %2007 = vmatprep.mubr.bf16.mxu0 0
        %2008 = vmatmul.mubr.bf16.gmra.mrb[0].mxu0 %v542
        %v2009 = vpop.f32.mrb[0].mxu0
        %v2010 = vadd.f32 0.0, %v2009
        %v2011 = vpop.f32.mrb[0].mxu0
        %v2012 = vadd.f32 0.0, %v2011
        %v2013 = vpop.f32.mrb[0].mxu0
        %v2014 = vadd.f32 0.0, %v2013
        %v2015 = vpop.f32.mrb[0].mxu0
        %v2016 = vadd.f32 0.0, %v2015
        %2017 = vmatprep.mubr.bf16.mxu0 0
        %2018 = vmatmul.mubr.bf16.gmra.mrb[0].mxu0 %v1112
        %v2019 = vpop.f32.mrb[0].mxu0
        %v2020 = vadd.f32 0.0, %v2019
        %v2021 = vpop.f32.mrb[0].mxu0
        %v2022 = vadd.f32 0.0, %v2021
        %v2023 = vpop.f32.mrb[0].mxu0
        %v2024 = vadd.f32 0.0, %v2023
        %v2025 = vpop.f32.mrb[0].mxu0
        %v2026 = vadd.f32 0.0, %v2025
        %2027 = vmatprep.mubr.bf16.mxu0 0
        %2028 = vmatmul.mubr.bf16.gmra.mrb[0].mxu0 %v1113
        %v2029 = vpop.f32.mrb[0].mxu0
        %v2030 = vadd.f32 0.0, %v2029
        %v2031 = vpop.f32.mrb[0].mxu0
        %v2032 = vadd.f32 0.0, %v2031
        %v2033 = vpop.f32.mrb[0].mxu0
        %v2034 = vadd.f32 0.0, %v2033
        %v2035 = vpop.f32.mrb[0].mxu0
        %v2036 = vadd.f32 0.0, %v2035
        %2037 = vmatprep.mubr.bf16.mxu0 0
        %2038 = vmatmul.mubr.bf16.gmra.mrb[0].mxu0 %v1114
        %v2039 = vpop.f32.mrb[0].mxu0
        %v2040 = vadd.f32 0.0, %v2039
        %v2041 = vpop.f32.mrb[0].mxu0
        %v2042 = vadd.f32 0.0, %v2041
        %v2043 = vpop.f32.mrb[0].mxu0
        %v2044 = vadd.f32 0.0, %v2043
        %v2045 = vpop.f32.mrb[0].mxu0
        %v2046 = vadd.f32 0.0, %v2045
        %2047 = vmatprep.mubr.bf16.mxu0 0
        %2048 = vmatmul.mubr.bf16.gmra.mrb[0].mxu0 %v1115
        %v2049 = vpop.f32.mrb[0].mxu0
        %v2050 = vadd.f32 0.0, %v2049
        %v2051 = vpop.f32.mrb[0].mxu0
        %v2052 = vadd.f32 0.0, %v2051
        %v2053 = vpop.f32.mrb[0].mxu0
        %v2054 = vadd.f32 0.0, %v2053
        %v2055 = vpop.f32.mrb[0].mxu0
        %v2056 = vadd.f32 0.0, %v2055
        %2057 = vmatprep.mubr.bf16.mxu0 0
        %2058 = vmatmul.mubr.bf16.gmra.mrb[0].mxu0 %v1476
        %v2059 = vpop.f32.mrb[0].mxu0
        %v2060 = vadd.f32 0.0, %v2059
        %v2061 = vpop.f32.mrb[0].mxu0
        %v2062 = vadd.f32 0.0, %v2061
        %v2063 = vpop.f32.mrb[0].mxu0
        %v2064 = vadd.f32 0.0, %v2063
        %v2065 = vpop.f32.mrb[0].mxu0
        %v2066 = vadd.f32 0.0, %v2065
        %2067 = vmatprep.mubr.bf16.mxu0 0
        %2068 = vmatmul.mubr.bf16.gmra.mrb[0].mxu0 %v1477
        %v2069 = vpop.f32.mrb[0].mxu0
        %v2070 = vadd.f32 0.0, %v2069
        %v2071 = vpop.f32.mrb[0].mxu0
        %v2072 = vadd.f32 0.0, %v2071
        %v2073 = vpop.f32.mrb[0].mxu0
        %v2074 = vadd.f32 0.0, %v2073
        %v2075 = vpop.f32.mrb[0].mxu0
        %v2076 = vadd.f32 0.0, %v2075
        %2077 = vmatprep.mubr.bf16.mxu0 0
        %2078 = vmatmul.mubr.bf16.gmra.mrb[0].mxu0 %v1478
        %v2079 = vpop.f32.mrb[0].mxu0
        %v2080 = vadd.f32 0.0, %v2079
        %v2081 = vpop.f32.mrb[0].mxu0
        %v2082 = vadd.f32 0.0, %v2081
        %v2083 = vpop.f32.mrb[0].mxu0
        %v2084 = vadd.f32 0.0, %v2083
        %v2085 = vpop.f32.mrb[0].mxu0
        %v2086 = vadd.f32 0.0, %v2085
        %2087 = vmatprep.mubr.bf16.mxu0 0
        %2088 = vmatmul.mubr.bf16.gmra.mrb[0].mxu0 %v1479
        %v2089 = vpop.f32.mrb[0].mxu0
        %v2090 = vadd.f32 0.0, %v2089
        %v2091 = vpop.f32.mrb[0].mxu0
        %v2092 = vadd.f32 0.0, %v2091
        %v2093 = vpop.f32.mrb[0].mxu0
        %v2094 = vadd.f32 0.0, %v2093
        %v2095 = vpop.f32.mrb[0].mxu0
        %v2096 = vadd.f32 0.0, %v2095
        %2097 = vmatprep.mubr.bf16.mxu0 0
        %2098 = vmatmul.mubr.bf16.gmra.mrb[0].mxu0 %v1840
        %v2099 = vpop.f32.mrb[0].mxu0
        %v2100 = vadd.f32 0.0, %v2099
        %v2101 = vpop.f32.mrb[0].mxu0
        %v2102 = vadd.f32 0.0, %v2101
        %v2103 = vpop.f32.mrb[0].mxu0
        %v2104 = vadd.f32 0.0, %v2103
        %v2105 = vpop.f32.mrb[0].mxu0
        %v2106 = vadd.f32 0.0, %v2105
        %2107 = vmatprep.mubr.bf16.mxu0 0
        %2108 = vmatmul.mubr.bf16.gmra.mrb[0].mxu0 %v1841
        %v2109 = vpop.f32.mrb[0].mxu0
        %v2110 = vadd.f32 0.0, %v2109
        %v2111 = vpop.f32.mrb[0].mxu0
        %v2112 = vadd.f32 0.0, %v2111
        %v2113 = vpop.f32.mrb[0].mxu0
        %v2114 = vadd.f32 0.0, %v2113
        %v2115 = vpop.f32.mrb[0].mxu0
        %v2116 = vadd.f32 0.0, %v2115
        %2117 = vmatprep.mubr.bf16.mxu0 0
        %2118 = vmatmul.mubr.bf16.gmra.mrb[0].mxu0 %v1842
        %v2119 = vpop.f32.mrb[0].mxu0
        %v2120 = vadd.f32 0.0, %v2119
        %v2121 = vpop.f32.mrb[0].mxu0
        %v2122 = vadd.f32 0.0, %v2121
        %v2123 = vpop.f32.mrb[0].mxu0
        %v2124 = vadd.f32 0.0, %v2123
        %v2125 = vpop.f32.mrb[0].mxu0
        %v2126 = vadd.f32 0.0, %v2125
        %2127 = vmatprep.mubr.bf16.mxu0 0
        %2128 = vmatmul.mubr.bf16.gmra.mrb[0].mxu0 %v1843
        %v2129 = vpop.f32.mrb[0].mxu0
        %v2130 = vadd.f32 0.0, %v2129
        %v2131 = vpop.f32.mrb[0].mxu0
        %v2132 = vadd.f32 0.0, %v2131
        %v2133 = vpop.f32.mrb[0].mxu0
        %v2134 = vadd.f32 0.0, %v2133
        %v2135 = vpop.f32.mrb[0].mxu0
        %v2136 = vadd.f32 0.0, %v2135
        %2137 = vdwg.mxu0
        %v2138 = vadd.f32 %v1774, %v1980
        %v2139 = vadd.f32 %v1775, %v1982
        %v2140 = vadd.f32 %v1776, %v1984
        %v2141 = vadd.f32 %v1777, %v1986
        %v2142 = vadd.f32 %v1778, %v1990
        %v2143 = vadd.f32 %v1779, %v1992
        %v2144 = vadd.f32 %v1780, %v1994
        %v2145 = vadd.f32 %v1781, %v1996
        %v2146 = vadd.f32 %v1782, %v2000
        %v2147 = vadd.f32 %v1783, %v2002
        %v2148 = vadd.f32 %v1784, %v2004
        %v2149 = vadd.f32 %v1785, %v2006
        %v2150 = vadd.f32 %v1786, %v2010
        %v2151 = vadd.f32 %v1787, %v2012
        %v2152 = vadd.f32 %v1788, %v2014
        %v2153 = vadd.f32 %v1789, %v2016
        %v2154 = vadd.f32 %v1790, %v2020
        %v2155 = vadd.f32 %v1791, %v2022
        %v2156 = vadd.f32 %v1792, %v2024
        %v2157 = vadd.f32 %v1793, %v2026
        %v2158 = vadd.f32 %v1794, %v2030
        %v2159 = vadd.f32 %v1795, %v2032
        %v2160 = vadd.f32 %v1796, %v2034
        %v2161 = vadd.f32 %v1797, %v2036
        %v2162 = vadd.f32 %v1798, %v2040
        %v2163 = vadd.f32 %v1799, %v2042
        %v2164 = vadd.f32 %v1800, %v2044
        %v2165 = vadd.f32 %v1801, %v2046
        %v2166 = vadd.f32 %v1802, %v2050
        %v2167 = vadd.f32 %v1803, %v2052
        %v2168 = vadd.f32 %v1804, %v2054
        %v2169 = vadd.f32 %v1805, %v2056
        %v2170 = vadd.f32 %v1806, %v2060
        %v2171 = vadd.f32 %v1807, %v2062
        %v2172 = vadd.f32 %v1808, %v2064
        %v2173 = vadd.f32 %v1809, %v2066
        %v2174 = vadd.f32 %v1810, %v2070
        %v2175 = vadd.f32 %v1811, %v2072
        %v2176 = vadd.f32 %v1812, %v2074
        %v2177 = vadd.f32 %v1813, %v2076
        %v2178 = vadd.f32 %v1814, %v2080
        %v2179 = vadd.f32 %v1815, %v2082
        %v2180 = vadd.f32 %v1816, %v2084
        %v2181 = vadd.f32 %v1817, %v2086
        %v2182 = vadd.f32 %v1818, %v2090
        %v2183 = vadd.f32 %v1819, %v2092
        %v2184 = vadd.f32 %v1820, %v2094
        %v2185 = vadd.f32 %v1821, %v2096
        %v2186 = vadd.f32 %v1822, %v2100
        %v2187 = vadd.f32 %v1823, %v2102
        %v2188 = vadd.f32 %v1824, %v2104
        %v2189 = vadd.f32 %v1825, %v2106
        %v2190 = vadd.f32 %v1826, %v2110
        %v2191 = vadd.f32 %v1827, %v2112
        %v2192 = vadd.f32 %v1828, %v2114
        %v2193 = vadd.f32 %v1829, %v2116
        %v2194 = vadd.f32 %v1830, %v2120
        %v2195 = vadd.f32 %v1831, %v2122
        %v2196 = vadd.f32 %v1832, %v2124
        %v2197 = vadd.f32 %v1833, %v2126
        %v2198 = vadd.f32 %v1834, %v2130
        %v2199 = vadd.f32 %v1835, %v2132
        %v2200 = vadd.f32 %v1836, %v2134
        %v2201 = vadd.f32 %v1837, %v2136
        %v2202 = vmax.f32 %v2138, %v2154
        %v2203 = vmax.f32 %v2139, %v2155
        %v2204 = vmax.f32 %v2140, %v2156
        %v2205 = vmax.f32 %v2141, %v2157
        %v2206 = vmax.f32 %v2142, %v2158
        %v2207 = vmax.f32 %v2143, %v2159
        %v2208 = vmax.f32 %v2144, %v2160
        %v2209 = vmax.f32 %v2145, %v2161
        %v2210 = vmax.f32 %v2146, %v2162
        %v2211 = vmax.f32 %v2147, %v2163
        %v2212 = vmax.f32 %v2148, %v2164
        %v2213 = vmax.f32 %v2149, %v2165
        %v2214 = vmax.f32 %v2150, %v2166
        %v2215 = vmax.f32 %v2151, %v2167
        %v2216 = vmax.f32 %v2152, %v2168
        %v2217 = vmax.f32 %v2153, %v2169
        %v2218 = vmax.f32 %v2170, %v2186
        %v2219 = vmax.f32 %v2171, %v2187
        %v2220 = vmax.f32 %v2172, %v2188
        %v2221 = vmax.f32 %v2173, %v2189
        %v2222 = vmax.f32 %v2174, %v2190
        %v2223 = vmax.f32 %v2175, %v2191
        %v2224 = vmax.f32 %v2176, %v2192
        %v2225 = vmax.f32 %v2177, %v2193
        %v2226 = vmax.f32 %v2178, %v2194
        %v2227 = vmax.f32 %v2179, %v2195
        %v2228 = vmax.f32 %v2180, %v2196
        %v2229 = vmax.f32 %v2181, %v2197
        %v2230 = vmax.f32 %v2182, %v2198
        %v2231 = vmax.f32 %v2183, %v2199
        %v2232 = vmax.f32 %v2184, %v2200
        %v2233 = vmax.f32 %v2185, %v2201
        %v2234 = vld [vmem:[%s2] sm:$0x1]
        %v2235 = vmax.f32 %v2202, %v2203
        %v2236 = vmax.f32 %v2204, %v2205
        %v2237 = vmax.f32 %v2206, %v2207
        %v2238 = vmax.f32 %v2208, %v2209
        %v2239 = vmax.f32 %v2210, %v2211
        %v2240 = vmax.f32 %v2212, %v2213
        %v2241 = vmax.f32 %v2214, %v2215
        %v2242 = vmax.f32 %v2216, %v2217
        %v2244 = vlaneseq
        %v2245 = vshrl.u32 %v2244, 7
        %v2246 = vsub.s32 0, %v2245
        %v2247 = vrot.slane %v2234, %v2246
        %v2249 = vadd.f32 %v2235, %v2247
        %v2250 = vadd.f32 %v2236, %v2247
        %v2251 = vadd.f32 %v2237, %v2247
        %v2252 = vadd.f32 %v2238, %v2247
        %v2253 = vadd.f32 %v2239, %v2247
        %v2254 = vadd.f32 %v2240, %v2247
        %v2255 = vadd.f32 %v2241, %v2247
        %v2256 = vadd.f32 %v2242, %v2247
        %v2257 = vmax.f32 %v2249, 0.0
        %v2258 = vmax.f32 %v2250, 0.0
        %v2259 = vmax.f32 %v2251, 0.0
        %v2260 = vmax.f32 %v2252, 0.0
        %v2261 = vmax.f32 %v2253, 0.0
        %v2262 = vmax.f32 %v2254, 0.0
        %v2263 = vmax.f32 %v2255, 0.0
        %v2264 = vmax.f32 %v2256, 0.0
        %v2265 = vmax.f32 %v2218, %v2219
        %v2266 = vmax.f32 %v2220, %v2221
        %v2267 = vmax.f32 %v2222, %v2223
        %v2268 = vmax.f32 %v2224, %v2225
        %v2269 = vmax.f32 %v2226, %v2227
        %v2270 = vmax.f32 %v2228, %v2229
        %v2271 = vmax.f32 %v2230, %v2231
        %v2272 = vmax.f32 %v2232, %v2233
        %v2273 = vadd.f32 %v2265, %v2247
        %v2274 = vadd.f32 %v2266, %v2247
        %v2275 = vadd.f32 %v2267, %v2247
        %v2276 = vadd.f32 %v2268, %v2247
        %v2277 = vadd.f32 %v2269, %v2247
        %v2278 = vadd.f32 %v2270, %v2247
        %v2279 = vadd.f32 %v2271, %v2247
        %v2280 = vadd.f32 %v2272, %v2247
        %v2281 = vmax.f32 %v2273, 0.0
        %v2282 = vmax.f32 %v2274, 0.0
        %v2283 = vmax.f32 %v2275, 0.0
        %v2284 = vmax.f32 %v2276, 0.0
        %v2285 = vmax.f32 %v2277, 0.0
        %v2286 = vmax.f32 %v2278, 0.0
        %v2287 = vmax.f32 %v2279, 0.0
        %v2288 = vmax.f32 %v2280, 0.0
        %v2289 = vpack.c.bf16 %v2258, %v2257
        %v2290 = vpack.c.bf16 %v2260, %v2259
        %v2291 = vpack.c.bf16 %v2262, %v2261
        %v2292 = vpack.c.bf16 %v2264, %v2263
        %v2293 = vpack.c.bf16 0.0, 0.0
        %v2294 = vpack.c.bf16 %v2282, %v2281
        %v2295 = vpack.c.bf16 %v2284, %v2283
        %v2296 = vpack.c.bf16 %v2286, %v2285
        %v2297 = vpack.c.bf16 %v2288, %v2287
        %v2298 = vld [vmem:[%s3] sm:$0xff]
        %v2299 = vld [vmem:[%s3 + $0x8] sm:$0xff]
        %v2300 = vld [vmem:[%s3 + $0x10] sm:$0xff]
        %v2301 = vld [vmem:[%s3 + $0x18] sm:$0xff]
        %v2302 = vld [vmem:[%s3 + $0x20] sm:$0xff]
        %v2303 = vld [vmem:[%s3 + $0x28] sm:$0xff]
        %v2304 = vld [vmem:[%s3 + $0x30] sm:$0xff]
        %v2305 = vld [vmem:[%s3 + $0x38] sm:$0xff]
        %v2306 = vld [vmem:[%s3 + $0x40] sm:$0xff]
        %v2307 = vld [vmem:[%s3 + $0x48] sm:$0xff]
        %v2308 = vld [vmem:[%s3 + $0x50] sm:$0xff]
        %v2309 = vld [vmem:[%s3 + $0x58] sm:$0xff]
        %v2310 = vld [vmem:[%s3 + $0x60] sm:$0xff]
        %v2311 = vld [vmem:[%s3 + $0x68] sm:$0xff]
        %v2312 = vld [vmem:[%s3 + $0x70] sm:$0xff]
        %v2313 = vld [vmem:[%s3 + $0x78] sm:$0xff]
        %vm2319 = vcmask 1043456
        %v2320 = vrot.slane %v2289, 4
        %v2321 = vrot.slane %v2290, 4
        %v2322 = vsel %vm2319, %v2320, %v2321
        %v2323 = vrot.slane %v2291, 4
        %v2324 = vsel %vm2319, %v2321, %v2323
        %v2325 = vrot.slane %v2292, 4
        %v2326 = vsel %vm2319, %v2323, %v2325
        %v2327 = vrot.slane %v2293, 4
        %v2328 = vsel %vm2319, %v2325, %v2327
        %s2333 = scalar_lea.vmem %s3, 128
        %v2334 = vld [vmem:[%s2333] sm:$0xff]
        %v2335 = vld [vmem:[%s2333 + $0x8] sm:$0xff]
        %v2336 = vld [vmem:[%s2333 + $0x10] sm:$0xff]
        %v2337 = vld [vmem:[%s2333 + $0x18] sm:$0xff]
        %v2338 = vld [vmem:[%s2333 + $0x20] sm:$0xff]
        %v2339 = vld [vmem:[%s2333 + $0x28] sm:$0xff]
        %v2340 = vld [vmem:[%s2333 + $0x30] sm:$0xff]
        %v2341 = vld [vmem:[%s2333 + $0x38] sm:$0xff]
        %v2342 = vld [vmem:[%s2333 + $0x40] sm:$0xff]
        %v2343 = vld [vmem:[%s2333 + $0x48] sm:$0xff]
        %v2344 = vld [vmem:[%s2333 + $0x50] sm:$0xff]
        %v2345 = vld [vmem:[%s2333 + $0x58] sm:$0xff]
        %v2346 = vld [vmem:[%s2333 + $0x60] sm:$0xff]
        %v2347 = vld [vmem:[%s2333 + $0x68] sm:$0xff]
        %v2348 = vld [vmem:[%s2333 + $0x70] sm:$0xff]
        %v2349 = vld [vmem:[%s2333 + $0x78] sm:$0xff]
        %v2366 = vunpack.c.l.b16 %v2334
        %v2367 = vunpack.c.h.b16 %v2334
        %v2368 = vunpack.c.l.b16 %v2335
        %v2369 = vunpack.c.h.b16 %v2335
        %v2370 = vunpack.c.l.b16 %v2336
        %v2371 = vunpack.c.h.b16 %v2336
        %v2372 = vunpack.c.l.b16 %v2337
        %v2373 = vunpack.c.h.b16 %v2337
        %v2374 = vunpack.c.l.b16 %v2338
        %v2375 = vunpack.c.h.b16 %v2338
        %v2376 = vunpack.c.l.b16 %v2339
        %v2377 = vunpack.c.h.b16 %v2339
        %v2378 = vunpack.c.l.b16 %v2340
        %v2379 = vunpack.c.h.b16 %v2340
        %v2380 = vunpack.c.l.b16 %v2341
        %v2381 = vunpack.c.h.b16 %v2341
        %v2382 = vunpack.c.l.b16 %v2342
        %v2383 = vunpack.c.h.b16 %v2342
        %v2384 = vunpack.c.l.b16 %v2343
        %v2385 = vunpack.c.h.b16 %v2343
        %v2386 = vunpack.c.l.b16 %v2344
        %v2387 = vunpack.c.h.b16 %v2344
        %v2388 = vunpack.c.l.b16 %v2345
        %v2389 = vunpack.c.h.b16 %v2345
        %v2390 = vunpack.c.l.b16 %v2346
        %v2391 = vunpack.c.h.b16 %v2346
        %v2392 = vunpack.c.l.b16 %v2347
        %v2393 = vunpack.c.h.b16 %v2347
        %v2394 = vunpack.c.l.b16 %v2348
        %v2395 = vunpack.c.h.b16 %v2348
        %v2396 = vunpack.c.l.b16 %v2349
        %v2397 = vunpack.c.h.b16 %v2349
        %v2398 = vpack.c.b16 %v2368, %v2366
        %v2399 = vpack.c.b16 %v2369, %v2367
        %v2400 = vpack.c.b16 %v2372, %v2370
        %v2401 = vpack.c.b16 %v2373, %v2371
        %v2402 = vpack.c.b16 %v2376, %v2374
        %v2403 = vpack.c.b16 %v2377, %v2375
        %v2404 = vpack.c.b16 %v2380, %v2378
        %v2405 = vpack.c.b16 %v2381, %v2379
        %v2406 = vpack.c.b16 %v2384, %v2382
        %v2407 = vpack.c.b16 %v2385, %v2383
        %v2408 = vpack.c.b16 %v2388, %v2386
        %v2409 = vpack.c.b16 %v2389, %v2387
        %v2410 = vpack.c.b16 %v2392, %v2390
        %v2411 = vpack.c.b16 %v2393, %v2391
        %v2412 = vpack.c.b16 %v2396, %v2394
        %v2413 = vpack.c.b16 %v2397, %v2395
        %2430 = vmatprep.subr.bf16.mxu0 %v2399
        %2431 = vmatpush1.bf16.msra.mxu0 %v2398
        %2432 = vmatprep.subr.bf16.mxu0 %v2401
        %2433 = vmatpush1.bf16.msra.mxu0 %v2400
        %2434 = vmatprep.subr.bf16.mxu0 %v2403
        %2435 = vmatpush1.bf16.msra.mxu0 %v2402
        %2436 = vmatprep.subr.bf16.mxu0 %v2405
        %2437 = vmatpush1.bf16.msra.mxu0 %v2404
        %2438 = vmatprep.subr.bf16.mxu0 %v2407
        %2439 = vmatpush1.bf16.msra.mxu0 %v2406
        %2440 = vmatprep.subr.bf16.mxu0 %v2409
        %2441 = vmatpush1.bf16.msra.mxu0 %v2408
        %2442 = vmatprep.subr.bf16.mxu0 %v2411
        %2443 = vmatpush1.bf16.msra.mxu0 %v2410
        %2444 = vmatprep.subr.bf16.mxu0 %v2413
        %2445 = vmatpush1.bf16.msra.mxu0 %v2412
        %2446 = vmatprep.subr.bf16.mxu0 0
        %2447 = vmatpush1.bf16.msra.mxu0 0
        %2448 = vmatprep.subr.bf16.mxu0 0
        %2449 = vmatpush1.bf16.msra.mxu0 0
        %2450 = vmatprep.subr.bf16.mxu0 0
        %2451 = vmatpush1.bf16.msra.mxu0 0
        %2452 = vmatprep.subr.bf16.mxu0 0
        %2453 = vmatpush1.bf16.msra.mxu0 0
        %2454 = vmatprep.subr.bf16.mxu0 0
        %2455 = vmatpush1.bf16.msra.mxu0 0
        %2456 = vmatprep.subr.bf16.mxu0 0
        %2457 = vmatpush1.bf16.msra.mxu0 0
        %2458 = vmatprep.subr.bf16.mxu0 0
        %2459 = vmatpush1.bf16.msra.mxu0 0
        %2460 = vmatprep.subr.bf16.mxu0 0
        %2461 = vmatpush1.bf16.msra.mxu0 0
        %2462 = vmatprep.mubr.bf16.mxu0 0
        %2463 = vmatmul.mubr.bf16.gmra.mrb[0].mxu0 %v2294
        %v2464 = vpop.f32.mrb[0].mxu0
        %v2465 = vadd.f32 0.0, %v2464
        %v2466 = vpop.f32.mrb[0].mxu0
        %v2467 = vadd.f32 0.0, %v2466
        %v2468 = vpop.f32.mrb[0].mxu0
        %v2469 = vadd.f32 0.0, %v2468
        %v2470 = vpop.f32.mrb[0].mxu0
        %v2471 = vadd.f32 0.0, %v2470
        %2472 = vmatprep.mubr.bf16.mxu0 0
        %2473 = vmatmul.mubr.bf16.gmra.mrb[0].mxu0 %v2295
        %v2474 = vpop.f32.mrb[0].mxu0
        %v2475 = vadd.f32 0.0, %v2474
        %v2476 = vpop.f32.mrb[0].mxu0
        %v2477 = vadd.f32 0.0, %v2476
        %v2478 = vpop.f32.mrb[0].mxu0
        %v2479 = vadd.f32 0.0, %v2478
        %v2480 = vpop.f32.mrb[0].mxu0
        %v2481 = vadd.f32 0.0, %v2480
        %2482 = vmatprep.mubr.bf16.mxu0 0
        %2483 = vmatmul.mubr.bf16.gmra.mrb[0].mxu0 %v2296
        %v2484 = vpop.f32.mrb[0].mxu0
        %v2485 = vadd.f32 0.0, %v2484
        %v2486 = vpop.f32.mrb[0].mxu0
        %v2487 = vadd.f32 0.0, %v2486
        %v2488 = vpop.f32.mrb[0].mxu0
        %v2489 = vadd.f32 0.0, %v2488
        %v2490 = vpop.f32.mrb[0].mxu0
        %v2491 = vadd.f32 0.0, %v2490
        %2492 = vmatprep.mubr.bf16.mxu0 0
        %2493 = vmatmul.mubr.bf16.gmra.mrb[0].mxu0 %v2297
        %v2494 = vpop.f32.mrb[0].mxu0
        %v2495 = vpop.f32.mrb[0].mxu0
        %v2496 = vpop.f32.mrb[0].mxu0
        %v2497 = vpop.f32.mrb[0].mxu0
        %2498 = vmatprep.mubr.bf16.mxu0 0
        %2499 = vmatmul.mubr.bf16.gmra.mrb[0].mxu0 %v2322
        %v2500 = vpop.f32.mrb[0].mxu0
        %v2501 = vadd.f32 0.0, %v2500
        %v2502 = vpop.f32.mrb[0].mxu0
        %v2503 = vadd.f32 0.0, %v2502
        %v2504 = vpop.f32.mrb[0].mxu0
        %v2505 = vadd.f32 0.0, %v2504
        %v2506 = vpop.f32.mrb[0].mxu0
        %v2507 = vadd.f32 0.0, %v2506
        %2508 = vmatprep.mubr.bf16.mxu0 0
        %2509 = vmatmul.mubr.bf16.gmra.mrb[0].mxu0 %v2324
        %v2510 = vpop.f32.mrb[0].mxu0
        %v2511 = vadd.f32 0.0, %v2510
        %v2512 = vpop.f32.mrb[0].mxu0
        %v2513 = vadd.f32 0.0, %v2512
        %v2514 = vpop.f32.mrb[0].mxu0
        %v2515 = vadd.f32 0.0, %v2514
        %v2516 = vpop.f32.mrb[0].mxu0
        %v2517 = vadd.f32 0.0, %v2516
        %2518 = vmatprep.mubr.bf16.mxu0 0
        %2519 = vmatmul.mubr.bf16.gmra.mrb[0].mxu0 %v2326
        %v2520 = vpop.f32.mrb[0].mxu0
        %v2521 = vadd.f32 0.0, %v2520
        %v2522 = vpop.f32.mrb[0].mxu0
        %v2523 = vadd.f32 0.0, %v2522
        %v2524 = vpop.f32.mrb[0].mxu0
        %v2525 = vadd.f32 0.0, %v2524
        %v2526 = vpop.f32.mrb[0].mxu0
        %v2527 = vadd.f32 0.0, %v2526
        %2528 = vmatprep.mubr.bf16.mxu0 0
        %2529 = vmatmul.mubr.bf16.gmra.mrb[0].mxu0 %v2328
        %v2530 = vpop.f32.mrb[0].mxu0
        %v2531 = vpop.f32.mrb[0].mxu0
        %v2532 = vpop.f32.mrb[0].mxu0
        %v2533 = vpop.f32.mrb[0].mxu0
        %2534 = vdwg.mxu0
        %v2551 = vunpack.c.l.b16 %v2298
        %v2552 = vunpack.c.h.b16 %v2298
        %v2553 = vunpack.c.l.b16 %v2299
        %v2554 = vunpack.c.h.b16 %v2299
        %v2555 = vunpack.c.l.b16 %v2300
        %v2556 = vunpack.c.h.b16 %v2300
        %v2557 = vunpack.c.l.b16 %v2301
        %v2558 = vunpack.c.h.b16 %v2301
        %v2559 = vunpack.c.l.b16 %v2302
        %v2560 = vunpack.c.h.b16 %v2302
        %v2561 = vunpack.c.l.b16 %v2303
        %v2562 = vunpack.c.h.b16 %v2303
        %v2563 = vunpack.c.l.b16 %v2304
        %v2564 = vunpack.c.h.b16 %v2304
        %v2565 = vunpack.c.l.b16 %v2305
        %v2566 = vunpack.c.h.b16 %v2305
        %v2567 = vunpack.c.l.b16 %v2306
        %v2568 = vunpack.c.h.b16 %v2306
        %v2569 = vunpack.c.l.b16 %v2307
        %v2570 = vunpack.c.h.b16 %v2307
        %v2571 = vunpack.c.l.b16 %v2308
        %v2572 = vunpack.c.h.b16 %v2308
        %v2573 = vunpack.c.l.b16 %v2309
        %v2574 = vunpack.c.h.b16 %v2309
        %v2575 = vunpack.c.l.b16 %v2310
        %v2576 = vunpack.c.h.b16 %v2310
        %v2577 = vunpack.c.l.b16 %v2311
        %v2578 = vunpack.c.h.b16 %v2311
        %v2579 = vunpack.c.l.b16 %v2312
        %v2580 = vunpack.c.h.b16 %v2312
        %v2581 = vunpack.c.l.b16 %v2313
        %v2582 = vunpack.c.h.b16 %v2313
        %v2583 = vpack.c.b16 %v2553, %v2551
        %v2584 = vpack.c.b16 %v2554, %v2552
        %v2585 = vpack.c.b16 %v2557, %v2555
        %v2586 = vpack.c.b16 %v2558, %v2556
        %v2587 = vpack.c.b16 %v2561, %v2559
        %v2588 = vpack.c.b16 %v2562, %v2560
        %v2589 = vpack.c.b16 %v2565, %v2563
        %v2590 = vpack.c.b16 %v2566, %v2564
        %v2591 = vpack.c.b16 %v2569, %v2567
        %v2592 = vpack.c.b16 %v2570, %v2568
        %v2593 = vpack.c.b16 %v2573, %v2571
        %v2594 = vpack.c.b16 %v2574, %v2572
        %v2595 = vpack.c.b16 %v2577, %v2575
        %v2596 = vpack.c.b16 %v2578, %v2576
        %v2597 = vpack.c.b16 %v2581, %v2579
        %v2598 = vpack.c.b16 %v2582, %v2580
        %2615 = vmatprep.subr.bf16.mxu0 %v2584
        %2616 = vmatpush1.bf16.msra.mxu0 %v2583
        %2617 = vmatprep.subr.bf16.mxu0 %v2586
        %2618 = vmatpush1.bf16.msra.mxu0 %v2585
        %2619 = vmatprep.subr.bf16.mxu0 %v2588
        %2620 = vmatpush1.bf16.msra.mxu0 %v2587
        %2621 = vmatprep.subr.bf16.mxu0 %v2590
        %2622 = vmatpush1.bf16.msra.mxu0 %v2589
        %2623 = vmatprep.subr.bf16.mxu0 %v2592
        %2624 = vmatpush1.bf16.msra.mxu0 %v2591
        %2625 = vmatprep.subr.bf16.mxu0 %v2594
        %2626 = vmatpush1.bf16.msra.mxu0 %v2593
        %2627 = vmatprep.subr.bf16.mxu0 %v2596
        %2628 = vmatpush1.bf16.msra.mxu0 %v2595
        %2629 = vmatprep.subr.bf16.mxu0 %v2598
        %2630 = vmatpush1.bf16.msra.mxu0 %v2597
        %2631 = vmatprep.subr.bf16.mxu0 0
        %2632 = vmatpush1.bf16.msra.mxu0 0
        %2633 = vmatprep.subr.bf16.mxu0 0
        %2634 = vmatpush1.bf16.msra.mxu0 0
        %2635 = vmatprep.subr.bf16.mxu0 0
        %2636 = vmatpush1.bf16.msra.mxu0 0
        %2637 = vmatprep.subr.bf16.mxu0 0
        %2638 = vmatpush1.bf16.msra.mxu0 0
        %2639 = vmatprep.subr.bf16.mxu0 0
        %2640 = vmatpush1.bf16.msra.mxu0 0
        %2641 = vmatprep.subr.bf16.mxu0 0
        %2642 = vmatpush1.bf16.msra.mxu0 0
        %2643 = vmatprep.subr.bf16.mxu0 0
        %2644 = vmatpush1.bf16.msra.mxu0 0
        %2645 = vmatprep.subr.bf16.mxu0 0
        %2646 = vmatpush1.bf16.msra.mxu0 0
        %2647 = vmatprep.mubr.bf16.mxu0 0
        %2648 = vmatmul.mubr.bf16.gmra.mrb[0].mxu0 %v2289
        %v2649 = vpop.f32.mrb[0].mxu0
        %v2650 = vadd.f32 %v2465, %v2649
        %v2651 = vpop.f32.mrb[0].mxu0
        %v2652 = vadd.f32 %v2467, %v2651
        %v2653 = vpop.f32.mrb[0].mxu0
        %v2654 = vadd.f32 %v2469, %v2653
        %v2655 = vpop.f32.mrb[0].mxu0
        %v2656 = vadd.f32 %v2471, %v2655
        %2657 = vmatprep.mubr.bf16.mxu0 0
        %2658 = vmatmul.mubr.bf16.gmra.mrb[0].mxu0 %v2290
        %v2659 = vpop.f32.mrb[0].mxu0
        %v2660 = vadd.f32 %v2475, %v2659
        %v2661 = vpop.f32.mrb[0].mxu0
        %v2662 = vadd.f32 %v2477, %v2661
        %v2663 = vpop.f32.mrb[0].mxu0
        %v2664 = vadd.f32 %v2479, %v2663
        %v2665 = vpop.f32.mrb[0].mxu0
        %v2666 = vadd.f32 %v2481, %v2665
        %2667 = vmatprep.mubr.bf16.mxu0 0
        %2668 = vmatmul.mubr.bf16.gmra.mrb[0].mxu0 %v2291
        %v2669 = vpop.f32.mrb[0].mxu0
        %v2670 = vadd.f32 %v2485, %v2669
        %v2671 = vpop.f32.mrb[0].mxu0
        %v2672 = vadd.f32 %v2487, %v2671
        %v2673 = vpop.f32.mrb[0].mxu0
        %v2674 = vadd.f32 %v2489, %v2673
        %v2675 = vpop.f32.mrb[0].mxu0
        %v2676 = vadd.f32 %v2491, %v2675
        %2677 = vmatprep.mubr.bf16.mxu0 0
        %2678 = vmatmul.mubr.bf16.gmra.mrb[0].mxu0 %v2292
        %v2679 = vpop.f32.mrb[0].mxu0
        %v2680 = vpop.f32.mrb[0].mxu0
        %v2681 = vpop.f32.mrb[0].mxu0
        %v2682 = vpop.f32.mrb[0].mxu0
        %2683 = vmatprep.mubr.bf16.mxu0 0
        %2684 = vmatmul.mubr.bf16.gmra.mrb[0].mxu0 %v2294
        %v2685 = vpop.f32.mrb[0].mxu0
        %v2686 = vadd.f32 %v2501, %v2685
        %v2687 = vpop.f32.mrb[0].mxu0
        %v2688 = vadd.f32 %v2503, %v2687
        %v2689 = vpop.f32.mrb[0].mxu0
        %v2690 = vadd.f32 %v2505, %v2689
        %v2691 = vpop.f32.mrb[0].mxu0
        %v2692 = vadd.f32 %v2507, %v2691
        %2693 = vmatprep.mubr.bf16.mxu0 0
        %2694 = vmatmul.mubr.bf16.gmra.mrb[0].mxu0 %v2295
        %v2695 = vpop.f32.mrb[0].mxu0
        %v2696 = vadd.f32 %v2511, %v2695
        %v2697 = vpop.f32.mrb[0].mxu0
        %v2698 = vadd.f32 %v2513, %v2697
        %v2699 = vpop.f32.mrb[0].mxu0
        %v2700 = vadd.f32 %v2515, %v2699
        %v2701 = vpop.f32.mrb[0].mxu0
        %v2702 = vadd.f32 %v2517, %v2701
        %2703 = vmatprep.mubr.bf16.mxu0 0
        %2704 = vmatmul.mubr.bf16.gmra.mrb[0].mxu0 %v2296
        %v2705 = vpop.f32.mrb[0].mxu0
        %v2706 = vadd.f32 %v2521, %v2705
        %v2707 = vpop.f32.mrb[0].mxu0
        %v2708 = vadd.f32 %v2523, %v2707
        %v2709 = vpop.f32.mrb[0].mxu0
        %v2710 = vadd.f32 %v2525, %v2709
        %v2711 = vpop.f32.mrb[0].mxu0
        %v2712 = vadd.f32 %v2527, %v2711
        %2713 = vmatprep.mubr.bf16.mxu0 0
        %2714 = vmatmul.mubr.bf16.gmra.mrb[0].mxu0 %v2297
        %v2715 = vpop.f32.mrb[0].mxu0
        %v2716 = vpop.f32.mrb[0].mxu0
        %v2717 = vpop.f32.mrb[0].mxu0
        %v2718 = vpop.f32.mrb[0].mxu0
        %2719 = vdwg.mxu0
        %v2724 = vrot.slane %v2294, 4
        %v2725 = vrot.slane %v2295, 4
        %v2726 = vsel %vm2319, %v2724, %v2725
        %v2727 = vrot.slane %v2296, 4
        %v2728 = vsel %vm2319, %v2725, %v2727
        %v2729 = vrot.slane %v2297, 4
        %v2730 = vsel %vm2319, %v2727, %v2729
        %v2731 = vsel %vm2319, %v2729, %v2327
        %s2736 = scalar_lea.vmem %s3, 256
        %v2737 = vld [vmem:[%s2736] sm:$0xff]
        %v2738 = vld [vmem:[%s2736 + $0x8] sm:$0xff]
        %v2739 = vld [vmem:[%s2736 + $0x10] sm:$0xff]
        %v2740 = vld [vmem:[%s2736 + $0x18] sm:$0xff]
        %v2741 = vld [vmem:[%s2736 + $0x20] sm:$0xff]
        %v2742 = vld [vmem:[%s2736 + $0x28] sm:$0xff]
        %v2743 = vld [vmem:[%s2736 + $0x30] sm:$0xff]
        %v2744 = vld [vmem:[%s2736 + $0x38] sm:$0xff]
        %v2745 = vld [vmem:[%s2736 + $0x40] sm:$0xff]
        %v2746 = vld [vmem:[%s2736 + $0x48] sm:$0xff]
        %v2747 = vld [vmem:[%s2736 + $0x50] sm:$0xff]
        %v2748 = vld [vmem:[%s2736 + $0x58] sm:$0xff]
        %v2749 = vld [vmem:[%s2736 + $0x60] sm:$0xff]
        %v2750 = vld [vmem:[%s2736 + $0x68] sm:$0xff]
        %v2751 = vld [vmem:[%s2736 + $0x70] sm:$0xff]
        %v2752 = vld [vmem:[%s2736 + $0x78] sm:$0xff]
        %v2769 = vunpack.c.l.b16 %v2737
        %v2770 = vunpack.c.h.b16 %v2737
        %v2771 = vunpack.c.l.b16 %v2738
        %v2772 = vunpack.c.h.b16 %v2738
        %v2773 = vunpack.c.l.b16 %v2739
        %v2774 = vunpack.c.h.b16 %v2739
        %v2775 = vunpack.c.l.b16 %v2740
        %v2776 = vunpack.c.h.b16 %v2740
        %v2777 = vunpack.c.l.b16 %v2741
        %v2778 = vunpack.c.h.b16 %v2741
        %v2779 = vunpack.c.l.b16 %v2742
        %v2780 = vunpack.c.h.b16 %v2742
        %v2781 = vunpack.c.l.b16 %v2743
        %v2782 = vunpack.c.h.b16 %v2743
        %v2783 = vunpack.c.l.b16 %v2744
        %v2784 = vunpack.c.h.b16 %v2744
        %v2785 = vunpack.c.l.b16 %v2745
        %v2786 = vunpack.c.h.b16 %v2745
        %v2787 = vunpack.c.l.b16 %v2746
        %v2788 = vunpack.c.h.b16 %v2746
        %v2789 = vunpack.c.l.b16 %v2747
        %v2790 = vunpack.c.h.b16 %v2747
        %v2791 = vunpack.c.l.b16 %v2748
        %v2792 = vunpack.c.h.b16 %v2748
        %v2793 = vunpack.c.l.b16 %v2749
        %v2794 = vunpack.c.h.b16 %v2749
        %v2795 = vunpack.c.l.b16 %v2750
        %v2796 = vunpack.c.h.b16 %v2750
        %v2797 = vunpack.c.l.b16 %v2751
        %v2798 = vunpack.c.h.b16 %v2751
        %v2799 = vunpack.c.l.b16 %v2752
        %v2800 = vunpack.c.h.b16 %v2752
        %v2801 = vpack.c.b16 %v2771, %v2769
        %v2802 = vpack.c.b16 %v2772, %v2770
        %v2803 = vpack.c.b16 %v2775, %v2773
        %v2804 = vpack.c.b16 %v2776, %v2774
        %v2805 = vpack.c.b16 %v2779, %v2777
        %v2806 = vpack.c.b16 %v2780, %v2778
        %v2807 = vpack.c.b16 %v2783, %v2781
        %v2808 = vpack.c.b16 %v2784, %v2782
        %v2809 = vpack.c.b16 %v2787, %v2785
        %v2810 = vpack.c.b16 %v2788, %v2786
        %v2811 = vpack.c.b16 %v2791, %v2789
        %v2812 = vpack.c.b16 %v2792, %v2790
        %v2813 = vpack.c.b16 %v2795, %v2793
        %v2814 = vpack.c.b16 %v2796, %v2794
        %v2815 = vpack.c.b16 %v2799, %v2797
        %v2816 = vpack.c.b16 %v2800, %v2798
        %2833 = vmatprep.subr.bf16.mxu0 %v2802
        %2834 = vmatpush1.bf16.msra.mxu0 %v2801
        %2835 = vmatprep.subr.bf16.mxu0 %v2804
        %2836 = vmatpush1.bf16.msra.mxu0 %v2803
        %2837 = vmatprep.subr.bf16.mxu0 %v2806
        %2838 = vmatpush1.bf16.msra.mxu0 %v2805
        %2839 = vmatprep.subr.bf16.mxu0 %v2808
        %2840 = vmatpush1.bf16.msra.mxu0 %v2807
        %2841 = vmatprep.subr.bf16.mxu0 %v2810
        %2842 = vmatpush1.bf16.msra.mxu0 %v2809
        %2843 = vmatprep.subr.bf16.mxu0 %v2812
        %2844 = vmatpush1.bf16.msra.mxu0 %v2811
        %2845 = vmatprep.subr.bf16.mxu0 %v2814
        %2846 = vmatpush1.bf16.msra.mxu0 %v2813
        %2847 = vmatprep.subr.bf16.mxu0 %v2816
        %2848 = vmatpush1.bf16.msra.mxu0 %v2815
        %2849 = vmatprep.subr.bf16.mxu0 0
        %2850 = vmatpush1.bf16.msra.mxu0 0
        %2851 = vmatprep.subr.bf16.mxu0 0
        %2852 = vmatpush1.bf16.msra.mxu0 0
        %2853 = vmatprep.subr.bf16.mxu0 0
        %2854 = vmatpush1.bf16.msra.mxu0 0
        %2855 = vmatprep.subr.bf16.mxu0 0
        %2856 = vmatpush1.bf16.msra.mxu0 0
        %2857 = vmatprep.subr.bf16.mxu0 0
        %2858 = vmatpush1.bf16.msra.mxu0 0
        %2859 = vmatprep.subr.bf16.mxu0 0
        %2860 = vmatpush1.bf16.msra.mxu0 0
        %2861 = vmatprep.subr.bf16.mxu0 0
        %2862 = vmatpush1.bf16.msra.mxu0 0
        %2863 = vmatprep.subr.bf16.mxu0 0
        %2864 = vmatpush1.bf16.msra.mxu0 0
        %2865 = vmatprep.mubr.bf16.mxu0 0
        %2866 = vmatmul.mubr.bf16.gmra.mrb[0].mxu0 %v2322
        %v2867 = vpop.f32.mrb[0].mxu0
        %v2868 = vadd.f32 0.0, %v2867
        %v2869 = vpop.f32.mrb[0].mxu0
        %v2870 = vadd.f32 0.0, %v2869
        %v2871 = vpop.f32.mrb[0].mxu0
        %v2872 = vadd.f32 0.0, %v2871
        %v2873 = vpop.f32.mrb[0].mxu0
        %v2874 = vadd.f32 0.0, %v2873
        %2875 = vmatprep.mubr.bf16.mxu0 0
        %2876 = vmatmul.mubr.bf16.gmra.mrb[0].mxu0 %v2324
        %v2877 = vpop.f32.mrb[0].mxu0
        %v2878 = vadd.f32 0.0, %v2877
        %v2879 = vpop.f32.mrb[0].mxu0
        %v2880 = vadd.f32 0.0, %v2879
        %v2881 = vpop.f32.mrb[0].mxu0
        %v2882 = vadd.f32 0.0, %v2881
        %v2883 = vpop.f32.mrb[0].mxu0
        %v2884 = vadd.f32 0.0, %v2883
        %2885 = vmatprep.mubr.bf16.mxu0 0
        %2886 = vmatmul.mubr.bf16.gmra.mrb[0].mxu0 %v2326
        %v2887 = vpop.f32.mrb[0].mxu0
        %v2888 = vadd.f32 0.0, %v2887
        %v2889 = vpop.f32.mrb[0].mxu0
        %v2890 = vadd.f32 0.0, %v2889
        %v2891 = vpop.f32.mrb[0].mxu0
        %v2892 = vadd.f32 0.0, %v2891
        %v2893 = vpop.f32.mrb[0].mxu0
        %v2894 = vadd.f32 0.0, %v2893
        %2895 = vmatprep.mubr.bf16.mxu0 0
        %2896 = vmatmul.mubr.bf16.gmra.mrb[0].mxu0 %v2328
        %v2897 = vpop.f32.mrb[0].mxu0
        %v2898 = vpop.f32.mrb[0].mxu0
        %v2899 = vpop.f32.mrb[0].mxu0
        %v2900 = vpop.f32.mrb[0].mxu0
        %2901 = vmatprep.mubr.bf16.mxu0 0
        %2902 = vmatmul.mubr.bf16.gmra.mrb[0].mxu0 %v2726
        %v2903 = vpop.f32.mrb[0].mxu0
        %v2904 = vadd.f32 0.0, %v2903
        %v2905 = vpop.f32.mrb[0].mxu0
        %v2906 = vadd.f32 0.0, %v2905
        %v2907 = vpop.f32.mrb[0].mxu0
        %v2908 = vadd.f32 0.0, %v2907
        %v2909 = vpop.f32.mrb[0].mxu0
        %v2910 = vadd.f32 0.0, %v2909
        %2911 = vmatprep.mubr.bf16.mxu0 0
        %2912 = vmatmul.mubr.bf16.gmra.mrb[0].mxu0 %v2728
        %v2913 = vpop.f32.mrb[0].mxu0
        %v2914 = vadd.f32 0.0, %v2913
        %v2915 = vpop.f32.mrb[0].mxu0
        %v2916 = vadd.f32 0.0, %v2915
        %v2917 = vpop.f32.mrb[0].mxu0
        %v2918 = vadd.f32 0.0, %v2917
        %v2919 = vpop.f32.mrb[0].mxu0
        %v2920 = vadd.f32 0.0, %v2919
        %2921 = vmatprep.mubr.bf16.mxu0 0
        %2922 = vmatmul.mubr.bf16.gmra.mrb[0].mxu0 %v2730
        %v2923 = vpop.f32.mrb[0].mxu0
        %v2924 = vadd.f32 0.0, %v2923
        %v2925 = vpop.f32.mrb[0].mxu0
        %v2926 = vadd.f32 0.0, %v2925
        %v2927 = vpop.f32.mrb[0].mxu0
        %v2928 = vadd.f32 0.0, %v2927
        %v2929 = vpop.f32.mrb[0].mxu0
        %v2930 = vadd.f32 0.0, %v2929
        %2931 = vmatprep.mubr.bf16.mxu0 0
        %2932 = vmatmul.mubr.bf16.gmra.mrb[0].mxu0 %v2731
        %v2933 = vpop.f32.mrb[0].mxu0
        %v2934 = vpop.f32.mrb[0].mxu0
        %v2935 = vpop.f32.mrb[0].mxu0
        %v2936 = vpop.f32.mrb[0].mxu0
        %2937 = vdwg.mxu0
        %v2938 = vadd.f32 %v2650, %v2868
        %v2939 = vadd.f32 %v2652, %v2870
        %v2940 = vadd.f32 %v2654, %v2872
        %v2941 = vadd.f32 %v2656, %v2874
        %v2942 = vadd.f32 %v2660, %v2878
        %v2943 = vadd.f32 %v2662, %v2880
        %v2944 = vadd.f32 %v2664, %v2882
        %v2945 = vadd.f32 %v2666, %v2884
        %v2946 = vadd.f32 %v2670, %v2888
        %v2947 = vadd.f32 %v2672, %v2890
        %v2948 = vadd.f32 %v2674, %v2892
        %v2949 = vadd.f32 %v2676, %v2894
        %v2950 = vadd.f32 %v2686, %v2904
        %v2951 = vadd.f32 %v2688, %v2906
        %v2952 = vadd.f32 %v2690, %v2908
        %v2953 = vadd.f32 %v2692, %v2910
        %v2954 = vadd.f32 %v2696, %v2914
        %v2955 = vadd.f32 %v2698, %v2916
        %v2956 = vadd.f32 %v2700, %v2918
        %v2957 = vadd.f32 %v2702, %v2920
        %v2958 = vadd.f32 %v2706, %v2924
        %v2959 = vadd.f32 %v2708, %v2926
        %v2960 = vadd.f32 %v2710, %v2928
        %v2961 = vadd.f32 %v2712, %v2930
        %s2962 = scalar_lea.vmem %s3, 384
        %v2963 = vld [vmem:[%s2962] sm:$0xff]
        %v2964 = vld [vmem:[%s2962 + $0x8] sm:$0xff]
        %v2965 = vld [vmem:[%s2962 + $0x10] sm:$0xff]
        %v2966 = vld [vmem:[%s2962 + $0x18] sm:$0xff]
        %v2967 = vld [vmem:[%s2962 + $0x20] sm:$0xff]
        %v2968 = vld [vmem:[%s2962 + $0x28] sm:$0xff]
        %v2969 = vld [vmem:[%s2962 + $0x30] sm:$0xff]
        %v2970 = vld [vmem:[%s2962 + $0x38] sm:$0xff]
        %v2971 = vld [vmem:[%s2962 + $0x40] sm:$0xff]
        %v2972 = vld [vmem:[%s2962 + $0x48] sm:$0xff]
        %v2973 = vld [vmem:[%s2962 + $0x50] sm:$0xff]
        %v2974 = vld [vmem:[%s2962 + $0x58] sm:$0xff]
        %v2975 = vld [vmem:[%s2962 + $0x60] sm:$0xff]
        %v2976 = vld [vmem:[%s2962 + $0x68] sm:$0xff]
        %v2977 = vld [vmem:[%s2962 + $0x70] sm:$0xff]
        %v2978 = vld [vmem:[%s2962 + $0x78] sm:$0xff]
        %v2995 = vunpack.c.l.b16 %v2963
        %v2996 = vunpack.c.h.b16 %v2963
        %v2997 = vunpack.c.l.b16 %v2964
        %v2998 = vunpack.c.h.b16 %v2964
        %v2999 = vunpack.c.l.b16 %v2965
        %v3000 = vunpack.c.h.b16 %v2965
        %v3001 = vunpack.c.l.b16 %v2966
        %v3002 = vunpack.c.h.b16 %v2966
        %v3003 = vunpack.c.l.b16 %v2967
        %v3004 = vunpack.c.h.b16 %v2967
        %v3005 = vunpack.c.l.b16 %v2968
        %v3006 = vunpack.c.h.b16 %v2968
        %v3007 = vunpack.c.l.b16 %v2969
        %v3008 = vunpack.c.h.b16 %v2969
        %v3009 = vunpack.c.l.b16 %v2970
        %v3010 = vunpack.c.h.b16 %v2970
        %v3011 = vunpack.c.l.b16 %v2971
        %v3012 = vunpack.c.h.b16 %v2971
        %v3013 = vunpack.c.l.b16 %v2972
        %v3014 = vunpack.c.h.b16 %v2972
        %v3015 = vunpack.c.l.b16 %v2973
        %v3016 = vunpack.c.h.b16 %v2973
        %v3017 = vunpack.c.l.b16 %v2974
        %v3018 = vunpack.c.h.b16 %v2974
        %v3019 = vunpack.c.l.b16 %v2975
        %v3020 = vunpack.c.h.b16 %v2975
        %v3021 = vunpack.c.l.b16 %v2976
        %v3022 = vunpack.c.h.b16 %v2976
        %v3023 = vunpack.c.l.b16 %v2977
        %v3024 = vunpack.c.h.b16 %v2977
        %v3025 = vunpack.c.l.b16 %v2978
        %v3026 = vunpack.c.h.b16 %v2978
        %v3027 = vpack.c.b16 %v2997, %v2995
        %v3028 = vpack.c.b16 %v2998, %v2996
        %v3029 = vpack.c.b16 %v3001, %v2999
        %v3030 = vpack.c.b16 %v3002, %v3000
        %v3031 = vpack.c.b16 %v3005, %v3003
        %v3032 = vpack.c.b16 %v3006, %v3004
        %v3033 = vpack.c.b16 %v3009, %v3007
        %v3034 = vpack.c.b16 %v3010, %v3008
        %v3035 = vpack.c.b16 %v3013, %v3011
        %v3036 = vpack.c.b16 %v3014, %v3012
        %v3037 = vpack.c.b16 %v3017, %v3015
        %v3038 = vpack.c.b16 %v3018, %v3016
        %v3039 = vpack.c.b16 %v3021, %v3019
        %v3040 = vpack.c.b16 %v3022, %v3020
        %v3041 = vpack.c.b16 %v3025, %v3023
        %v3042 = vpack.c.b16 %v3026, %v3024
        %3059 = vmatprep.subr.bf16.mxu0 %v3028
        %3060 = vmatpush1.bf16.msra.mxu0 %v3027
        %3061 = vmatprep.subr.bf16.mxu0 %v3030
        %3062 = vmatpush1.bf16.msra.mxu0 %v3029
        %3063 = vmatprep.subr.bf16.mxu0 %v3032
        %3064 = vmatpush1.bf16.msra.mxu0 %v3031
        %3065 = vmatprep.subr.bf16.mxu0 %v3034
        %3066 = vmatpush1.bf16.msra.mxu0 %v3033
        %3067 = vmatprep.subr.bf16.mxu0 %v3036
        %3068 = vmatpush1.bf16.msra.mxu0 %v3035
        %3069 = vmatprep.subr.bf16.mxu0 %v3038
        %3070 = vmatpush1.bf16.msra.mxu0 %v3037
        %3071 = vmatprep.subr.bf16.mxu0 %v3040
        %3072 = vmatpush1.bf16.msra.mxu0 %v3039
        %3073 = vmatprep.subr.bf16.mxu0 %v3042
        %3074 = vmatpush1.bf16.msra.mxu0 %v3041
        %3075 = vmatprep.subr.bf16.mxu0 0
        %3076 = vmatpush1.bf16.msra.mxu0 0
        %3077 = vmatprep.subr.bf16.mxu0 0
        %3078 = vmatpush1.bf16.msra.mxu0 0
        %3079 = vmatprep.subr.bf16.mxu0 0
        %3080 = vmatpush1.bf16.msra.mxu0 0
        %3081 = vmatprep.subr.bf16.mxu0 0
        %3082 = vmatpush1.bf16.msra.mxu0 0
        %3083 = vmatprep.subr.bf16.mxu0 0
        %3084 = vmatpush1.bf16.msra.mxu0 0
        %3085 = vmatprep.subr.bf16.mxu0 0
        %3086 = vmatpush1.bf16.msra.mxu0 0
        %3087 = vmatprep.subr.bf16.mxu0 0
        %3088 = vmatpush1.bf16.msra.mxu0 0
        %3089 = vmatprep.subr.bf16.mxu0 0
        %3090 = vmatpush1.bf16.msra.mxu0 0
        %3091 = vmatprep.mubr.bf16.mxu0 0
        %3092 = vmatmul.mubr.bf16.gmra.mrb[0].mxu0 %v2726
        %v3093 = vpop.f32.mrb[0].mxu0
        %v3094 = vadd.f32 0.0, %v3093
        %v3095 = vpop.f32.mrb[0].mxu0
        %v3096 = vadd.f32 0.0, %v3095
        %v3097 = vpop.f32.mrb[0].mxu0
        %v3098 = vadd.f32 0.0, %v3097
        %v3099 = vpop.f32.mrb[0].mxu0
        %v3100 = vadd.f32 0.0, %v3099
        %3101 = vmatprep.mubr.bf16.mxu0 0
        %3102 = vmatmul.mubr.bf16.gmra.mrb[0].mxu0 %v2728
        %v3103 = vpop.f32.mrb[0].mxu0
        %v3104 = vadd.f32 0.0, %v3103
        %v3105 = vpop.f32.mrb[0].mxu0
        %v3106 = vadd.f32 0.0, %v3105
        %v3107 = vpop.f32.mrb[0].mxu0
        %v3108 = vadd.f32 0.0, %v3107
        %v3109 = vpop.f32.mrb[0].mxu0
        %v3110 = vadd.f32 0.0, %v3109
        %3111 = vmatprep.mubr.bf16.mxu0 0
        %3112 = vmatmul.mubr.bf16.gmra.mrb[0].mxu0 %v2730
        %v3113 = vpop.f32.mrb[0].mxu0
        %v3114 = vadd.f32 0.0, %v3113
        %v3115 = vpop.f32.mrb[0].mxu0
        %v3116 = vadd.f32 0.0, %v3115
        %v3117 = vpop.f32.mrb[0].mxu0
        %v3118 = vadd.f32 0.0, %v3117
        %v3119 = vpop.f32.mrb[0].mxu0
        %v3120 = vadd.f32 0.0, %v3119
        %3121 = vmatprep.mubr.bf16.mxu0 0
        %3122 = vmatmul.mubr.bf16.gmra.mrb[0].mxu0 %v2731
        %v3123 = vpop.f32.mrb[0].mxu0
        %v3124 = vpop.f32.mrb[0].mxu0
        %v3125 = vpop.f32.mrb[0].mxu0
        %v3126 = vpop.f32.mrb[0].mxu0
        %3127 = vmatprep.mubr.bf16.mxu0 0
        %3128 = vmatmul.mubr.bf16.gmra.mrb[0].mxu0 %v2290
        %v3129 = vpop.f32.mrb[0].mxu0
        %v3130 = vadd.f32 0.0, %v3129
        %v3131 = vpop.f32.mrb[0].mxu0
        %v3132 = vadd.f32 0.0, %v3131
        %v3133 = vpop.f32.mrb[0].mxu0
        %v3134 = vadd.f32 0.0, %v3133
        %v3135 = vpop.f32.mrb[0].mxu0
        %v3136 = vadd.f32 0.0, %v3135
        %3137 = vmatprep.mubr.bf16.mxu0 0
        %3138 = vmatmul.mubr.bf16.gmra.mrb[0].mxu0 %v2291
        %v3139 = vpop.f32.mrb[0].mxu0
        %v3140 = vadd.f32 0.0, %v3139
        %v3141 = vpop.f32.mrb[0].mxu0
        %v3142 = vadd.f32 0.0, %v3141
        %v3143 = vpop.f32.mrb[0].mxu0
        %v3144 = vadd.f32 0.0, %v3143
        %v3145 = vpop.f32.mrb[0].mxu0
        %v3146 = vadd.f32 0.0, %v3145
        %3147 = vmatprep.mubr.bf16.mxu0 0
        %3148 = vmatmul.mubr.bf16.gmra.mrb[0].mxu0 %v2292
        %v3149 = vpop.f32.mrb[0].mxu0
        %v3150 = vadd.f32 0.0, %v3149
        %v3151 = vpop.f32.mrb[0].mxu0
        %v3152 = vadd.f32 0.0, %v3151
        %v3153 = vpop.f32.mrb[0].mxu0
        %v3154 = vadd.f32 0.0, %v3153
        %v3155 = vpop.f32.mrb[0].mxu0
        %v3156 = vadd.f32 0.0, %v3155
        %3157 = vmatprep.mubr.bf16.mxu0 0
        %3158 = vmatmul.mubr.bf16.gmra.mrb[0].mxu0 %v2293
        %v3159 = vpop.f32.mrb[0].mxu0
        %v3160 = vpop.f32.mrb[0].mxu0
        %v3161 = vpop.f32.mrb[0].mxu0
        %v3162 = vpop.f32.mrb[0].mxu0
        %3163 = vdwg.mxu0
        %v3164 = vadd.f32 %v2938, %v3094
        %v3165 = vadd.f32 %v2939, %v3096
        %v3166 = vadd.f32 %v2940, %v3098
        %v3167 = vadd.f32 %v2941, %v3100
        %v3168 = vadd.f32 %v2942, %v3104
        %v3169 = vadd.f32 %v2943, %v3106
        %v3170 = vadd.f32 %v2944, %v3108
        %v3171 = vadd.f32 %v2945, %v3110
        %v3172 = vadd.f32 %v2946, %v3114
        %v3173 = vadd.f32 %v2947, %v3116
        %v3174 = vadd.f32 %v2948, %v3118
        %v3175 = vadd.f32 %v2949, %v3120
        %v3176 = vadd.f32 %v2950, %v3130
        %v3177 = vadd.f32 %v2951, %v3132
        %v3178 = vadd.f32 %v2952, %v3134
        %v3179 = vadd.f32 %v2953, %v3136
        %v3180 = vadd.f32 %v2954, %v3140
        %v3181 = vadd.f32 %v2955, %v3142
        %v3182 = vadd.f32 %v2956, %v3144
        %v3183 = vadd.f32 %v2957, %v3146
        %v3184 = vadd.f32 %v2958, %v3150
        %v3185 = vadd.f32 %v2959, %v3152
        %v3186 = vadd.f32 %v2960, %v3154
        %v3187 = vadd.f32 %v2961, %v3156
        %s3188 = scalar_lea.vmem %s3, 512
        %v3189 = vld [vmem:[%s3188] sm:$0xff]
        %v3190 = vld [vmem:[%s3188 + $0x8] sm:$0xff]
        %v3191 = vld [vmem:[%s3188 + $0x10] sm:$0xff]
        %v3192 = vld [vmem:[%s3188 + $0x18] sm:$0xff]
        %v3193 = vld [vmem:[%s3188 + $0x20] sm:$0xff]
        %v3194 = vld [vmem:[%s3188 + $0x28] sm:$0xff]
        %v3195 = vld [vmem:[%s3188 + $0x30] sm:$0xff]
        %v3196 = vld [vmem:[%s3188 + $0x38] sm:$0xff]
        %v3197 = vld [vmem:[%s3188 + $0x40] sm:$0xff]
        %v3198 = vld [vmem:[%s3188 + $0x48] sm:$0xff]
        %v3199 = vld [vmem:[%s3188 + $0x50] sm:$0xff]
        %v3200 = vld [vmem:[%s3188 + $0x58] sm:$0xff]
        %v3201 = vld [vmem:[%s3188 + $0x60] sm:$0xff]
        %v3202 = vld [vmem:[%s3188 + $0x68] sm:$0xff]
        %v3203 = vld [vmem:[%s3188 + $0x70] sm:$0xff]
        %v3204 = vld [vmem:[%s3188 + $0x78] sm:$0xff]
        %v3221 = vunpack.c.l.b16 %v3189
        %v3222 = vunpack.c.h.b16 %v3189
        %v3223 = vunpack.c.l.b16 %v3190
        %v3224 = vunpack.c.h.b16 %v3190
        %v3225 = vunpack.c.l.b16 %v3191
        %v3226 = vunpack.c.h.b16 %v3191
        %v3227 = vunpack.c.l.b16 %v3192
        %v3228 = vunpack.c.h.b16 %v3192
        %v3229 = vunpack.c.l.b16 %v3193
        %v3230 = vunpack.c.h.b16 %v3193
        %v3231 = vunpack.c.l.b16 %v3194
        %v3232 = vunpack.c.h.b16 %v3194
        %v3233 = vunpack.c.l.b16 %v3195
        %v3234 = vunpack.c.h.b16 %v3195
        %v3235 = vunpack.c.l.b16 %v3196
        %v3236 = vunpack.c.h.b16 %v3196
        %v3237 = vunpack.c.l.b16 %v3197
        %v3238 = vunpack.c.h.b16 %v3197
        %v3239 = vunpack.c.l.b16 %v3198
        %v3240 = vunpack.c.h.b16 %v3198
        %v3241 = vunpack.c.l.b16 %v3199
        %v3242 = vunpack.c.h.b16 %v3199
        %v3243 = vunpack.c.l.b16 %v3200
        %v3244 = vunpack.c.h.b16 %v3200
        %v3245 = vunpack.c.l.b16 %v3201
        %v3246 = vunpack.c.h.b16 %v3201
        %v3247 = vunpack.c.l.b16 %v3202
        %v3248 = vunpack.c.h.b16 %v3202
        %v3249 = vunpack.c.l.b16 %v3203
        %v3250 = vunpack.c.h.b16 %v3203
        %v3251 = vunpack.c.l.b16 %v3204
        %v3252 = vunpack.c.h.b16 %v3204
        %v3253 = vpack.c.b16 %v3223, %v3221
        %v3254 = vpack.c.b16 %v3224, %v3222
        %v3255 = vpack.c.b16 %v3227, %v3225
        %v3256 = vpack.c.b16 %v3228, %v3226
        %v3257 = vpack.c.b16 %v3231, %v3229
        %v3258 = vpack.c.b16 %v3232, %v3230
        %v3259 = vpack.c.b16 %v3235, %v3233
        %v3260 = vpack.c.b16 %v3236, %v3234
        %v3261 = vpack.c.b16 %v3239, %v3237
        %v3262 = vpack.c.b16 %v3240, %v3238
        %v3263 = vpack.c.b16 %v3243, %v3241
        %v3264 = vpack.c.b16 %v3244, %v3242
        %v3265 = vpack.c.b16 %v3247, %v3245
        %v3266 = vpack.c.b16 %v3248, %v3246
        %v3267 = vpack.c.b16 %v3251, %v3249
        %v3268 = vpack.c.b16 %v3252, %v3250
        %3285 = vmatprep.subr.bf16.mxu0 %v3254
        %3286 = vmatpush1.bf16.msra.mxu0 %v3253
        %3287 = vmatprep.subr.bf16.mxu0 %v3256
        %3288 = vmatpush1.bf16.msra.mxu0 %v3255
        %3289 = vmatprep.subr.bf16.mxu0 %v3258
        %3290 = vmatpush1.bf16.msra.mxu0 %v3257
        %3291 = vmatprep.subr.bf16.mxu0 %v3260
        %3292 = vmatpush1.bf16.msra.mxu0 %v3259
        %3293 = vmatprep.subr.bf16.mxu0 %v3262
        %3294 = vmatpush1.bf16.msra.mxu0 %v3261
        %3295 = vmatprep.subr.bf16.mxu0 %v3264
        %3296 = vmatpush1.bf16.msra.mxu0 %v3263
        %3297 = vmatprep.subr.bf16.mxu0 %v3266
        %3298 = vmatpush1.bf16.msra.mxu0 %v3265
        %3299 = vmatprep.subr.bf16.mxu0 %v3268
        %3300 = vmatpush1.bf16.msra.mxu0 %v3267
        %3301 = vmatprep.subr.bf16.mxu0 0
        %3302 = vmatpush1.bf16.msra.mxu0 0
        %3303 = vmatprep.subr.bf16.mxu0 0
        %3304 = vmatpush1.bf16.msra.mxu0 0
        %3305 = vmatprep.subr.bf16.mxu0 0
        %3306 = vmatpush1.bf16.msra.mxu0 0
        %3307 = vmatprep.subr.bf16.mxu0 0
        %3308 = vmatpush1.bf16.msra.mxu0 0
        %3309 = vmatprep.subr.bf16.mxu0 0
        %3310 = vmatpush1.bf16.msra.mxu0 0
        %3311 = vmatprep.subr.bf16.mxu0 0
        %3312 = vmatpush1.bf16.msra.mxu0 0
        %3313 = vmatprep.subr.bf16.mxu0 0
        %3314 = vmatpush1.bf16.msra.mxu0 0
        %3315 = vmatprep.subr.bf16.mxu0 0
        %3316 = vmatpush1.bf16.msra.mxu0 0
        %3317 = vmatprep.mubr.bf16.mxu0 0
        %3318 = vmatmul.mubr.bf16.gmra.mrb[0].mxu0 %v2290
        %v3319 = vpop.f32.mrb[0].mxu0
        %v3320 = vadd.f32 0.0, %v3319
        %v3321 = vpop.f32.mrb[0].mxu0
        %v3322 = vadd.f32 0.0, %v3321
        %v3323 = vpop.f32.mrb[0].mxu0
        %v3324 = vadd.f32 0.0, %v3323
        %v3325 = vpop.f32.mrb[0].mxu0
        %v3326 = vadd.f32 0.0, %v3325
        %3327 = vmatprep.mubr.bf16.mxu0 0
        %3328 = vmatmul.mubr.bf16.gmra.mrb[0].mxu0 %v2291
        %v3329 = vpop.f32.mrb[0].mxu0
        %v3330 = vadd.f32 0.0, %v3329
        %v3331 = vpop.f32.mrb[0].mxu0
        %v3332 = vadd.f32 0.0, %v3331
        %v3333 = vpop.f32.mrb[0].mxu0
        %v3334 = vadd.f32 0.0, %v3333
        %v3335 = vpop.f32.mrb[0].mxu0
        %v3336 = vadd.f32 0.0, %v3335
        %3337 = vmatprep.mubr.bf16.mxu0 0
        %3338 = vmatmul.mubr.bf16.gmra.mrb[0].mxu0 %v2292
        %v3339 = vpop.f32.mrb[0].mxu0
        %v3340 = vadd.f32 0.0, %v3339
        %v3341 = vpop.f32.mrb[0].mxu0
        %v3342 = vadd.f32 0.0, %v3341
        %v3343 = vpop.f32.mrb[0].mxu0
        %v3344 = vadd.f32 0.0, %v3343
        %v3345 = vpop.f32.mrb[0].mxu0
        %v3346 = vadd.f32 0.0, %v3345
        %3347 = vmatprep.mubr.bf16.mxu0 0
        %3348 = vmatmul.mubr.bf16.gmra.mrb[0].mxu0 %v2293
        %v3349 = vpop.f32.mrb[0].mxu0
        %v3350 = vpop.f32.mrb[0].mxu0
        %v3351 = vpop.f32.mrb[0].mxu0
        %v3352 = vpop.f32.mrb[0].mxu0
        %3353 = vmatprep.mubr.bf16.mxu0 0
        %3354 = vmatmul.mubr.bf16.gmra.mrb[0].mxu0 %v2295
        %v3355 = vpop.f32.mrb[0].mxu0
        %v3356 = vadd.f32 0.0, %v3355
        %v3357 = vpop.f32.mrb[0].mxu0
        %v3358 = vadd.f32 0.0, %v3357
        %v3359 = vpop.f32.mrb[0].mxu0
        %v3360 = vadd.f32 0.0, %v3359
        %v3361 = vpop.f32.mrb[0].mxu0
        %v3362 = vadd.f32 0.0, %v3361
        %3363 = vmatprep.mubr.bf16.mxu0 0
        %3364 = vmatmul.mubr.bf16.gmra.mrb[0].mxu0 %v2296
        %v3365 = vpop.f32.mrb[0].mxu0
        %v3366 = vadd.f32 0.0, %v3365
        %v3367 = vpop.f32.mrb[0].mxu0
        %v3368 = vadd.f32 0.0, %v3367
        %v3369 = vpop.f32.mrb[0].mxu0
        %v3370 = vadd.f32 0.0, %v3369
        %v3371 = vpop.f32.mrb[0].mxu0
        %v3372 = vadd.f32 0.0, %v3371
        %3373 = vmatprep.mubr.bf16.mxu0 0
        %3374 = vmatmul.mubr.bf16.gmra.mrb[0].mxu0 %v2297
        %v3375 = vpop.f32.mrb[0].mxu0
        %v3376 = vadd.f32 0.0, %v3375
        %v3377 = vpop.f32.mrb[0].mxu0
        %v3378 = vadd.f32 0.0, %v3377
        %v3379 = vpop.f32.mrb[0].mxu0
        %v3380 = vadd.f32 0.0, %v3379
        %v3381 = vpop.f32.mrb[0].mxu0
        %v3382 = vadd.f32 0.0, %v3381
        %3383 = vmatprep.mubr.bf16.mxu0 0
        %3384 = vmatmul.mubr.bf16.gmra.mrb[0].mxu0 %v2293
        %v3385 = vpop.f32.mrb[0].mxu0
        %v3386 = vpop.f32.mrb[0].mxu0
        %v3387 = vpop.f32.mrb[0].mxu0
        %v3388 = vpop.f32.mrb[0].mxu0
        %3389 = vdwg.mxu0
        %v3390 = vadd.f32 %v3164, %v3320
        %v3391 = vadd.f32 %v3165, %v3322
        %v3392 = vadd.f32 %v3166, %v3324
        %v3393 = vadd.f32 %v3167, %v3326
        %v3394 = vadd.f32 %v3168, %v3330
        %v3395 = vadd.f32 %v3169, %v3332
        %v3396 = vadd.f32 %v3170, %v3334
        %v3397 = vadd.f32 %v3171, %v3336
        %v3398 = vadd.f32 %v3172, %v3340
        %v3399 = vadd.f32 %v3173, %v3342
        %v3400 = vadd.f32 %v3174, %v3344
        %v3401 = vadd.f32 %v3175, %v3346
        %v3402 = vadd.f32 %v3176, %v3356
        %v3403 = vadd.f32 %v3177, %v3358
        %v3404 = vadd.f32 %v3178, %v3360
        %v3405 = vadd.f32 %v3179, %v3362
        %v3406 = vadd.f32 %v3180, %v3366
        %v3407 = vadd.f32 %v3181, %v3368
        %v3408 = vadd.f32 %v3182, %v3370
        %v3409 = vadd.f32 %v3183, %v3372
        %v3410 = vadd.f32 %v3184, %v3376
        %v3411 = vadd.f32 %v3185, %v3378
        %v3412 = vadd.f32 %v3186, %v3380
        %v3413 = vadd.f32 %v3187, %v3382
        %v3414 = vmax.f32 %v3390, %v3402
        %v3415 = vmax.f32 %v3391, %v3403
        %v3416 = vmax.f32 %v3392, %v3404
        %v3417 = vmax.f32 %v3393, %v3405
        %v3418 = vmax.f32 %v3394, %v3406
        %v3419 = vmax.f32 %v3395, %v3407
        %v3420 = vmax.f32 %v3396, %v3408
        %v3421 = vmax.f32 %v3397, %v3409
        %v3422 = vmax.f32 %v3398, %v3410
        %v3423 = vmax.f32 %v3399, %v3411
        %v3424 = vmax.f32 %v3400, %v3412
        %v3425 = vmax.f32 %v3401, %v3413
        %v3426 = vmax.f32 %v3414, %v3415
        %v3427 = vmax.f32 %v3416, %v3417
        %v3428 = vmax.f32 %v3418, %v3419
        %v3429 = vmax.f32 %v3420, %v3421
        %v3430 = vmax.f32 %v3422, %v3423
        %v3431 = vmax.f32 %v3424, %v3425
        %v3432 = vld [vmem:[%s4] sm:$0x1]
        %v3434 = vlaneseq
        %v3435 = vshrl.u32 %v3434, 7
        %v3436 = vsub.s32 0, %v3435
        %v3437 = vrot.slane %v3432, %v3436
        %v3439 = vadd.f32 %v3426, %v3437
        %v3440 = vadd.f32 %v3427, %v3437
        %v3441 = vadd.f32 %v3428, %v3437
        %v3442 = vadd.f32 %v3429, %v3437
        %v3443 = vadd.f32 %v3430, %v3437
        %v3444 = vadd.f32 %v3431, %v3437
        %v3445 = vmax.f32 %v3439, 0.0
        %v3446 = vmax.f32 %v3440, 0.0
        %v3447 = vmax.f32 %v3441, 0.0
        %v3448 = vmax.f32 %v3442, 0.0
        %v3449 = vmax.f32 %v3443, 0.0
        %v3450 = vmax.f32 %v3444, 0.0
        %v3451 = vpack.c.bf16 %v3446, %v3445
        %v3452 = vpack.c.bf16 %v3448, %v3447
        %v3453 = vpack.c.bf16 %v3450, %v3449
        %v3454 = vld [vmem:[%s5] sm:$0xf]
        %v3455 = vld [vmem:[%s5 + $0x4] sm:$0xf]
        %v3456 = vld [vmem:[%s5 + $0x8] sm:$0xf]
        %v3457 = vld [vmem:[%s5 + $0xc] sm:$0xf]
        %v3458 = vld [vmem:[%s5 + $0x10] sm:$0xf]
        %v3459 = vld [vmem:[%s5 + $0x14] sm:$0xf]
        %v3460 = vld [vmem:[%s5 + $0x18] sm:$0xf]
        %v3461 = vld [vmem:[%s5 + $0x1c] sm:$0xf]
        %v3462 = vld [vmem:[%s5 + $0x20] sm:$0xf]
        %v3463 = vld [vmem:[%s5 + $0x24] sm:$0xf]
        %v3464 = vld [vmem:[%s5 + $0x28] sm:$0xf]
        %v3465 = vld [vmem:[%s5 + $0x2c] sm:$0xf]
        %v3466 = vld [vmem:[%s5 + $0x30] sm:$0xf]
        %v3467 = vld [vmem:[%s5 + $0x34] sm:$0xf]
        %v3468 = vld [vmem:[%s5 + $0x38] sm:$0xf]
        %v3469 = vld [vmem:[%s5 + $0x3c] sm:$0xf]
        %s3470 = scalar_lea.vmem %s5, 64
        %v3471 = vld [vmem:[%s3470] sm:$0xf]
        %v3472 = vld [vmem:[%s3470 + $0x4] sm:$0xf]
        %v3473 = vld [vmem:[%s3470 + $0x8] sm:$0xf]
        %v3474 = vld [vmem:[%s3470 + $0xc] sm:$0xf]
        %v3475 = vld [vmem:[%s3470 + $0x10] sm:$0xf]
        %v3476 = vld [vmem:[%s3470 + $0x14] sm:$0xf]
        %v3477 = vld [vmem:[%s3470 + $0x18] sm:$0xf]
        %v3478 = vld [vmem:[%s3470 + $0x1c] sm:$0xf]
        %v3479 = vld [vmem:[%s3470 + $0x20] sm:$0xf]
        %v3480 = vld [vmem:[%s3470 + $0x24] sm:$0xf]
        %v3481 = vld [vmem:[%s3470 + $0x28] sm:$0xf]
        %v3482 = vld [vmem:[%s3470 + $0x2c] sm:$0xf]
        %v3483 = vld [vmem:[%s3470 + $0x30] sm:$0xf]
        %v3484 = vld [vmem:[%s3470 + $0x34] sm:$0xf]
        %v3485 = vld [vmem:[%s3470 + $0x38] sm:$0xf]
        %v3486 = vld [vmem:[%s3470 + $0x3c] sm:$0xf]
        %v3488 = vrot.slane %v3451, 4
        %v3506 = vunpack.c.l.b16 %v3471
        %v3507 = vunpack.c.l.b16 %v3472
        %v3508 = vunpack.c.l.b16 %v3473
        %v3509 = vunpack.c.l.b16 %v3474
        %v3510 = vunpack.c.l.b16 %v3475
        %v3511 = vunpack.c.l.b16 %v3476
        %v3512 = vunpack.c.l.b16 %v3477
        %v3513 = vunpack.c.l.b16 %v3478
        %v3514 = vunpack.c.l.b16 %v3479
        %v3515 = vunpack.c.l.b16 %v3480
        %v3516 = vunpack.c.l.b16 %v3481
        %v3517 = vunpack.c.l.b16 %v3482
        %v3518 = vunpack.c.l.b16 %v3483
        %v3519 = vunpack.c.l.b16 %v3484
        %v3520 = vunpack.c.l.b16 %v3485
        %v3521 = vunpack.c.l.b16 %v3486
        %v3522 = vpack.c.b16 %v3507, %v3506
        %v3523 = vpack.c.b16 %v3509, %v3508
        %v3524 = vpack.c.b16 %v3511, %v3510
        %v3525 = vpack.c.b16 %v3513, %v3512
        %v3526 = vpack.c.b16 %v3515, %v3514
        %v3527 = vpack.c.b16 %v3517, %v3516
        %v3528 = vpack.c.b16 %v3519, %v3518
        %v3529 = vpack.c.b16 %v3521, %v3520
        %3538 = vmatprep.subr.bf16.mxu0 0
        %3539 = vmatpush1.bf16.msra.mxu0 %v3522
        %3540 = vmatprep.subr.bf16.mxu0 0
        %3541 = vmatpush1.bf16.msra.mxu0 %v3523
        %3542 = vmatprep.subr.bf16.mxu0 0
        %3543 = vmatpush1.bf16.msra.mxu0 %v3524
        %3544 = vmatprep.subr.bf16.mxu0 0
        %3545 = vmatpush1.bf16.msra.mxu0 %v3525
        %3546 = vmatprep.subr.bf16.mxu0 0
        %3547 = vmatpush1.bf16.msra.mxu0 %v3526
        %3548 = vmatprep.subr.bf16.mxu0 0
        %3549 = vmatpush1.bf16.msra.mxu0 %v3527
        %3550 = vmatprep.subr.bf16.mxu0 0
        %3551 = vmatpush1.bf16.msra.mxu0 %v3528
        %3552 = vmatprep.subr.bf16.mxu0 0
        %3553 = vmatpush1.bf16.msra.mxu0 %v3529
        %3554 = vmatprep.subr.bf16.mxu0 0
        %3555 = vmatpush1.bf16.msra.mxu0 0
        %3556 = vmatprep.subr.bf16.mxu0 0
        %3557 = vmatpush1.bf16.msra.mxu0 0
        %3558 = vmatprep.subr.bf16.mxu0 0
        %3559 = vmatpush1.bf16.msra.mxu0 0
        %3560 = vmatprep.subr.bf16.mxu0 0
        %3561 = vmatpush1.bf16.msra.mxu0 0
        %3562 = vmatprep.subr.bf16.mxu0 0
        %3563 = vmatpush1.bf16.msra.mxu0 0
        %3564 = vmatprep.subr.bf16.mxu0 0
        %3565 = vmatpush1.bf16.msra.mxu0 0
        %3566 = vmatprep.subr.bf16.mxu0 0
        %3567 = vmatpush1.bf16.msra.mxu0 0
        %3568 = vmatprep.subr.bf16.mxu0 0
        %3569 = vmatpush1.bf16.msra.mxu0 0
        %3570 = vmatprep.mubr.bf16.mxu0 0
        %3571 = vmatmul.mubr.bf16.gmra.mrb[0].mxu0 %v3488
        %v3572 = vpop.f32.mrb[0].mxu0
        %v3573 = vadd.f32 0.0, %v3572
        %v3574 = vpop.f32.mrb[0].mxu0
        %v3575 = vpop.f32.mrb[0].mxu0
        %v3576 = vpop.f32.mrb[0].mxu0
        %3577 = vdwg.mxu0
        %v3594 = vunpack.c.l.b16 %v3454
        %v3595 = vunpack.c.l.b16 %v3455
        %v3596 = vunpack.c.l.b16 %v3456
        %v3597 = vunpack.c.l.b16 %v3457
        %v3598 = vunpack.c.l.b16 %v3458
        %v3599 = vunpack.c.l.b16 %v3459
        %v3600 = vunpack.c.l.b16 %v3460
        %v3601 = vunpack.c.l.b16 %v3461
        %v3602 = vunpack.c.l.b16 %v3462
        %v3603 = vunpack.c.l.b16 %v3463
        %v3604 = vunpack.c.l.b16 %v3464
        %v3605 = vunpack.c.l.b16 %v3465
        %v3606 = vunpack.c.l.b16 %v3466
        %v3607 = vunpack.c.l.b16 %v3467
        %v3608 = vunpack.c.l.b16 %v3468
        %v3609 = vunpack.c.l.b16 %v3469
        %v3610 = vpack.c.b16 %v3595, %v3594
        %v3611 = vpack.c.b16 %v3597, %v3596
        %v3612 = vpack.c.b16 %v3599, %v3598
        %v3613 = vpack.c.b16 %v3601, %v3600
        %v3614 = vpack.c.b16 %v3603, %v3602
        %v3615 = vpack.c.b16 %v3605, %v3604
        %v3616 = vpack.c.b16 %v3607, %v3606
        %v3617 = vpack.c.b16 %v3609, %v3608
        %3626 = vmatprep.subr.bf16.mxu0 0
        %3627 = vmatpush1.bf16.msra.mxu0 %v3610
        %3628 = vmatprep.subr.bf16.mxu0 0
        %3629 = vmatpush1.bf16.msra.mxu0 %v3611
        %3630 = vmatprep.subr.bf16.mxu0 0
        %3631 = vmatpush1.bf16.msra.mxu0 %v3612
        %3632 = vmatprep.subr.bf16.mxu0 0
        %3633 = vmatpush1.bf16.msra.mxu0 %v3613
        %3634 = vmatprep.subr.bf16.mxu0 0
        %3635 = vmatpush1.bf16.msra.mxu0 %v3614
        %3636 = vmatprep.subr.bf16.mxu0 0
        %3637 = vmatpush1.bf16.msra.mxu0 %v3615
        %3638 = vmatprep.subr.bf16.mxu0 0
        %3639 = vmatpush1.bf16.msra.mxu0 %v3616
        %3640 = vmatprep.subr.bf16.mxu0 0
        %3641 = vmatpush1.bf16.msra.mxu0 %v3617
        %3642 = vmatprep.subr.bf16.mxu0 0
        %3643 = vmatpush1.bf16.msra.mxu0 0
        %3644 = vmatprep.subr.bf16.mxu0 0
        %3645 = vmatpush1.bf16.msra.mxu0 0
        %3646 = vmatprep.subr.bf16.mxu0 0
        %3647 = vmatpush1.bf16.msra.mxu0 0
        %3648 = vmatprep.subr.bf16.mxu0 0
        %3649 = vmatpush1.bf16.msra.mxu0 0
        %3650 = vmatprep.subr.bf16.mxu0 0
        %3651 = vmatpush1.bf16.msra.mxu0 0
        %3652 = vmatprep.subr.bf16.mxu0 0
        %3653 = vmatpush1.bf16.msra.mxu0 0
        %3654 = vmatprep.subr.bf16.mxu0 0
        %3655 = vmatpush1.bf16.msra.mxu0 0
        %3656 = vmatprep.subr.bf16.mxu0 0
        %3657 = vmatpush1.bf16.msra.mxu0 0
        %3658 = vmatprep.mubr.bf16.mxu0 0
        %3659 = vmatmul.mubr.bf16.gmra.mrb[0].mxu0 %v3451
        %v3660 = vpop.f32.mrb[0].mxu0
        %v3661 = vadd.f32 %v3573, %v3660
        %v3662 = vpop.f32.mrb[0].mxu0
        %v3663 = vpop.f32.mrb[0].mxu0
        %v3664 = vpop.f32.mrb[0].mxu0
        %3665 = vdwg.mxu0
        %s3666 = scalar_lea.vmem %s5, 128
        %v3667 = vld [vmem:[%s3666] sm:$0xf]
        %v3668 = vld [vmem:[%s3666 + $0x4] sm:$0xf]
        %v3669 = vld [vmem:[%s3666 + $0x8] sm:$0xf]
        %v3670 = vld [vmem:[%s3666 + $0xc] sm:$0xf]
        %v3671 = vld [vmem:[%s3666 + $0x10] sm:$0xf]
        %v3672 = vld [vmem:[%s3666 + $0x14] sm:$0xf]
        %v3673 = vld [vmem:[%s3666 + $0x18] sm:$0xf]
        %v3674 = vld [vmem:[%s3666 + $0x1c] sm:$0xf]
        %v3675 = vld [vmem:[%s3666 + $0x20] sm:$0xf]
        %v3676 = vld [vmem:[%s3666 + $0x24] sm:$0xf]
        %v3677 = vld [vmem:[%s3666 + $0x28] sm:$0xf]
        %v3678 = vld [vmem:[%s3666 + $0x2c] sm:$0xf]
        %v3679 = vld [vmem:[%s3666 + $0x30] sm:$0xf]
        %v3680 = vld [vmem:[%s3666 + $0x34] sm:$0xf]
        %v3681 = vld [vmem:[%s3666 + $0x38] sm:$0xf]
        %v3682 = vld [vmem:[%s3666 + $0x3c] sm:$0xf]
        %v3699 = vunpack.c.l.b16 %v3667
        %v3700 = vunpack.c.l.b16 %v3668
        %v3701 = vunpack.c.l.b16 %v3669
        %v3702 = vunpack.c.l.b16 %v3670
        %v3703 = vunpack.c.l.b16 %v3671
        %v3704 = vunpack.c.l.b16 %v3672
        %v3705 = vunpack.c.l.b16 %v3673
        %v3706 = vunpack.c.l.b16 %v3674
        %v3707 = vunpack.c.l.b16 %v3675
        %v3708 = vunpack.c.l.b16 %v3676
        %v3709 = vunpack.c.l.b16 %v3677
        %v3710 = vunpack.c.l.b16 %v3678
        %v3711 = vunpack.c.l.b16 %v3679
        %v3712 = vunpack.c.l.b16 %v3680
        %v3713 = vunpack.c.l.b16 %v3681
        %v3714 = vunpack.c.l.b16 %v3682
        %v3715 = vpack.c.b16 %v3700, %v3699
        %v3716 = vpack.c.b16 %v3702, %v3701
        %v3717 = vpack.c.b16 %v3704, %v3703
        %v3718 = vpack.c.b16 %v3706, %v3705
        %v3719 = vpack.c.b16 %v3708, %v3707
        %v3720 = vpack.c.b16 %v3710, %v3709
        %v3721 = vpack.c.b16 %v3712, %v3711
        %v3722 = vpack.c.b16 %v3714, %v3713
        %3731 = vmatprep.subr.bf16.mxu0 0
        %3732 = vmatpush1.bf16.msra.mxu0 %v3715
        %3733 = vmatprep.subr.bf16.mxu0 0
        %3734 = vmatpush1.bf16.msra.mxu0 %v3716
        %3735 = vmatprep.subr.bf16.mxu0 0
        %3736 = vmatpush1.bf16.msra.mxu0 %v3717
        %3737 = vmatprep.subr.bf16.mxu0 0
        %3738 = vmatpush1.bf16.msra.mxu0 %v3718
        %3739 = vmatprep.subr.bf16.mxu0 0
        %3740 = vmatpush1.bf16.msra.mxu0 %v3719
        %3741 = vmatprep.subr.bf16.mxu0 0
        %3742 = vmatpush1.bf16.msra.mxu0 %v3720
        %3743 = vmatprep.subr.bf16.mxu0 0
        %3744 = vmatpush1.bf16.msra.mxu0 %v3721
        %3745 = vmatprep.subr.bf16.mxu0 0
        %3746 = vmatpush1.bf16.msra.mxu0 %v3722
        %3747 = vmatprep.subr.bf16.mxu0 0
        %3748 = vmatpush1.bf16.msra.mxu0 0
        %3749 = vmatprep.subr.bf16.mxu0 0
        %3750 = vmatpush1.bf16.msra.mxu0 0
        %3751 = vmatprep.subr.bf16.mxu0 0
        %3752 = vmatpush1.bf16.msra.mxu0 0
        %3753 = vmatprep.subr.bf16.mxu0 0
        %3754 = vmatpush1.bf16.msra.mxu0 0
        %3755 = vmatprep.subr.bf16.mxu0 0
        %3756 = vmatpush1.bf16.msra.mxu0 0
        %3757 = vmatprep.subr.bf16.mxu0 0
        %3758 = vmatpush1.bf16.msra.mxu0 0
        %3759 = vmatprep.subr.bf16.mxu0 0
        %3760 = vmatpush1.bf16.msra.mxu0 0
        %3761 = vmatprep.subr.bf16.mxu0 0
        %3762 = vmatpush1.bf16.msra.mxu0 0
        %3763 = vmatprep.mubr.bf16.mxu0 0
        %3764 = vmatmul.mubr.bf16.gmra.mrb[0].mxu0 %v3452
        %v3765 = vpop.f32.mrb[0].mxu0
        %v3766 = vadd.f32 0.0, %v3765
        %v3767 = vpop.f32.mrb[0].mxu0
        %v3768 = vpop.f32.mrb[0].mxu0
        %v3769 = vpop.f32.mrb[0].mxu0
        %3770 = vdwg.mxu0
        %v3771 = vadd.f32 %v3661, %v3766
        %s3772 = scalar_lea.vmem %s5, 192
        %v3773 = vld [vmem:[%s3772] sm:$0xf]
        %v3774 = vld [vmem:[%s3772 + $0x4] sm:$0xf]
        %v3775 = vld [vmem:[%s3772 + $0x8] sm:$0xf]
        %v3776 = vld [vmem:[%s3772 + $0xc] sm:$0xf]
        %v3777 = vld [vmem:[%s3772 + $0x10] sm:$0xf]
        %v3778 = vld [vmem:[%s3772 + $0x14] sm:$0xf]
        %v3779 = vld [vmem:[%s3772 + $0x18] sm:$0xf]
        %v3780 = vld [vmem:[%s3772 + $0x1c] sm:$0xf]
        %v3781 = vld [vmem:[%s3772 + $0x20] sm:$0xf]
        %v3782 = vld [vmem:[%s3772 + $0x24] sm:$0xf]
        %v3783 = vld [vmem:[%s3772 + $0x28] sm:$0xf]
        %v3784 = vld [vmem:[%s3772 + $0x2c] sm:$0xf]
        %v3785 = vld [vmem:[%s3772 + $0x30] sm:$0xf]
        %v3786 = vld [vmem:[%s3772 + $0x34] sm:$0xf]
        %v3787 = vld [vmem:[%s3772 + $0x38] sm:$0xf]
        %v3788 = vld [vmem:[%s3772 + $0x3c] sm:$0xf]
        %v3790 = vrot.slane %v3452, 4
        %v3808 = vunpack.c.l.b16 %v3773
        %v3809 = vunpack.c.l.b16 %v3774
        %v3810 = vunpack.c.l.b16 %v3775
        %v3811 = vunpack.c.l.b16 %v3776
        %v3812 = vunpack.c.l.b16 %v3777
        %v3813 = vunpack.c.l.b16 %v3778
        %v3814 = vunpack.c.l.b16 %v3779
        %v3815 = vunpack.c.l.b16 %v3780
        %v3816 = vunpack.c.l.b16 %v3781
        %v3817 = vunpack.c.l.b16 %v3782
        %v3818 = vunpack.c.l.b16 %v3783
        %v3819 = vunpack.c.l.b16 %v3784
        %v3820 = vunpack.c.l.b16 %v3785
        %v3821 = vunpack.c.l.b16 %v3786
        %v3822 = vunpack.c.l.b16 %v3787
        %v3823 = vunpack.c.l.b16 %v3788
        %v3824 = vpack.c.b16 %v3809, %v3808
        %v3825 = vpack.c.b16 %v3811, %v3810
        %v3826 = vpack.c.b16 %v3813, %v3812
        %v3827 = vpack.c.b16 %v3815, %v3814
        %v3828 = vpack.c.b16 %v3817, %v3816
        %v3829 = vpack.c.b16 %v3819, %v3818
        %v3830 = vpack.c.b16 %v3821, %v3820
        %v3831 = vpack.c.b16 %v3823, %v3822
        %3840 = vmatprep.subr.bf16.mxu0 0
        %3841 = vmatpush1.bf16.msra.mxu0 %v3824
        %3842 = vmatprep.subr.bf16.mxu0 0
        %3843 = vmatpush1.bf16.msra.mxu0 %v3825
        %3844 = vmatprep.subr.bf16.mxu0 0
        %3845 = vmatpush1.bf16.msra.mxu0 %v3826
        %3846 = vmatprep.subr.bf16.mxu0 0
        %3847 = vmatpush1.bf16.msra.mxu0 %v3827
        %3848 = vmatprep.subr.bf16.mxu0 0
        %3849 = vmatpush1.bf16.msra.mxu0 %v3828
        %3850 = vmatprep.subr.bf16.mxu0 0
        %3851 = vmatpush1.bf16.msra.mxu0 %v3829
        %3852 = vmatprep.subr.bf16.mxu0 0
        %3853 = vmatpush1.bf16.msra.mxu0 %v3830
        %3854 = vmatprep.subr.bf16.mxu0 0
        %3855 = vmatpush1.bf16.msra.mxu0 %v3831
        %3856 = vmatprep.subr.bf16.mxu0 0
        %3857 = vmatpush1.bf16.msra.mxu0 0
        %3858 = vmatprep.subr.bf16.mxu0 0
        %3859 = vmatpush1.bf16.msra.mxu0 0
        %3860 = vmatprep.subr.bf16.mxu0 0
        %3861 = vmatpush1.bf16.msra.mxu0 0
        %3862 = vmatprep.subr.bf16.mxu0 0
        %3863 = vmatpush1.bf16.msra.mxu0 0
        %3864 = vmatprep.subr.bf16.mxu0 0
        %3865 = vmatpush1.bf16.msra.mxu0 0
        %3866 = vmatprep.subr.bf16.mxu0 0
        %3867 = vmatpush1.bf16.msra.mxu0 0
        %3868 = vmatprep.subr.bf16.mxu0 0
        %3869 = vmatpush1.bf16.msra.mxu0 0
        %3870 = vmatprep.subr.bf16.mxu0 0
        %3871 = vmatpush1.bf16.msra.mxu0 0
        %3872 = vmatprep.mubr.bf16.mxu0 0
        %3873 = vmatmul.mubr.bf16.gmra.mrb[0].mxu0 %v3790
        %v3874 = vpop.f32.mrb[0].mxu0
        %v3875 = vadd.f32 0.0, %v3874
        %v3876 = vpop.f32.mrb[0].mxu0
        %v3877 = vpop.f32.mrb[0].mxu0
        %v3878 = vpop.f32.mrb[0].mxu0
        %3879 = vdwg.mxu0
        %v3880 = vadd.f32 %v3771, %v3875
        %s3881 = scalar_lea.vmem %s5, 256
        %v3882 = vld [vmem:[%s3881] sm:$0xf]
        %v3883 = vld [vmem:[%s3881 + $0x4] sm:$0xf]
        %v3884 = vld [vmem:[%s3881 + $0x8] sm:$0xf]
        %v3885 = vld [vmem:[%s3881 + $0xc] sm:$0xf]
        %v3886 = vld [vmem:[%s3881 + $0x10] sm:$0xf]
        %v3887 = vld [vmem:[%s3881 + $0x14] sm:$0xf]
        %v3888 = vld [vmem:[%s3881 + $0x18] sm:$0xf]
        %v3889 = vld [vmem:[%s3881 + $0x1c] sm:$0xf]
        %v3890 = vld [vmem:[%s3881 + $0x20] sm:$0xf]
        %v3891 = vld [vmem:[%s3881 + $0x24] sm:$0xf]
        %v3892 = vld [vmem:[%s3881 + $0x28] sm:$0xf]
        %v3893 = vld [vmem:[%s3881 + $0x2c] sm:$0xf]
        %v3894 = vld [vmem:[%s3881 + $0x30] sm:$0xf]
        %v3895 = vld [vmem:[%s3881 + $0x34] sm:$0xf]
        %v3896 = vld [vmem:[%s3881 + $0x38] sm:$0xf]
        %v3897 = vld [vmem:[%s3881 + $0x3c] sm:$0xf]
        %v3914 = vunpack.c.l.b16 %v3882
        %v3915 = vunpack.c.l.b16 %v3883
        %v3916 = vunpack.c.l.b16 %v3884
        %v3917 = vunpack.c.l.b16 %v3885
        %v3918 = vunpack.c.l.b16 %v3886
        %v3919 = vunpack.c.l.b16 %v3887
        %v3920 = vunpack.c.l.b16 %v3888
        %v3921 = vunpack.c.l.b16 %v3889
        %v3922 = vunpack.c.l.b16 %v3890
        %v3923 = vunpack.c.l.b16 %v3891
        %v3924 = vunpack.c.l.b16 %v3892
        %v3925 = vunpack.c.l.b16 %v3893
        %v3926 = vunpack.c.l.b16 %v3894
        %v3927 = vunpack.c.l.b16 %v3895
        %v3928 = vunpack.c.l.b16 %v3896
        %v3929 = vunpack.c.l.b16 %v3897
        %v3930 = vpack.c.b16 %v3915, %v3914
        %v3931 = vpack.c.b16 %v3917, %v3916
        %v3932 = vpack.c.b16 %v3919, %v3918
        %v3933 = vpack.c.b16 %v3921, %v3920
        %v3934 = vpack.c.b16 %v3923, %v3922
        %v3935 = vpack.c.b16 %v3925, %v3924
        %v3936 = vpack.c.b16 %v3927, %v3926
        %v3937 = vpack.c.b16 %v3929, %v3928
        %3946 = vmatprep.subr.bf16.mxu0 0
        %3947 = vmatpush1.bf16.msra.mxu0 %v3930
        %3948 = vmatprep.subr.bf16.mxu0 0
        %3949 = vmatpush1.bf16.msra.mxu0 %v3931
        %3950 = vmatprep.subr.bf16.mxu0 0
        %3951 = vmatpush1.bf16.msra.mxu0 %v3932
        %3952 = vmatprep.subr.bf16.mxu0 0
        %3953 = vmatpush1.bf16.msra.mxu0 %v3933
        %3954 = vmatprep.subr.bf16.mxu0 0
        %3955 = vmatpush1.bf16.msra.mxu0 %v3934
        %3956 = vmatprep.subr.bf16.mxu0 0
        %3957 = vmatpush1.bf16.msra.mxu0 %v3935
        %3958 = vmatprep.subr.bf16.mxu0 0
        %3959 = vmatpush1.bf16.msra.mxu0 %v3936
        %3960 = vmatprep.subr.bf16.mxu0 0
        %3961 = vmatpush1.bf16.msra.mxu0 %v3937
        %3962 = vmatprep.subr.bf16.mxu0 0
        %3963 = vmatpush1.bf16.msra.mxu0 0
        %3964 = vmatprep.subr.bf16.mxu0 0
        %3965 = vmatpush1.bf16.msra.mxu0 0
        %3966 = vmatprep.subr.bf16.mxu0 0
        %3967 = vmatpush1.bf16.msra.mxu0 0
        %3968 = vmatprep.subr.bf16.mxu0 0
        %3969 = vmatpush1.bf16.msra.mxu0 0
        %3970 = vmatprep.subr.bf16.mxu0 0
        %3971 = vmatpush1.bf16.msra.mxu0 0
        %3972 = vmatprep.subr.bf16.mxu0 0
        %3973 = vmatpush1.bf16.msra.mxu0 0
        %3974 = vmatprep.subr.bf16.mxu0 0
        %3975 = vmatpush1.bf16.msra.mxu0 0
        %3976 = vmatprep.subr.bf16.mxu0 0
        %3977 = vmatpush1.bf16.msra.mxu0 0
        %3978 = vmatprep.mubr.bf16.mxu0 0
        %3979 = vmatmul.mubr.bf16.gmra.mrb[0].mxu0 %v3453
        %v3980 = vpop.f32.mrb[0].mxu0
        %v3981 = vadd.f32 0.0, %v3980
        %v3982 = vpop.f32.mrb[0].mxu0
        %v3983 = vpop.f32.mrb[0].mxu0
        %v3984 = vpop.f32.mrb[0].mxu0
        %3985 = vdwg.mxu0
        %v3986 = vadd.f32 %v3880, %v3981
        %v3987 = vld [vmem:[%s6] sm:$0x1]
        %v3989 = vlaneseq
        %v3990 = vshrl.u32 %v3989, 7
        %v3991 = vsub.s32 0, %v3990
        %v3992 = vrot.slane %v3987, %v3991
        %v3994 = vadd.f32 %v3986, %v3992
        %v3995 = vmax.f32 %v3994, 0.0
        %v3996 = vpack.c.bf16 %v3995, %v3995
        %v3997 = vld [vmem:[%s7] sm:$0xf]
        %v3998 = vld [vmem:[%s7 + $0x4] sm:$0xf]
        %v3999 = vld [vmem:[%s7 + $0x8] sm:$0xf]
        %v4000 = vld [vmem:[%s7 + $0xc] sm:$0xf]
        %v4001 = vld [vmem:[%s7 + $0x10] sm:$0xf]
        %v4002 = vld [vmem:[%s7 + $0x14] sm:$0xf]
        %v4003 = vld [vmem:[%s7 + $0x18] sm:$0xf]
        %v4004 = vld [vmem:[%s7 + $0x1c] sm:$0xf]
        %v4005 = vld [vmem:[%s7 + $0x20] sm:$0xf]
        %v4006 = vld [vmem:[%s7 + $0x24] sm:$0xf]
        %v4007 = vld [vmem:[%s7 + $0x28] sm:$0xf]
        %v4008 = vld [vmem:[%s7 + $0x2c] sm:$0xf]
        %v4009 = vld [vmem:[%s7 + $0x30] sm:$0xf]
        %v4010 = vld [vmem:[%s7 + $0x34] sm:$0xf]
        %v4011 = vld [vmem:[%s7 + $0x38] sm:$0xf]
        %v4012 = vld [vmem:[%s7 + $0x3c] sm:$0xf]
        %v4013 = vld [vmem:[%s8] sm:$0x1]
        %v4015 = vlaneseq
        %v4016 = vshrl.u32 %v4015, 7
        %v4017 = vsub.s32 0, %v4016
        %v4018 = vrot.slane %v4013, %v4017
        %v4036 = vunpack.c.l.b16 %v3997
        %v4037 = vunpack.c.l.b16 %v3998
        %v4038 = vunpack.c.l.b16 %v3999
        %v4039 = vunpack.c.l.b16 %v4000
        %v4040 = vunpack.c.l.b16 %v4001
        %v4041 = vunpack.c.l.b16 %v4002
        %v4042 = vunpack.c.l.b16 %v4003
        %v4043 = vunpack.c.l.b16 %v4004
        %v4044 = vunpack.c.l.b16 %v4005
        %v4045 = vunpack.c.l.b16 %v4006
        %v4046 = vunpack.c.l.b16 %v4007
        %v4047 = vunpack.c.l.b16 %v4008
        %v4048 = vunpack.c.l.b16 %v4009
        %v4049 = vunpack.c.l.b16 %v4010
        %v4050 = vunpack.c.l.b16 %v4011
        %v4051 = vunpack.c.l.b16 %v4012
        %v4052 = vpack.c.b16 %v4037, %v4036
        %v4053 = vpack.c.b16 %v4039, %v4038
        %v4054 = vpack.c.b16 %v4041, %v4040
        %v4055 = vpack.c.b16 %v4043, %v4042
        %v4056 = vpack.c.b16 %v4045, %v4044
        %v4057 = vpack.c.b16 %v4047, %v4046
        %v4058 = vpack.c.b16 %v4049, %v4048
        %v4059 = vpack.c.b16 %v4051, %v4050
        %4068 = vmatprep.subr.bf16.mxu0 0
        %4069 = vmatpush1.bf16.msra.mxu0 %v4052
        %4070 = vmatprep.subr.bf16.mxu0 0
        %4071 = vmatpush1.bf16.msra.mxu0 %v4053
        %4072 = vmatprep.subr.bf16.mxu0 0
        %4073 = vmatpush1.bf16.msra.mxu0 %v4054
        %4074 = vmatprep.subr.bf16.mxu0 0
        %4075 = vmatpush1.bf16.msra.mxu0 %v4055
        %4076 = vmatprep.subr.bf16.mxu0 0
        %4077 = vmatpush1.bf16.msra.mxu0 %v4056
        %4078 = vmatprep.subr.bf16.mxu0 0
        %4079 = vmatpush1.bf16.msra.mxu0 %v4057
        %4080 = vmatprep.subr.bf16.mxu0 0
        %4081 = vmatpush1.bf16.msra.mxu0 %v4058
        %4082 = vmatprep.subr.bf16.mxu0 0
        %4083 = vmatpush1.bf16.msra.mxu0 %v4059
        %4084 = vmatprep.subr.bf16.mxu0 0
        %4085 = vmatpush1.bf16.msra.mxu0 0
        %4086 = vmatprep.subr.bf16.mxu0 0
        %4087 = vmatpush1.bf16.msra.mxu0 0
        %4088 = vmatprep.subr.bf16.mxu0 0
        %4089 = vmatpush1.bf16.msra.mxu0 0
        %4090 = vmatprep.subr.bf16.mxu0 0
        %4091 = vmatpush1.bf16.msra.mxu0 0
        %4092 = vmatprep.subr.bf16.mxu0 0
        %4093 = vmatpush1.bf16.msra.mxu0 0
        %4094 = vmatprep.subr.bf16.mxu0 0
        %4095 = vmatpush1.bf16.msra.mxu0 0
        %4096 = vmatprep.subr.bf16.mxu0 0
        %4097 = vmatpush1.bf16.msra.mxu0 0
        %4098 = vmatprep.subr.bf16.mxu0 0
        %4099 = vmatpush1.bf16.msra.mxu0 0
        %4100 = vmatprep.mubr.bf16.mxu0 0
        %4101 = vmatmul.mubr.bf16.gmra.mrb[0].mxu0 %v3996
        %v4102 = vpop.f32.mrb[0].mxu0
        %v4103 = vadd.f32 %v4018, %v4102
        %v4104 = vpop.f32.mrb[0].mxu0
        %v4105 = vpop.f32.mrb[0].mxu0
        %v4106 = vpop.f32.mrb[0].mxu0
        %4107 = vdwg.mxu0
        %v4108 = vmax.f32 %v4103, 0.0
        %v4109 = vpack.c.bf16 %v4108, %v4108
        %v4110 = vld [vmem:[%s9] sm:$0xf]
        %v4111 = vld [vmem:[%s9 + $0x4] sm:$0xf]
        %v4112 = vld [vmem:[%s9 + $0x8] sm:$0xf]
        %v4113 = vld [vmem:[%s9 + $0xc] sm:$0xf]
        %v4114 = vld [vmem:[%s9 + $0x10] sm:$0xf]
        %v4115 = vld [vmem:[%s9 + $0x14] sm:$0xf]
        %v4116 = vld [vmem:[%s9 + $0x18] sm:$0xf]
        %v4117 = vld [vmem:[%s9 + $0x1c] sm:$0xf]
        %v4118 = vld [vmem:[%s9 + $0x20] sm:$0xf]
        %v4119 = vld [vmem:[%s9 + $0x24] sm:$0xf]
        %v4120 = vld [vmem:[%s9 + $0x28] sm:$0xf]
        %v4121 = vld [vmem:[%s9 + $0x2c] sm:$0xf]
        %v4122 = vld [vmem:[%s9 + $0x30] sm:$0xf]
        %v4123 = vld [vmem:[%s9 + $0x34] sm:$0xf]
        %v4124 = vld [vmem:[%s9 + $0x38] sm:$0xf]
        %v4125 = vld [vmem:[%s9 + $0x3c] sm:$0xf]
        %v4126 = vld [vmem:[%s10] sm:$0x1]
        %v4128 = vlaneseq
        %v4129 = vshrl.u32 %v4128, 7
        %v4130 = vsub.s32 0, %v4129
        %v4131 = vrot.slane %v4126, %v4130
        %v4149 = vunpack.c.l.b16 %v4110
        %v4150 = vunpack.c.l.b16 %v4111
        %v4151 = vunpack.c.l.b16 %v4112
        %v4152 = vunpack.c.l.b16 %v4113
        %v4153 = vunpack.c.l.b16 %v4114
        %v4154 = vunpack.c.l.b16 %v4115
        %v4155 = vunpack.c.l.b16 %v4116
        %v4156 = vunpack.c.l.b16 %v4117
        %v4157 = vunpack.c.l.b16 %v4118
        %v4158 = vunpack.c.l.b16 %v4119
        %v4159 = vunpack.c.l.b16 %v4120
        %v4160 = vunpack.c.l.b16 %v4121
        %v4161 = vunpack.c.l.b16 %v4122
        %v4162 = vunpack.c.l.b16 %v4123
        %v4163 = vunpack.c.l.b16 %v4124
        %v4164 = vunpack.c.l.b16 %v4125
        %v4165 = vpack.c.b16 %v4150, %v4149
        %v4166 = vpack.c.b16 %v4152, %v4151
        %v4167 = vpack.c.b16 %v4154, %v4153
        %v4168 = vpack.c.b16 %v4156, %v4155
        %v4169 = vpack.c.b16 %v4158, %v4157
        %v4170 = vpack.c.b16 %v4160, %v4159
        %v4171 = vpack.c.b16 %v4162, %v4161
        %v4172 = vpack.c.b16 %v4164, %v4163
        %4181 = vmatprep.subr.bf16.mxu0 0
        %4182 = vmatpush1.bf16.msra.mxu0 %v4165
        %4183 = vmatprep.subr.bf16.mxu0 0
        %4184 = vmatpush1.bf16.msra.mxu0 %v4166
        %4185 = vmatprep.subr.bf16.mxu0 0
        %4186 = vmatpush1.bf16.msra.mxu0 %v4167
        %4187 = vmatprep.subr.bf16.mxu0 0
        %4188 = vmatpush1.bf16.msra.mxu0 %v4168
        %4189 = vmatprep.subr.bf16.mxu0 0
        %4190 = vmatpush1.bf16.msra.mxu0 %v4169
        %4191 = vmatprep.subr.bf16.mxu0 0
        %4192 = vmatpush1.bf16.msra.mxu0 %v4170
        %4193 = vmatprep.subr.bf16.mxu0 0
        %4194 = vmatpush1.bf16.msra.mxu0 %v4171
        %4195 = vmatprep.subr.bf16.mxu0 0
        %4196 = vmatpush1.bf16.msra.mxu0 %v4172
        %4197 = vmatprep.subr.bf16.mxu0 0
        %4198 = vmatpush1.bf16.msra.mxu0 0
        %4199 = vmatprep.subr.bf16.mxu0 0
        %4200 = vmatpush1.bf16.msra.mxu0 0
        %4201 = vmatprep.subr.bf16.mxu0 0
        %4202 = vmatpush1.bf16.msra.mxu0 0
        %4203 = vmatprep.subr.bf16.mxu0 0
        %4204 = vmatpush1.bf16.msra.mxu0 0
        %4205 = vmatprep.subr.bf16.mxu0 0
        %4206 = vmatpush1.bf16.msra.mxu0 0
        %4207 = vmatprep.subr.bf16.mxu0 0
        %4208 = vmatpush1.bf16.msra.mxu0 0
        %4209 = vmatprep.subr.bf16.mxu0 0
        %4210 = vmatpush1.bf16.msra.mxu0 0
        %4211 = vmatprep.subr.bf16.mxu0 0
        %4212 = vmatpush1.bf16.msra.mxu0 0
        %4213 = vmatprep.mubr.bf16.mxu0 0
        %4214 = vmatmul.mubr.bf16.gmra.mrb[0].mxu0 %v4109
        %v4215 = vpop.f32.mrb[0].mxu0
        %v4216 = vadd.f32 %v4131, %v4215
        %v4217 = vpop.f32.mrb[0].mxu0
        %v4218 = vpop.f32.mrb[0].mxu0
        %v4219 = vpop.f32.mrb[0].mxu0
        %4220 = vdwg.mxu0
        %4221 = vst [vmem:[%s379] sm:$0xff] %v4216
        %s4222 = sand.u32 %s269, 1
        %s4223 = scalar_lea.sflag [#allocation3], %s4222
        %s4224 = sand.u32 %s269, 1
        %s4225 = smul.addr %s4224, 8
        %s4226 = scalar_lea.vmem [#allocation2], %s4225
        // Predicated region
        $region65: #{simple_cnn_forward.1} parent=63 // pred_check
          %p4227 = pneg %p279
        $region66: #{simple_cnn_forward.1} parent=63 // pred_check_branch
          %4229 = sbr.rel (%p4227) target = $region68
        $region67: #{simple_cnn_forward.1} parent=63 // pred_region
          %s4231 = ssub.s32 128, 128
          %4232 = vsyncadd %s4223, %s4231
          %s4233 = smul.addr %s25, 128
          %s4234 = scalar_lea.hbm %s11, %s4233
          %s4236 = sshll.u32 %s4226, 4
          %s4237 = int_to_ptr.vmem [resolvable:$true] %s4236
          %4239 = dma.vmem_to_hbm [thread:$0]  %s4237, 128, %s4234, %s4223
        $region68: #{simple_cnn_forward.1} parent=63 // pred_fallthru
          _
      $region64: #{simple_cnn_forward.1} parent=5 // pred_fallthru
        _
      %p4240 = scmp.le.s32.totalorder 2, %s20
      // Predicated region
      $region69: #{simple_cnn_forward.1} parent=5 // pred_check
        %p4241 = pneg %p4240
      $region70: #{simple_cnn_forward.1} parent=5 // pred_check_branch
        %4243 = sbr.rel (%p4241) target = $region72
      $region71: #{simple_cnn_forward.1} parent=5 // pred_region
        %s4244 = ssub.s32 %s20, 2
        // Predicated region
        $region73: #{simple_cnn_forward.1} parent=71 // pred_check
          %p4245 = pneg %p285
        $region74: #{simple_cnn_forward.1} parent=71 // pred_check_branch
          %4247 = sbr.rel (%p4245) target = $region76
        $region75: #{simple_cnn_forward.1} parent=71 // pred_region
          %s4248 = sand.u32 %s270, 1
          %s4249 = scalar_lea.sflag [#allocation3], %s4248
          %s4250 = sand.u32 %s270, 1
          %s4251 = smul.addr %s4250, 8
          %s4252 = scalar_lea.vmem [#allocation2], %s4251
          %4253 = dma.done %s4249, 128
        $region76: #{simple_cnn_forward.1} parent=71 // pred_fallthru
          _
      $region72: #{simple_cnn_forward.1} parent=5 // pred_fallthru
        _
    $region6: #{simple_cnn_forward.1} parent=1 // loop_footer
      %s24 = sadd.s32 1, %s20
    $region7: #{simple_cnn_forward.1} parent=1 // loop_footer_branch
      %19 = sbr.rel target = $region3
    $region8: #{simple_cnn_forward.1} parent=1 // loop_exit
      _
    %4254 = vsyncpa [#allocation3], 1
    %s4255 = scalar_lea.sflag [#allocation3], 1
    %4256 = vsyncpa %s4255, 1

</llo_original>
